<compile_context>
chip_gen: v5e
topology: v5e:2x2
jax: 0.10.0
libtpu: 0.0.40
codegen_flags: <defaults>
</compile_context>

<pallas_src>
import numpy as np
import jax
import jax.numpy as jnp
from jax.experimental import pallas as pl
from jax.experimental.pallas import tpu as pltpu

# ----------------------------- configuration -------------------------------
U_DIM = 100                      # u_dim hard-coded in COGMEN.__init__
U_PAD = 128                      # lane-padded feature width
HIDDEN = 32                      # args.hidden_size
G_DIM = HIDDEN                   # rnn == 'transformer' -> g_dim = hidden_size
H1_DIM = HIDDEN
H2_DIM = HIDDEN
HC_DIM = HIDDEN
GNN_NHEADS = 2                   # args.gnn_nheads
SEQ_NHEADS = 2                   # transformer encoder heads (100 / 2 = 50)
SEQ_DH = U_DIM // SEQ_NHEADS     # 50
FF_DIM = 128                     # transformer FFN width (already lane-dense)
N_SPEAKERS = 2                   # iemocap_4
TAG_SIZE = 4                     # iemocap_4
OUT_PAD = 128                    # lane-padded classifier output width
N_REL = 2 * N_SPEAKERS * N_SPEAKERS   # edge types built in __init__ (== 8)
WP, WF = 2, 2
B, T = 2, 8
BT = B * T                       # 16 flattened (batch, time) rows
N_PAD = 16                       # graph nodes padded to a sublane multiple
HH = GNN_NHEADS * H2_DIM         # 64 (TransformerConv concat width)
HH_PAD = 128                     # lane-padded GAT hidden width
LN_EPS = 1e-5
BN_EPS = 1e-5
NEG_SLOPE = 0.01                 # leaky_relu default
NEG_INF = -1e30


# ----------------------------- fused kernel ---------------------------------
def cogmen_fused_kernel(
    x_ref, sel_ref, seqmask_ref, adjn_ref, adjm_ref,
    # SeqContext (1-layer post-LN encoder + output projection)
    w_qkv, b_qkv, wo, bo, ln1g, ln1b, w1, b1, w2, b2, ln2g, ln2b, wout, bout,
    # RGCNConv (mean aggregation)
    wrel, wroot, b_rgcn,
    # TransformerConv + BatchNorm1d(eval)
    g_wqkv, g_bqkv, g_wskip, g_bskip, bng, bnb, bnm, bnv,
    # Classifier
    c_w1, c_b1, c_w2, c_b2,
    o_ref,
):
    f32 = jnp.float32
    bf16 = jnp.bfloat16

    # lane masks (avoid unaligned lane slices / concats for head handling)
    lane = jax.lax.broadcasted_iota(jnp.int32, (1, U_PAD), 1)
    feat_mask = (lane < U_DIM).astype(f32)                         # real features
    seq_hmask = [((lane >= h * SEQ_DH) & (lane < (h + 1) * SEQ_DH)).astype(f32)
                 for h in range(SEQ_NHEADS)]
    gat_hmask = [((lane >= h * H2_DIM) & (lane < (h + 1) * H2_DIM)).astype(f32)
                 for h in range(GNN_NHEADS)]

    def masked_ln(x, g, b):
        # LayerNorm over the 100 real features only (padding stays zero).
        xm = x * feat_mask
        mu = jnp.sum(xm, axis=-1, keepdims=True) / float(U_DIM)
        d = (x - mu) * feat_mask
        var = jnp.sum(d * d, axis=-1, keepdims=True) / float(U_DIM)
        return (x - mu) * jax.lax.rsqrt(var + LN_EPS) * g + b

    def softmax(s):
        m = jnp.max(s, axis=-1, keepdims=True)
        e = jnp.exp(s - m)
        return e * pl.reciprocal(jnp.sum(e, axis=-1, keepdims=True), approx=True)

    # ------------------ stage 1: SeqContext transformer encoder -------------
    # TODO(synk): the reference SeqContext passes no key-padding mask; padded
    # positions attend freely inside their dialogue and are dropped later by
    # batch_graphify (block-diagonal mask reproduces exactly that behaviour).
    # TODO(synk): a single encoder layer is implemented (seqcontext_nlayer=1).
    x = x_ref[...].astype(f32)                                     # [BT, U_PAD]
    qkv = jnp.dot(x.astype(bf16), w_qkv[...],
                  preferred_element_type=f32) + b_qkv[...]         # [BT, 3*U_PAD]
    q = qkv[:, 0:U_PAD]
    k = qkv[:, U_PAD:2 * U_PAD]
    v = qkv[:, 2 * U_PAD:3 * U_PAD]
    attn_mask = seqmask_ref[...]                                   # [BT, BT]
    scale = 1.0 / float(np.sqrt(SEQ_DH))
    ctx = jnp.zeros((BT, U_PAD), f32)
    for h in range(SEQ_NHEADS):
        s = jnp.dot(q * seq_hmask[h], k.T, preferred_element_type=f32) * scale
        s = jnp.where(attn_mask > 0.0, s, NEG_INF)
        a = softmax(s)
        ctx = ctx + jnp.dot(a, v * seq_hmask[h], preferred_element_type=f32)
    attn = jnp.dot(ctx.astype(bf16), wo[...], preferred_element_type=f32) + bo[...]
    h1 = masked_ln(x + attn, ln1g[...], ln1b[...])
    ff_h = jnp.maximum(jnp.dot(h1.astype(bf16), w1[...],
                               preferred_element_type=f32) + b1[...], 0.0)
    ff = jnp.dot(ff_h.astype(bf16), w2[...], preferred_element_type=f32) + b2[...]
    h2 = masked_ln(h1 + ff, ln2g[...], ln2b[...])
    node_feat = jnp.dot(h2.astype(bf16), wout[...],
                        preferred_element_type=f32) + bout[...]    # [BT, G_DIM]

    # ------------------ stage 2: batch_graphify flatten (dense gather) ------
    feats = jnp.dot(sel_ref[...], node_feat,
                    preferred_element_type=f32)                    # [N_PAD, G_DIM]

    # ------------------ stage 3: RGCNConv, relations unrolled in-kernel -----
    acc = jnp.dot(feats, wroot[...], preferred_element_type=f32) + b_rgcn[...]
    for r in range(N_REL):
        msg = jnp.dot(adjn_ref[r], feats, preferred_element_type=f32)
        acc = acc + jnp.dot(msg, wrel[r], preferred_element_type=f32)
    # acc: [N_PAD, H1_DIM]

    # ------------------ stage 4: TransformerConv + BN(eval) + leaky_relu ----
    gqkv = jnp.dot(acc, g_wqkv[...], preferred_element_type=f32) + g_bqkv[...]
    gq = gqkv[:, 0:HH_PAD]
    gk = gqkv[:, HH_PAD:2 * HH_PAD]
    gv = gqkv[:, 2 * HH_PAD:3 * HH_PAD]
    adj_mask = adjm_ref[...]                                       # [N_PAD, N_PAD]
    gscale = 1.0 / float(np.sqrt(H2_DIM))
    gctx = jnp.zeros((N_PAD, HH_PAD), f32)
    for h in range(GNN_NHEADS):
        s = jnp.dot(gq * gat_hmask[h], gk.T, preferred_element_type=f32) * gscale
        s = jnp.where(adj_mask > 0.0, s, NEG_INF)
        a = softmax(s)
        gctx = gctx + jnp.dot(a, gv * gat_hmask[h], preferred_element_type=f32)
    gout = gctx + jnp.dot(acc, g_wskip[...], preferred_element_type=f32) + g_bskip[...]
    gout = (gout - bnm[...]) * jax.lax.rsqrt(bnv[...] + BN_EPS) * bng[...] + bnb[...]
    gout = jnp.where(gout >= 0.0, gout, NEG_SLOPE * gout)          # [N_PAD, HH_PAD]

    # ------------------ stage 5: Classifier MLP + log_softmax ---------------
    hcl = jnp.maximum(jnp.dot(gout, c_w1[...],
                              preferred_element_type=f32) + c_b1[...], 0.0)
    s = jnp.dot(hcl, c_w2[...], preferred_element_type=f32) + c_b2[...]  # [N_PAD, OUT_PAD]
    m = jnp.max(s, axis=-1, keepdims=True)        # padded classes carry -1e30 bias
    lse = jnp.log(jnp.sum(jnp.exp(s - m), axis=-1, keepdims=True)) + m
    o_ref[...] = (s - lse).astype(o_ref.dtype)


# ----------------------------- pallas wrapper --------------------------------
def _fs(shape):
    n = len(shape)
    return pl.BlockSpec(tuple(shape), lambda i, n=n: (0,) * n)


def run_cogmen_fused(x_pad, sel, seq_mask, adj_norm, adj_mask, params):
    weights = params["seq"] + params["rgcn"] + params["gat"] + params["clf"]
    args = [x_pad, sel, seq_mask, adj_norm, adj_mask] + weights
    return pl.pallas_call(
        cogmen_fused_kernel,
        grid=(1,),
        in_specs=[_fs(a.shape) for a in args],
        out_specs=_fs((N_PAD, OUT_PAD)),
        out_shape=jax.ShapeDtypeStruct((N_PAD, OUT_PAD), jnp.float32),
        compiler_params=pltpu.CompilerParams(dimension_semantics=("arbitrary",)),
    )(*args)


# ----------------------------- glue: batch_graphify --------------------------
def build_graph(lengths, speakers, wp, wf, n_speakers, n_rel, n_pad):
    """Dense re-expression of COGMEN's batch_graphify edge construction.

    edge (src=j -> dst=k) for k in [j-wp, j+wf] within each dialogue;
    edge type = (spk[src]*n_speakers + spk[dst])*2 + (0 if src<dst else 1).
    Padded node rows/cols are all-zero.
    """
    n_nodes = int(sum(lengths))
    adj = np.zeros((n_rel, n_pad, n_pad), np.float32)
    off = 0
    for b, L in enumerate(lengths):
        spk = speakers[b]
        for j in range(L):
            for k in range(max(0, j - wp), min(L, j + wf + 1)):
                src, dst = off + j, off + k
                c = 0 if j < k else 1
                r = (int(spk[j]) * n_speakers + int(spk[k])) * 2 + c
                adj[r, dst, src] = 1.0
        off += L
    mask = (adj.sum(axis=0) > 0).astype(np.float32)     # union adjacency [dst, src]
    deg = adj.sum(axis=2, keepdims=True)                # in-degree per relation
    adj_norm = adj / np.maximum(deg, 1.0)               # RGCN 'mean' aggregation
    return adj_norm, mask, n_nodes


def build_flatten_tables(lengths):
    """Selection matrix node -> flattened (b, t) row, and block-diag attention mask."""
    sel = np.zeros((N_PAD, BT), np.float32)
    off = 0
    for b, L in enumerate(lengths):
        for t in range(L):
            sel[off + t, b * T + t] = 1.0
        off += L
    blk = np.zeros((BT, BT), np.float32)
    for b in range(B):
        blk[b * T:(b + 1) * T, b * T:(b + 1) * T] = 1.0
    return sel, blk


# ----------------------------- parameters ------------------------------------
def init_params(key):
    ks = list(jax.random.split(key, 40))

    def dense(shape, scale=0.05):
        return (scale * jax.random.normal(ks.pop(), shape)).astype(jnp.float32)

    def pad2(w, rows, cols):
        out = jnp.zeros((rows, cols), jnp.float32)
        return out.at[: w.shape[0], : w.shape[1]].set(w)

    def pad_row(v, cols, fill=0.0):
        out = jnp.full((1, cols), fill, jnp.float32)
        return out.at[:, : v.shape[-1]].set(v.reshape(1, -1))

    zeros = lambda n: jnp.zeros((n,), jnp.float32)
    ones = lambda n: jnp.ones((n,), jnp.float32)

    # SeqContext: fused QKV, output proj, FFN, two LayerNorms, output projection.
    wq = pad2(dense((U_DIM, U_DIM)), U_PAD, U_PAD)
    wk = pad2(dense((U_DIM, U_DIM)), U_PAD, U_PAD)
    wv = pad2(dense((U_DIM, U_DIM)), U_PAD, U_PAD)
    seq = [
        jnp.concatenate([wq, wk, wv], axis=1).astype(jnp.bfloat16),   # w_qkv
        pad_row(zeros(3 * U_DIM if False else 3 * U_PAD), 3 * U_PAD), # b_qkv (zeros)
        pad2(dense((U_DIM, U_DIM)), U_PAD, U_PAD).astype(jnp.bfloat16),  # wo
        pad_row(zeros(U_DIM), U_PAD),                                 # bo
        pad_row(ones(U_DIM), U_PAD), pad_row(zeros(U_DIM), U_PAD),    # ln1 g/b
        pad2(dense((U_DIM, FF_DIM)), U_PAD, FF_DIM).astype(jnp.bfloat16),  # w1
        pad_row(zeros(FF_DIM), FF_DIM),                               # b1
        pad2(dense((FF_DIM, U_DIM)), FF_DIM, U_PAD).astype(jnp.bfloat16),  # w2
        pad_row(zeros(U_DIM), U_PAD),                                 # b2
        pad_row(ones(U_DIM), U_PAD), pad_row(zeros(U_DIM), U_PAD),    # ln2 g/b
        pad2(dense((U_DIM, G_DIM)), U_PAD, G_DIM).astype(jnp.bfloat16),   # wout
        pad_row(zeros(G_DIM), G_DIM),                                 # bout
    ]

    rgcn = [
        dense((N_REL, G_DIM, H1_DIM)),                                # per-relation W
        dense((G_DIM, H1_DIM)),                                       # root W
        pad_row(zeros(H1_DIM), H1_DIM),                               # bias
    ]

    gwq = pad2(dense((H1_DIM, HH)), H1_DIM, HH_PAD)
    gwk = pad2(dense((H1_DIM, HH)), H1_DIM, HH_PAD)
    gwv = pad2(dense((H1_DIM, HH)), H1_DIM, HH_PAD)
    gat = [
        jnp.concatenate([gwq, gwk, gwv], axis=1),                     # g_wqkv [32, 384]
        pad_row(zeros(3 * HH_PAD), 3 * HH_PAD),                       # g_bqkv (zeros)
        pad2(dense((H1_DIM, HH)), H1_DIM, HH_PAD),                    # skip (root) W
        pad_row(zeros(HH), HH_PAD),                                   # skip bias
        pad_row(ones(HH_PAD), HH_PAD), pad_row(zeros(HH_PAD), HH_PAD),  # BN gamma/beta
        pad_row(zeros(HH_PAD), HH_PAD), pad_row(ones(HH_PAD), HH_PAD),  # BN mean/var
    ]

    clf = [
        pad2(dense((HH, HC_DIM)), HH_PAD, HC_DIM),                    # c_w1
        pad_row(zeros(HC_DIM), HC_DIM),                               # c_b1
        pad2(dense((HC_DIM, TAG_SIZE)), HC_DIM, OUT_PAD),             # c_w2 (padded cols 0)
        pad_row(zeros(TAG_SIZE), OUT_PAD, fill=NEG_INF),              # c_b2: pad classes -inf
    ]
    return {"seq": seq, "rgcn": rgcn, "gat": gat, "clf": clf}


# ----------------------------- forward ---------------------------------------
def cogmen_forward(input_tensor, lengths_py, speakers_np, params):
    # pad [B, T, U_DIM] -> lane-dense [B*T, U_PAD]
    x_flat = input_tensor.reshape(BT, U_DIM)
    x_pad = jnp.zeros((BT, U_PAD), jnp.float32).at[:, :U_DIM].set(x_flat)

    sel, seq_mask = build_flatten_tables(lengths_py)
    adj_norm, adj_mask, n_nodes = build_graph(
        lengths_py, speakers_np, WP, WF, N_SPEAKERS, N_REL, N_PAD)

    out_pad = run_cogmen_fused(
        x_pad, jnp.asarray(sel), jnp.asarray(seq_mask),
        jnp.asarray(adj_norm), jnp.asarray(adj_mask), params)        # [N_PAD, 128]

    log_prob = out_pad[:n_nodes, :TAG_SIZE]                          # [N, TAG]
    y_hat = jnp.argmax(log_prob, axis=-1)
    return log_prob, y_hat


# ----------------------------- main -------------------------------------------
if __name__ == "__main__":
    key = jax.random.PRNGKey(0)
    k_in, k_par = jax.random.split(key)

    lengths_py = [8, 6]                                  # text_len_tensor (concrete)
    speakers_np = np.array([[0, 1, 0, 1, 0, 1, 0, 1],
                            [0, 0, 1, 1, 0, 1, 0, 0]], np.int32)
    input_tensor = jax.random.normal(k_in, (B, T, U_DIM), jnp.float32)

    params = init_params(k_par)

    log_prob, y_hat = cogmen_forward(input_tensor, lengths_py, speakers_np, params)
    log_prob = jax.block_until_ready(log_prob)
    y_hat = jax.block_until_ready(y_hat)

    n_nodes = sum(lengths_py)
    assert log_prob.shape == (n_nodes, TAG_SIZE)
    assert y_hat.shape == (n_nodes,)
    assert bool(jnp.all(jnp.isfinite(log_prob)))
    # log_softmax rows must sum to ~1 in prob space
    assert bool(jnp.allclose(jnp.sum(jnp.exp(log_prob), axis=-1), 1.0, atol=1e-4))
    print("KERNEL_OK")
</pallas_src>

<mosaic_0001>
module attributes {stable_mosaic.version = 11 : i64} {
  func.func @cogmen_fused_kernel(%arg0: i32, %arg1: memref<16x128xf32, #tpu.memory_space<vmem>>, %arg2: memref<16x16xf32, #tpu.memory_space<vmem>>, %arg3: memref<16x16xf32, #tpu.memory_space<vmem>>, %arg4: memref<8x16x16xf32, #tpu.memory_space<vmem>>, %arg5: memref<16x16xf32, #tpu.memory_space<vmem>>, %arg6: memref<128x384xbf16, #tpu.memory_space<vmem>>, %arg7: memref<1x384xf32, #tpu.memory_space<vmem>>, %arg8: memref<128x128xbf16, #tpu.memory_space<vmem>>, %arg9: memref<1x128xf32, #tpu.memory_space<vmem>>, %arg10: memref<1x128xf32, #tpu.memory_space<vmem>>, %arg11: memref<1x128xf32, #tpu.memory_space<vmem>>, %arg12: memref<128x128xbf16, #tpu.memory_space<vmem>>, %arg13: memref<1x128xf32, #tpu.memory_space<vmem>>, %arg14: memref<128x128xbf16, #tpu.memory_space<vmem>>, %arg15: memref<1x128xf32, #tpu.memory_space<vmem>>, %arg16: memref<1x128xf32, #tpu.memory_space<vmem>>, %arg17: memref<1x128xf32, #tpu.memory_space<vmem>>, %arg18: memref<128x32xbf16, #tpu.memory_space<vmem>>, %arg19: memref<1x32xf32, #tpu.memory_space<vmem>>, %arg20: memref<8x32x32xf32, #tpu.memory_space<vmem>>, %arg21: memref<32x32xf32, #tpu.memory_space<vmem>>, %arg22: memref<1x32xf32, #tpu.memory_space<vmem>>, %arg23: memref<32x384xf32, #tpu.memory_space<vmem>>, %arg24: memref<1x384xf32, #tpu.memory_space<vmem>>, %arg25: memref<32x128xf32, #tpu.memory_space<vmem>>, %arg26: memref<1x128xf32, #tpu.memory_space<vmem>>, %arg27: memref<1x128xf32, #tpu.memory_space<vmem>>, %arg28: memref<1x128xf32, #tpu.memory_space<vmem>>, %arg29: memref<1x128xf32, #tpu.memory_space<vmem>>, %arg30: memref<1x128xf32, #tpu.memory_space<vmem>>, %arg31: memref<128x32xf32, #tpu.memory_space<vmem>>, %arg32: memref<1x32xf32, #tpu.memory_space<vmem>>, %arg33: memref<32x128xf32, #tpu.memory_space<vmem>>, %arg34: memref<1x128xf32, #tpu.memory_space<vmem>>, %arg35: memref<16x128xf32, #tpu.memory_space<vmem>>) attributes {dimension_semantics = [#tpu.dimension_semantics<arbitrary>], iteration_bounds = array<i64: 1>, scalar_prefetch = 0 : i64, scratch_operands = 0 : i64, tpu.core_type = #tpu.core_type<tc>, window_params = [{pipeline_mode = #tpu.pipeline_mode<synchronous>, transform_indices = @transform_0, window_bounds = array<i64: 16, 128>}, {pipeline_mode = #tpu.pipeline_mode<synchronous>, transform_indices = @transform_1, window_bounds = array<i64: 16, 16>}, {pipeline_mode = #tpu.pipeline_mode<synchronous>, transform_indices = @transform_2, window_bounds = array<i64: 16, 16>}, {pipeline_mode = #tpu.pipeline_mode<synchronous>, transform_indices = @transform_3, window_bounds = array<i64: 8, 16, 16>}, {pipeline_mode = #tpu.pipeline_mode<synchronous>, transform_indices = @transform_4, window_bounds = array<i64: 16, 16>}, {pipeline_mode = #tpu.pipeline_mode<synchronous>, transform_indices = @transform_5, window_bounds = array<i64: 128, 384>}, {pipeline_mode = #tpu.pipeline_mode<synchronous>, transform_indices = @transform_6, window_bounds = array<i64: 1, 384>}, {pipeline_mode = #tpu.pipeline_mode<synchronous>, transform_indices = @transform_7, window_bounds = array<i64: 128, 128>}, {pipeline_mode = #tpu.pipeline_mode<synchronous>, transform_indices = @transform_8, window_bounds = array<i64: 1, 128>}, {pipeline_mode = #tpu.pipeline_mode<synchronous>, transform_indices = @transform_9, window_bounds = array<i64: 1, 128>}, {pipeline_mode = #tpu.pipeline_mode<synchronous>, transform_indices = @transform_10, window_bounds = array<i64: 1, 128>}, {pipeline_mode = #tpu.pipeline_mode<synchronous>, transform_indices = @transform_11, window_bounds = array<i64: 128, 128>}, {pipeline_mode = #tpu.pipeline_mode<synchronous>, transform_indices = @transform_12, window_bounds = array<i64: 1, 128>}, {pipeline_mode = #tpu.pipeline_mode<synchronous>, transform_indices = @transform_13, window_bounds = array<i64: 128, 128>}, {pipeline_mode = #tpu.pipeline_mode<synchronous>, transform_indices = @transform_14, window_bounds = array<i64: 1, 128>}, {pipeline_mode = #tpu.pipeline_mode<synchronous>, transform_indices = @transform_15, window_bounds = array<i64: 1, 128>}, {pipeline_mode = #tpu.pipeline_mode<synchronous>, transform_indices = @transform_16, window_bounds = array<i64: 1, 128>}, {pipeline_mode = #tpu.pipeline_mode<synchronous>, transform_indices = @transform_17, window_bounds = array<i64: 128, 32>}, {pipeline_mode = #tpu.pipeline_mode<synchronous>, transform_indices = @transform_18, window_bounds = array<i64: 1, 32>}, {pipeline_mode = #tpu.pipeline_mode<synchronous>, transform_indices = @transform_19, window_bounds = array<i64: 8, 32, 32>}, {pipeline_mode = #tpu.pipeline_mode<synchronous>, transform_indices = @transform_20, window_bounds = array<i64: 32, 32>}, {pipeline_mode = #tpu.pipeline_mode<synchronous>, transform_indices = @transform_21, window_bounds = array<i64: 1, 32>}, {pipeline_mode = #tpu.pipeline_mode<synchronous>, transform_indices = @transform_22, window_bounds = array<i64: 32, 384>}, {pipeline_mode = #tpu.pipeline_mode<synchronous>, transform_indices = @transform_23, window_bounds = array<i64: 1, 384>}, {pipeline_mode = #tpu.pipeline_mode<synchronous>, transform_indices = @transform_24, window_bounds = array<i64: 32, 128>}, {pipeline_mode = #tpu.pipeline_mode<synchronous>, transform_indices = @transform_25, window_bounds = array<i64: 1, 128>}, {pipeline_mode = #tpu.pipeline_mode<synchronous>, transform_indices = @transform_26, window_bounds = array<i64: 1, 128>}, {pipeline_mode = #tpu.pipeline_mode<synchronous>, transform_indices = @transform_27, window_bounds = array<i64: 1, 128>}, {pipeline_mode = #tpu.pipeline_mode<synchronous>, transform_indices = @transform_28, window_bounds = array<i64: 1, 128>}, {pipeline_mode = #tpu.pipeline_mode<synchronous>, transform_indices = @transform_29, window_bounds = array<i64: 1, 128>}, {pipeline_mode = #tpu.pipeline_mode<synchronous>, transform_indices = @transform_30, window_bounds = array<i64: 128, 32>}, {pipeline_mode = #tpu.pipeline_mode<synchronous>, transform_indices = @transform_31, window_bounds = array<i64: 1, 32>}, {pipeline_mode = #tpu.pipeline_mode<synchronous>, transform_indices = @transform_32, window_bounds = array<i64: 32, 128>}, {pipeline_mode = #tpu.pipeline_mode<synchronous>, transform_indices = @transform_33, window_bounds = array<i64: 1, 128>}, {pipeline_mode = #tpu.pipeline_mode<synchronous>, transform_indices = @transform_34, window_bounds = array<i64: 16, 128>}]} {
    %0 = tpu.iota {dimensions = array<i32: 1>} : vector<1x128xi32>
    %c100_i32 = arith.constant 100 : i32
    %1 = vector.broadcast %c100_i32 : i32 to vector<1x128xi32>
    %2 = arith.cmpi slt, %0, %1 : vector<1x128xi32>
    %3 = arith.extui %2 : vector<1x128xi1> to vector<1x128xi32>
    %4 = arith.sitofp %3 : vector<1x128xi32> to vector<1x128xf32>
    %c0_i32 = arith.constant 0 : i32
    %5 = vector.broadcast %c0_i32 : i32 to vector<1x128xi32>
    %6 = arith.cmpi sge, %0, %5 : vector<1x128xi32>
    %c50_i32 = arith.constant 50 : i32
    %7 = vector.broadcast %c50_i32 : i32 to vector<1x128xi32>
    %8 = arith.cmpi slt, %0, %7 : vector<1x128xi32>
    %9 = arith.andi %6, %8 : vector<1x128xi1>
    %10 = arith.extui %9 : vector<1x128xi1> to vector<1x128xi32>
    %11 = arith.sitofp %10 : vector<1x128xi32> to vector<1x128xf32>
    %c50_i32_0 = arith.constant 50 : i32
    %12 = vector.broadcast %c50_i32_0 : i32 to vector<1x128xi32>
    %13 = arith.cmpi sge, %0, %12 : vector<1x128xi32>
    %c100_i32_1 = arith.constant 100 : i32
    %14 = vector.broadcast %c100_i32_1 : i32 to vector<1x128xi32>
    %15 = arith.cmpi slt, %0, %14 : vector<1x128xi32>
    %16 = arith.andi %13, %15 : vector<1x128xi1>
    %17 = arith.extui %16 : vector<1x128xi1> to vector<1x128xi32>
    %18 = arith.sitofp %17 : vector<1x128xi32> to vector<1x128xf32>
    %c0_i32_2 = arith.constant 0 : i32
    %19 = vector.broadcast %c0_i32_2 : i32 to vector<1x128xi32>
    %20 = arith.cmpi sge, %0, %19 : vector<1x128xi32>
    %c32_i32 = arith.constant 32 : i32
    %21 = vector.broadcast %c32_i32 : i32 to vector<1x128xi32>
    %22 = arith.cmpi slt, %0, %21 : vector<1x128xi32>
    %23 = arith.andi %20, %22 : vector<1x128xi1>
    %24 = arith.extui %23 : vector<1x128xi1> to vector<1x128xi32>
    %25 = arith.sitofp %24 : vector<1x128xi32> to vector<1x128xf32>
    %c32_i32_3 = arith.constant 32 : i32
    %26 = vector.broadcast %c32_i32_3 : i32 to vector<1x128xi32>
    %27 = arith.cmpi sge, %0, %26 : vector<1x128xi32>
    %c64_i32 = arith.constant 64 : i32
    %28 = vector.broadcast %c64_i32 : i32 to vector<1x128xi32>
    %29 = arith.cmpi slt, %0, %28 : vector<1x128xi32>
    %30 = arith.andi %27, %29 : vector<1x128xi1>
    %31 = arith.extui %30 : vector<1x128xi1> to vector<1x128xi32>
    %32 = arith.sitofp %31 : vector<1x128xi32> to vector<1x128xf32>
    %c0 = arith.constant 0 : index
    %c0_4 = arith.constant 0 : index
    %33 = vector.load %arg1[%c0, %c0_4] : memref<16x128xf32, #tpu.memory_space<vmem>>, vector<16x128xf32>
    %34 = arith.truncf %33 : vector<16x128xf32> to vector<16x128xbf16>
    %c0_5 = arith.constant 0 : index
    %c0_6 = arith.constant 0 : index
    %35 = vector.load %arg6[%c0_5, %c0_6] : memref<128x384xbf16, #tpu.memory_space<vmem>>, vector<128x384xbf16>
    %cst = arith.constant dense<0.000000e+00> : vector<16x384xf32>
    %36 = tpu.matmul %34, %35, %cst {dimension_numbers = #tpu.dot_dimension_numbers<[1], [0], [0], [1], [0, 0, 1, 1], [], []>} : vector<16x128xbf16>, vector<128x384xbf16>, vector<16x384xf32> -> vector<16x384xf32>
    %c0_7 = arith.constant 0 : index
    %c0_8 = arith.constant 0 : index
    %37 = vector.load %arg7[%c0_7, %c0_8] : memref<1x384xf32, #tpu.memory_space<vmem>>, vector<1x384xf32>
    %38 = vector.broadcast %37 : vector<1x384xf32> to vector<16x384xf32>
    %39 = arith.addf %36, %38 : vector<16x384xf32>
    %40 = vector.extract_strided_slice %39 {offsets = [0, 0], sizes = [16, 128], strides = [1, 1]} : vector<16x384xf32> to vector<16x128xf32>
    %41 = vector.extract_strided_slice %39 {offsets = [0, 128], sizes = [16, 128], strides = [1, 1]} : vector<16x384xf32> to vector<16x128xf32>
    %42 = vector.extract_strided_slice %39 {offsets = [0, 256], sizes = [16, 128], strides = [1, 1]} : vector<16x384xf32> to vector<16x128xf32>
    %c0_9 = arith.constant 0 : index
    %c0_10 = arith.constant 0 : index
    %43 = vector.load %arg3[%c0_9, %c0_10] : memref<16x16xf32, #tpu.memory_space<vmem>>, vector<16x16xf32>
    %cst_11 = arith.constant 0.000000e+00 : f32
    %44 = vector.broadcast %cst_11 : f32 to vector<16x128xf32>
    %45 = vector.broadcast %11 : vector<1x128xf32> to vector<16x128xf32>
    %46 = arith.mulf %40, %45 : vector<16x128xf32>
    %47 = tpu.transpose %41, [1, 0] : vector<16x128xf32> -> vector<128x16xf32>
    %cst_12 = arith.constant dense<0.000000e+00> : vector<16x16xf32>
    %48 = tpu.matmul %46, %47, %cst_12 {dimension_numbers = #tpu.dot_dimension_numbers<[1], [0], [0], [1], [0, 0, 1, 1], [], []>} : vector<16x128xf32>, vector<128x16xf32>, vector<16x16xf32> -> vector<16x16xf32>
    %cst_13 = arith.constant 0.141421363 : f32
    %49 = vector.broadcast %cst_13 : f32 to vector<16x16xf32>
    %50 = arith.mulf %48, %49 : vector<16x16xf32>
    %cst_14 = arith.constant 0.000000e+00 : f32
    %51 = vector.broadcast %cst_14 : f32 to vector<16x16xf32>
    %52 = arith.cmpf ogt, %43, %51 : vector<16x16xf32>
    %cst_15 = arith.constant -1.000000e+30 : f32
    %53 = vector.broadcast %cst_15 : f32 to vector<16x16xf32>
    %54 = arith.select %52, %50, %53 : vector<16x16xi1>, vector<16x16xf32>
    %cst_16 = arith.constant dense<0xFF800000> : vector<16xf32>
    %55 = vector.multi_reduction <maximumf>, %54, %cst_16 [1] : vector<16x16xf32> to vector<16xf32>
    %56 = vector.shape_cast %55 : vector<16xf32> to vector<16x1xf32>
    %57 = vector.broadcast %56 : vector<16x1xf32> to vector<16x16xf32>
    %58 = arith.subf %54, %57 : vector<16x16xf32>
    %59 = math.exp %58 : vector<16x16xf32>
    %cst_17 = arith.constant dense<0.000000e+00> : vector<16xf32>
    %60 = vector.multi_reduction <add>, %59, %cst_17 [1] : vector<16x16xf32> to vector<16xf32>
    %61 = vector.shape_cast %60 : vector<16xf32> to vector<16x1xf32>
    %62 = tpu.reciprocal %61 {approx = true} : vector<16x1xf32> -> vector<16x1xf32>
    %63 = vector.broadcast %62 : vector<16x1xf32> to vector<16x16xf32>
    %64 = arith.mulf %59, %63 : vector<16x16xf32>
    %65 = vector.broadcast %11 : vector<1x128xf32> to vector<16x128xf32>
    %66 = arith.mulf %42, %65 : vector<16x128xf32>
    %cst_18 = arith.constant dense<0.000000e+00> : vector<16x128xf32>
    %67 = tpu.matmul %64, %66, %cst_18 {dimension_numbers = #tpu.dot_dimension_numbers<[1], [0], [0], [1], [0, 0, 1, 1], [], []>} : vector<16x16xf32>, vector<16x128xf32>, vector<16x128xf32> -> vector<16x128xf32>
    %68 = arith.addf %44, %67 : vector<16x128xf32>
    %69 = vector.broadcast %18 : vector<1x128xf32> to vector<16x128xf32>
    %70 = arith.mulf %40, %69 : vector<16x128xf32>
    %71 = tpu.transpose %41, [1, 0] : vector<16x128xf32> -> vector<128x16xf32>
    %cst_19 = arith.constant dense<0.000000e+00> : vector<16x16xf32>
    %72 = tpu.matmul %70, %71, %cst_19 {dimension_numbers = #tpu.dot_dimension_numbers<[1], [0], [0], [1], [0, 0, 1, 1], [], []>} : vector<16x128xf32>, vector<128x16xf32>, vector<16x16xf32> -> vector<16x16xf32>
    %cst_20 = arith.constant 0.141421363 : f32
    %73 = vector.broadcast %cst_20 : f32 to vector<16x16xf32>
    %74 = arith.mulf %72, %73 : vector<16x16xf32>
    %cst_21 = arith.constant 0.000000e+00 : f32
    %75 = vector.broadcast %cst_21 : f32 to vector<16x16xf32>
    %76 = arith.cmpf ogt, %43, %75 : vector<16x16xf32>
    %cst_22 = arith.constant -1.000000e+30 : f32
    %77 = vector.broadcast %cst_22 : f32 to vector<16x16xf32>
    %78 = arith.select %76, %74, %77 : vector<16x16xi1>, vector<16x16xf32>
    %cst_23 = arith.constant dense<0xFF800000> : vector<16xf32>
    %79 = vector.multi_reduction <maximumf>, %78, %cst_23 [1] : vector<16x16xf32> to vector<16xf32>
    %80 = vector.shape_cast %79 : vector<16xf32> to vector<16x1xf32>
    %81 = vector.broadcast %80 : vector<16x1xf32> to vector<16x16xf32>
    %82 = arith.subf %78, %81 : vector<16x16xf32>
    %83 = math.exp %82 : vector<16x16xf32>
    %cst_24 = arith.constant dense<0.000000e+00> : vector<16xf32>
    %84 = vector.multi_reduction <add>, %83, %cst_24 [1] : vector<16x16xf32> to vector<16xf32>
    %85 = vector.shape_cast %84 : vector<16xf32> to vector<16x1xf32>
    %86 = tpu.reciprocal %85 {approx = true} : vector<16x1xf32> -> vector<16x1xf32>
    %87 = vector.broadcast %86 : vector<16x1xf32> to vector<16x16xf32>
    %88 = arith.mulf %83, %87 : vector<16x16xf32>
    %89 = vector.broadcast %18 : vector<1x128xf32> to vector<16x128xf32>
    %90 = arith.mulf %42, %89 : vector<16x128xf32>
    %cst_25 = arith.constant dense<0.000000e+00> : vector<16x128xf32>
    %91 = tpu.matmul %88, %90, %cst_25 {dimension_numbers = #tpu.dot_dimension_numbers<[1], [0], [0], [1], [0, 0, 1, 1], [], []>} : vector<16x16xf32>, vector<16x128xf32>, vector<16x128xf32> -> vector<16x128xf32>
    %92 = arith.addf %68, %91 : vector<16x128xf32>
    %93 = arith.truncf %92 : vector<16x128xf32> to vector<16x128xbf16>
    %c0_26 = arith.constant 0 : index
    %c0_27 = arith.constant 0 : index
    %94 = vector.load %arg8[%c0_26, %c0_27] : memref<128x128xbf16, #tpu.memory_space<vmem>>, vector<128x128xbf16>
    %cst_28 = arith.constant dense<0.000000e+00> : vector<16x128xf32>
    %95 = tpu.matmul %93, %94, %cst_28 {dimension_numbers = #tpu.dot_dimension_numbers<[1], [0], [0], [1], [0, 0, 1, 1], [], []>} : vector<16x128xbf16>, vector<128x128xbf16>, vector<16x128xf32> -> vector<16x128xf32>
    %c0_29 = arith.constant 0 : index
    %c0_30 = arith.constant 0 : index
    %96 = vector.load %arg9[%c0_29, %c0_30] : memref<1x128xf32, #tpu.memory_space<vmem>>, vector<1x128xf32>
    %97 = vector.broadcast %96 : vector<1x128xf32> to vector<16x128xf32>
    %98 = arith.addf %95, %97 : vector<16x128xf32>
    %99 = arith.addf %33, %98 : vector<16x128xf32>
    %c0_31 = arith.constant 0 : index
    %c0_32 = arith.constant 0 : index
    %100 = vector.load %arg10[%c0_31, %c0_32] : memref<1x128xf32, #tpu.memory_space<vmem>>, vector<1x128xf32>
    %c0_33 = arith.constant 0 : index
    %c0_34 = arith.constant 0 : index
    %101 = vector.load %arg11[%c0_33, %c0_34] : memref<1x128xf32, #tpu.memory_space<vmem>>, vector<1x128xf32>
    %102 = vector.broadcast %4 : vector<1x128xf32> to vector<16x128xf32>
    %103 = arith.mulf %99, %102 : vector<16x128xf32>
    %cst_35 = arith.constant dense<0.000000e+00> : vector<16xf32>
    %104 = vector.multi_reduction <add>, %103, %cst_35 [1] : vector<16x128xf32> to vector<16xf32>
    %105 = vector.shape_cast %104 : vector<16xf32> to vector<16x1xf32>
    %cst_36 = arith.constant 1.000000e+02 : f32
    %106 = vector.broadcast %cst_36 : f32 to vector<16x1xf32>
    %107 = arith.divf %105, %106 : vector<16x1xf32>
    %108 = vector.broadcast %107 : vector<16x1xf32> to vector<16x128xf32>
    %109 = arith.subf %99, %108 : vector<16x128xf32>
    %110 = vector.broadcast %4 : vector<1x128xf32> to vector<16x128xf32>
    %111 = arith.mulf %109, %110 : vector<16x128xf32>
    %112 = arith.mulf %111, %111 : vector<16x128xf32>
    %cst_37 = arith.constant dense<0.000000e+00> : vector<16xf32>
    %113 = vector.multi_reduction <add>, %112, %cst_37 [1] : vector<16x128xf32> to vector<16xf32>
    %114 = vector.shape_cast %113 : vector<16xf32> to vector<16x1xf32>
    %cst_38 = arith.constant 1.000000e+02 : f32
    %115 = vector.broadcast %cst_38 : f32 to vector<16x1xf32>
    %116 = arith.divf %114, %115 : vector<16x1xf32>
    %117 = vector.broadcast %107 : vector<16x1xf32> to vector<16x128xf32>
    %118 = arith.subf %99, %117 : vector<16x128xf32>
    %cst_39 = arith.constant 9.99999974E-6 : f32
    %119 = vector.broadcast %cst_39 : f32 to vector<16x1xf32>
    %120 = arith.addf %116, %119 : vector<16x1xf32>
    %121 = math.rsqrt %120 : vector<16x1xf32>
    %122 = vector.broadcast %121 : vector<16x1xf32> to vector<16x128xf32>
    %123 = arith.mulf %118, %122 : vector<16x128xf32>
    %124 = vector.broadcast %100 : vector<1x128xf32> to vector<16x128xf32>
    %125 = arith.mulf %123, %124 : vector<16x128xf32>
    %126 = vector.broadcast %101 : vector<1x128xf32> to vector<16x128xf32>
    %127 = arith.addf %125, %126 : vector<16x128xf32>
    %128 = arith.truncf %127 : vector<16x128xf32> to vector<16x128xbf16>
    %c0_40 = arith.constant 0 : index
    %c0_41 = arith.constant 0 : index
    %129 = vector.load %arg12[%c0_40, %c0_41] : memref<128x128xbf16, #tpu.memory_space<vmem>>, vector<128x128xbf16>
    %cst_42 = arith.constant dense<0.000000e+00> : vector<16x128xf32>
    %130 = tpu.matmul %128, %129, %cst_42 {dimension_numbers = #tpu.dot_dimension_numbers<[1], [0], [0], [1], [0, 0, 1, 1], [], []>} : vector<16x128xbf16>, vector<128x128xbf16>, vector<16x128xf32> -> vector<16x128xf32>
    %c0_43 = arith.constant 0 : index
    %c0_44 = arith.constant 0 : index
    %131 = vector.load %arg13[%c0_43, %c0_44] : memref<1x128xf32, #tpu.memory_space<vmem>>, vector<1x128xf32>
    %132 = vector.broadcast %131 : vector<1x128xf32> to vector<16x128xf32>
    %133 = arith.addf %130, %132 : vector<16x128xf32>
    %cst_45 = arith.constant 0.000000e+00 : f32
    %134 = vector.broadcast %cst_45 : f32 to vector<16x128xf32>
    %135 = arith.maximumf %133, %134 : vector<16x128xf32>
    %136 = arith.truncf %135 : vector<16x128xf32> to vector<16x128xbf16>
    %c0_46 = arith.constant 0 : index
    %c0_47 = arith.constant 0 : index
    %137 = vector.load %arg14[%c0_46, %c0_47] : memref<128x128xbf16, #tpu.memory_space<vmem>>, vector<128x128xbf16>
    %cst_48 = arith.constant dense<0.000000e+00> : vector<16x128xf32>
    %138 = tpu.matmul %136, %137, %cst_48 {dimension_numbers = #tpu.dot_dimension_numbers<[1], [0], [0], [1], [0, 0, 1, 1], [], []>} : vector<16x128xbf16>, vector<128x128xbf16>, vector<16x128xf32> -> vector<16x128xf32>
    %c0_49 = arith.constant 0 : index
    %c0_50 = arith.constant 0 : index
    %139 = vector.load %arg15[%c0_49, %c0_50] : memref<1x128xf32, #tpu.memory_space<vmem>>, vector<1x128xf32>
    %140 = vector.broadcast %139 : vector<1x128xf32> to vector<16x128xf32>
    %141 = arith.addf %138, %140 : vector<16x128xf32>
    %142 = arith.addf %127, %141 : vector<16x128xf32>
    %c0_51 = arith.constant 0 : index
    %c0_52 = arith.constant 0 : index
    %143 = vector.load %arg16[%c0_51, %c0_52] : memref<1x128xf32, #tpu.memory_space<vmem>>, vector<1x128xf32>
    %c0_53 = arith.constant 0 : index
    %c0_54 = arith.constant 0 : index
    %144 = vector.load %arg17[%c0_53, %c0_54] : memref<1x128xf32, #tpu.memory_space<vmem>>, vector<1x128xf32>
    %145 = vector.broadcast %4 : vector<1x128xf32> to vector<16x128xf32>
    %146 = arith.mulf %142, %145 : vector<16x128xf32>
    %cst_55 = arith.constant dense<0.000000e+00> : vector<16xf32>
    %147 = vector.multi_reduction <add>, %146, %cst_55 [1] : vector<16x128xf32> to vector<16xf32>
    %148 = vector.shape_cast %147 : vector<16xf32> to vector<16x1xf32>
    %cst_56 = arith.constant 1.000000e+02 : f32
    %149 = vector.broadcast %cst_56 : f32 to vector<16x1xf32>
    %150 = arith.divf %148, %149 : vector<16x1xf32>
    %151 = vector.broadcast %150 : vector<16x1xf32> to vector<16x128xf32>
    %152 = arith.subf %142, %151 : vector<16x128xf32>
    %153 = vector.broadcast %4 : vector<1x128xf32> to vector<16x128xf32>
    %154 = arith.mulf %152, %153 : vector<16x128xf32>
    %155 = arith.mulf %154, %154 : vector<16x128xf32>
    %cst_57 = arith.constant dense<0.000000e+00> : vector<16xf32>
    %156 = vector.multi_reduction <add>, %155, %cst_57 [1] : vector<16x128xf32> to vector<16xf32>
    %157 = vector.shape_cast %156 : vector<16xf32> to vector<16x1xf32>
    %cst_58 = arith.constant 1.000000e+02 : f32
    %158 = vector.broadcast %cst_58 : f32 to vector<16x1xf32>
    %159 = arith.divf %157, %158 : vector<16x1xf32>
    %160 = vector.broadcast %150 : vector<16x1xf32> to vector<16x128xf32>
    %161 = arith.subf %142, %160 : vector<16x128xf32>
    %cst_59 = arith.constant 9.99999974E-6 : f32
    %162 = vector.broadcast %cst_59 : f32 to vector<16x1xf32>
    %163 = arith.addf %159, %162 : vector<16x1xf32>
    %164 = math.rsqrt %163 : vector<16x1xf32>
    %165 = vector.broadcast %164 : vector<16x1xf32> to vector<16x128xf32>
    %166 = arith.mulf %161, %165 : vector<16x128xf32>
    %167 = vector.broadcast %143 : vector<1x128xf32> to vector<16x128xf32>
    %168 = arith.mulf %166, %167 : vector<16x128xf32>
    %169 = vector.broadcast %144 : vector<1x128xf32> to vector<16x128xf32>
    %170 = arith.addf %168, %169 : vector<16x128xf32>
    %171 = arith.truncf %170 : vector<16x128xf32> to vector<16x128xbf16>
    %c0_60 = arith.constant 0 : index
    %c0_61 = arith.constant 0 : index
    %172 = vector.load %arg18[%c0_60, %c0_61] : memref<128x32xbf16, #tpu.memory_space<vmem>>, vector<128x32xbf16>
    %cst_62 = arith.constant dense<0.000000e+00> : vector<16x32xf32>
    %173 = tpu.matmul %171, %172, %cst_62 {dimension_numbers = #tpu.dot_dimension_numbers<[1], [0], [0], [1], [0, 0, 1, 1], [], []>} : vector<16x128xbf16>, vector<128x32xbf16>, vector<16x32xf32> -> vector<16x32xf32>
    %c0_63 = arith.constant 0 : index
    %c0_64 = arith.constant 0 : index
    %174 = vector.load %arg19[%c0_63, %c0_64] : memref<1x32xf32, #tpu.memory_space<vmem>>, vector<1x32xf32>
    %175 = vector.broadcast %174 : vector<1x32xf32> to vector<16x32xf32>
    %176 = arith.addf %173, %175 : vector<16x32xf32>
    %c0_65 = arith.constant 0 : index
    %c0_66 = arith.constant 0 : index
    %177 = vector.load %arg2[%c0_65, %c0_66] : memref<16x16xf32, #tpu.memory_space<vmem>>, vector<16x16xf32>
    %cst_67 = arith.constant dense<0.000000e+00> : vector<16x32xf32>
    %178 = tpu.matmul %177, %176, %cst_67 {dimension_numbers = #tpu.dot_dimension_numbers<[1], [0], [0], [1], [0, 0, 1, 1], [], []>} : vector<16x16xf32>, vector<16x32xf32>, vector<16x32xf32> -> vector<16x32xf32>
    %c0_68 = arith.constant 0 : index
    %c0_69 = arith.constant 0 : index
    %179 = vector.load %arg21[%c0_68, %c0_69] : memref<32x32xf32, #tpu.memory_space<vmem>>, vector<32x32xf32>
    %cst_70 = arith.constant dense<0.000000e+00> : vector<16x32xf32>
    %180 = tpu.matmul %178, %179, %cst_70 {dimension_numbers = #tpu.dot_dimension_numbers<[1], [0], [0], [1], [0, 0, 1, 1], [], []>} : vector<16x32xf32>, vector<32x32xf32>, vector<16x32xf32> -> vector<16x32xf32>
    %c0_71 = arith.constant 0 : index
    %c0_72 = arith.constant 0 : index
    %181 = vector.load %arg22[%c0_71, %c0_72] : memref<1x32xf32, #tpu.memory_space<vmem>>, vector<1x32xf32>
    %182 = vector.broadcast %181 : vector<1x32xf32> to vector<16x32xf32>
    %183 = arith.addf %180, %182 : vector<16x32xf32>
    %c0_73 = arith.constant 0 : index
    %c0_74 = arith.constant 0 : index
    %c0_75 = arith.constant 0 : index
    %184 = vector.load %arg4[%c0_73, %c0_74, %c0_75] : memref<8x16x16xf32, #tpu.memory_space<vmem>>, vector<1x16x16xf32>
    %185 = vector.shape_cast %184 : vector<1x16x16xf32> to vector<16x16xf32>
    %cst_76 = arith.constant dense<0.000000e+00> : vector<16x32xf32>
    %186 = tpu.matmul %185, %178, %cst_76 {dimension_numbers = #tpu.dot_dimension_numbers<[1], [0], [0], [1], [0, 0, 1, 1], [], []>} : vector<16x16xf32>, vector<16x32xf32>, vector<16x32xf32> -> vector<16x32xf32>
    %c0_77 = arith.constant 0 : index
    %c0_78 = arith.constant 0 : index
    %c0_79 = arith.constant 0 : index
    %187 = vector.load %arg20[%c0_77, %c0_78, %c0_79] : memref<8x32x32xf32, #tpu.memory_space<vmem>>, vector<1x32x32xf32>
    %188 = vector.shape_cast %187 : vector<1x32x32xf32> to vector<32x32xf32>
    %cst_80 = arith.constant dense<0.000000e+00> : vector<16x32xf32>
    %189 = tpu.matmul %186, %188, %cst_80 {dimension_numbers = #tpu.dot_dimension_numbers<[1], [0], [0], [1], [0, 0, 1, 1], [], []>} : vector<16x32xf32>, vector<32x32xf32>, vector<16x32xf32> -> vector<16x32xf32>
    %190 = arith.addf %183, %189 : vector<16x32xf32>
    %c1 = arith.constant 1 : index
    %c0_81 = arith.constant 0 : index
    %c0_82 = arith.constant 0 : index
    %191 = vector.load %arg4[%c1, %c0_81, %c0_82] : memref<8x16x16xf32, #tpu.memory_space<vmem>>, vector<1x16x16xf32>
    %192 = vector.shape_cast %191 : vector<1x16x16xf32> to vector<16x16xf32>
    %cst_83 = arith.constant dense<0.000000e+00> : vector<16x32xf32>
    %193 = tpu.matmul %192, %178, %cst_83 {dimension_numbers = #tpu.dot_dimension_numbers<[1], [0], [0], [1], [0, 0, 1, 1], [], []>} : vector<16x16xf32>, vector<16x32xf32>, vector<16x32xf32> -> vector<16x32xf32>
    %c1_84 = arith.constant 1 : index
    %c0_85 = arith.constant 0 : index
    %c0_86 = arith.constant 0 : index
    %194 = vector.load %arg20[%c1_84, %c0_85, %c0_86] : memref<8x32x32xf32, #tpu.memory_space<vmem>>, vector<1x32x32xf32>
    %195 = vector.shape_cast %194 : vector<1x32x32xf32> to vector<32x32xf32>
    %cst_87 = arith.constant dense<0.000000e+00> : vector<16x32xf32>
    %196 = tpu.matmul %193, %195, %cst_87 {dimension_numbers = #tpu.dot_dimension_numbers<[1], [0], [0], [1], [0, 0, 1, 1], [], []>} : vector<16x32xf32>, vector<32x32xf32>, vector<16x32xf32> -> vector<16x32xf32>
    %197 = arith.addf %190, %196 : vector<16x32xf32>
    %c2 = arith.constant 2 : index
    %c0_88 = arith.constant 0 : index
    %c0_89 = arith.constant 0 : index
    %198 = vector.load %arg4[%c2, %c0_88, %c0_89] : memref<8x16x16xf32, #tpu.memory_space<vmem>>, vector<1x16x16xf32>
    %199 = vector.shape_cast %198 : vector<1x16x16xf32> to vector<16x16xf32>
    %cst_90 = arith.constant dense<0.000000e+00> : vector<16x32xf32>
    %200 = tpu.matmul %199, %178, %cst_90 {dimension_numbers = #tpu.dot_dimension_numbers<[1], [0], [0], [1], [0, 0, 1, 1], [], []>} : vector<16x16xf32>, vector<16x32xf32>, vector<16x32xf32> -> vector<16x32xf32>
    %c2_91 = arith.constant 2 : index
    %c0_92 = arith.constant 0 : index
    %c0_93 = arith.constant 0 : index
    %201 = vector.load %arg20[%c2_91, %c0_92, %c0_93] : memref<8x32x32xf32, #tpu.memory_space<vmem>>, vector<1x32x32xf32>
    %202 = vector.shape_cast %201 : vector<1x32x32xf32> to vector<32x32xf32>
    %cst_94 = arith.constant dense<0.000000e+00> : vector<16x32xf32>
    %203 = tpu.matmul %200, %202, %cst_94 {dimension_numbers = #tpu.dot_dimension_numbers<[1], [0], [0], [1], [0, 0, 1, 1], [], []>} : vector<16x32xf32>, vector<32x32xf32>, vector<16x32xf32> -> vector<16x32xf32>
    %204 = arith.addf %197, %203 : vector<16x32xf32>
    %c3 = arith.constant 3 : index
    %c0_95 = arith.constant 0 : index
    %c0_96 = arith.constant 0 : index
    %205 = vector.load %arg4[%c3, %c0_95, %c0_96] : memref<8x16x16xf32, #tpu.memory_space<vmem>>, vector<1x16x16xf32>
    %206 = vector.shape_cast %205 : vector<1x16x16xf32> to vector<16x16xf32>
    %cst_97 = arith.constant dense<0.000000e+00> : vector<16x32xf32>
    %207 = tpu.matmul %206, %178, %cst_97 {dimension_numbers = #tpu.dot_dimension_numbers<[1], [0], [0], [1], [0, 0, 1, 1], [], []>} : vector<16x16xf32>, vector<16x32xf32>, vector<16x32xf32> -> vector<16x32xf32>
    %c3_98 = arith.constant 3 : index
    %c0_99 = arith.constant 0 : index
    %c0_100 = arith.constant 0 : index
    %208 = vector.load %arg20[%c3_98, %c0_99, %c0_100] : memref<8x32x32xf32, #tpu.memory_space<vmem>>, vector<1x32x32xf32>
    %209 = vector.shape_cast %208 : vector<1x32x32xf32> to vector<32x32xf32>
    %cst_101 = arith.constant dense<0.000000e+00> : vector<16x32xf32>
    %210 = tpu.matmul %207, %209, %cst_101 {dimension_numbers = #tpu.dot_dimension_numbers<[1], [0], [0], [1], [0, 0, 1, 1], [], []>} : vector<16x32xf32>, vector<32x32xf32>, vector<16x32xf32> -> vector<16x32xf32>
    %211 = arith.addf %204, %210 : vector<16x32xf32>
    %c4 = arith.constant 4 : index
    %c0_102 = arith.constant 0 : index
    %c0_103 = arith.constant 0 : index
    %212 = vector.load %arg4[%c4, %c0_102, %c0_103] : memref<8x16x16xf32, #tpu.memory_space<vmem>>, vector<1x16x16xf32>
    %213 = vector.shape_cast %212 : vector<1x16x16xf32> to vector<16x16xf32>
    %cst_104 = arith.constant dense<0.000000e+00> : vector<16x32xf32>
    %214 = tpu.matmul %213, %178, %cst_104 {dimension_numbers = #tpu.dot_dimension_numbers<[1], [0], [0], [1], [0, 0, 1, 1], [], []>} : vector<16x16xf32>, vector<16x32xf32>, vector<16x32xf32> -> vector<16x32xf32>
    %c4_105 = arith.constant 4 : index
    %c0_106 = arith.constant 0 : index
    %c0_107 = arith.constant 0 : index
    %215 = vector.load %arg20[%c4_105, %c0_106, %c0_107] : memref<8x32x32xf32, #tpu.memory_space<vmem>>, vector<1x32x32xf32>
    %216 = vector.shape_cast %215 : vector<1x32x32xf32> to vector<32x32xf32>
    %cst_108 = arith.constant dense<0.000000e+00> : vector<16x32xf32>
    %217 = tpu.matmul %214, %216, %cst_108 {dimension_numbers = #tpu.dot_dimension_numbers<[1], [0], [0], [1], [0, 0, 1, 1], [], []>} : vector<16x32xf32>, vector<32x32xf32>, vector<16x32xf32> -> vector<16x32xf32>
    %218 = arith.addf %211, %217 : vector<16x32xf32>
    %c5 = arith.constant 5 : index
    %c0_109 = arith.constant 0 : index
    %c0_110 = arith.constant 0 : index
    %219 = vector.load %arg4[%c5, %c0_109, %c0_110] : memref<8x16x16xf32, #tpu.memory_space<vmem>>, vector<1x16x16xf32>
    %220 = vector.shape_cast %219 : vector<1x16x16xf32> to vector<16x16xf32>
    %cst_111 = arith.constant dense<0.000000e+00> : vector<16x32xf32>
    %221 = tpu.matmul %220, %178, %cst_111 {dimension_numbers = #tpu.dot_dimension_numbers<[1], [0], [0], [1], [0, 0, 1, 1], [], []>} : vector<16x16xf32>, vector<16x32xf32>, vector<16x32xf32> -> vector<16x32xf32>
    %c5_112 = arith.constant 5 : index
    %c0_113 = arith.constant 0 : index
    %c0_114 = arith.constant 0 : index
    %222 = vector.load %arg20[%c5_112, %c0_113, %c0_114] : memref<8x32x32xf32, #tpu.memory_space<vmem>>, vector<1x32x32xf32>
    %223 = vector.shape_cast %222 : vector<1x32x32xf32> to vector<32x32xf32>
    %cst_115 = arith.constant dense<0.000000e+00> : vector<16x32xf32>
    %224 = tpu.matmul %221, %223, %cst_115 {dimension_numbers = #tpu.dot_dimension_numbers<[1], [0], [0], [1], [0, 0, 1, 1], [], []>} : vector<16x32xf32>, vector<32x32xf32>, vector<16x32xf32> -> vector<16x32xf32>
    %225 = arith.addf %218, %224 : vector<16x32xf32>
    %c6 = arith.constant 6 : index
    %c0_116 = arith.constant 0 : index
    %c0_117 = arith.constant 0 : index
    %226 = vector.load %arg4[%c6, %c0_116, %c0_117] : memref<8x16x16xf32, #tpu.memory_space<vmem>>, vector<1x16x16xf32>
    %227 = vector.shape_cast %226 : vector<1x16x16xf32> to vector<16x16xf32>
    %cst_118 = arith.constant dense<0.000000e+00> : vector<16x32xf32>
    %228 = tpu.matmul %227, %178, %cst_118 {dimension_numbers = #tpu.dot_dimension_numbers<[1], [0], [0], [1], [0, 0, 1, 1], [], []>} : vector<16x16xf32>, vector<16x32xf32>, vector<16x32xf32> -> vector<16x32xf32>
    %c6_119 = arith.constant 6 : index
    %c0_120 = arith.constant 0 : index
    %c0_121 = arith.constant 0 : index
    %229 = vector.load %arg20[%c6_119, %c0_120, %c0_121] : memref<8x32x32xf32, #tpu.memory_space<vmem>>, vector<1x32x32xf32>
    %230 = vector.shape_cast %229 : vector<1x32x32xf32> to vector<32x32xf32>
    %cst_122 = arith.constant dense<0.000000e+00> : vector<16x32xf32>
    %231 = tpu.matmul %228, %230, %cst_122 {dimension_numbers = #tpu.dot_dimension_numbers<[1], [0], [0], [1], [0, 0, 1, 1], [], []>} : vector<16x32xf32>, vector<32x32xf32>, vector<16x32xf32> -> vector<16x32xf32>
    %232 = arith.addf %225, %231 : vector<16x32xf32>
    %c7 = arith.constant 7 : index
    %c0_123 = arith.constant 0 : index
    %c0_124 = arith.constant 0 : index
    %233 = vector.load %arg4[%c7, %c0_123, %c0_124] : memref<8x16x16xf32, #tpu.memory_space<vmem>>, vector<1x16x16xf32>
    %234 = vector.shape_cast %233 : vector<1x16x16xf32> to vector<16x16xf32>
    %cst_125 = arith.constant dense<0.000000e+00> : vector<16x32xf32>
    %235 = tpu.matmul %234, %178, %cst_125 {dimension_numbers = #tpu.dot_dimension_numbers<[1], [0], [0], [1], [0, 0, 1, 1], [], []>} : vector<16x16xf32>, vector<16x32xf32>, vector<16x32xf32> -> vector<16x32xf32>
    %c7_126 = arith.constant 7 : index
    %c0_127 = arith.constant 0 : index
    %c0_128 = arith.constant 0 : index
    %236 = vector.load %arg20[%c7_126, %c0_127, %c0_128] : memref<8x32x32xf32, #tpu.memory_space<vmem>>, vector<1x32x32xf32>
    %237 = vector.shape_cast %236 : vector<1x32x32xf32> to vector<32x32xf32>
    %cst_129 = arith.constant dense<0.000000e+00> : vector<16x32xf32>
    %238 = tpu.matmul %235, %237, %cst_129 {dimension_numbers = #tpu.dot_dimension_numbers<[1], [0], [0], [1], [0, 0, 1, 1], [], []>} : vector<16x32xf32>, vector<32x32xf32>, vector<16x32xf32> -> vector<16x32xf32>
    %239 = arith.addf %232, %238 : vector<16x32xf32>
    %c0_130 = arith.constant 0 : index
    %c0_131 = arith.constant 0 : index
    %240 = vector.load %arg23[%c0_130, %c0_131] : memref<32x384xf32, #tpu.memory_space<vmem>>, vector<32x384xf32>
    %cst_132 = arith.constant dense<0.000000e+00> : vector<16x384xf32>
    %241 = tpu.matmul %239, %240, %cst_132 {dimension_numbers = #tpu.dot_dimension_numbers<[1], [0], [0], [1], [0, 0, 1, 1], [], []>} : vector<16x32xf32>, vector<32x384xf32>, vector<16x384xf32> -> vector<16x384xf32>
    %c0_133 = arith.constant 0 : index
    %c0_134 = arith.constant 0 : index
    %242 = vector.load %arg24[%c0_133, %c0_134] : memref<1x384xf32, #tpu.memory_space<vmem>>, vector<1x384xf32>
    %243 = vector.broadcast %242 : vector<1x384xf32> to vector<16x384xf32>
    %244 = arith.addf %241, %243 : vector<16x384xf32>
    %245 = vector.extract_strided_slice %244 {offsets = [0, 0], sizes = [16, 128], strides = [1, 1]} : vector<16x384xf32> to vector<16x128xf32>
    %246 = vector.extract_strided_slice %244 {offsets = [0, 128], sizes = [16, 128], strides = [1, 1]} : vector<16x384xf32> to vector<16x128xf32>
    %247 = vector.extract_strided_slice %244 {offsets = [0, 256], sizes = [16, 128], strides = [1, 1]} : vector<16x384xf32> to vector<16x128xf32>
    %c0_135 = arith.constant 0 : index
    %c0_136 = arith.constant 0 : index
    %248 = vector.load %arg5[%c0_135, %c0_136] : memref<16x16xf32, #tpu.memory_space<vmem>>, vector<16x16xf32>
    %cst_137 = arith.constant 0.000000e+00 : f32
    %249 = vector.broadcast %cst_137 : f32 to vector<16x128xf32>
    %250 = vector.broadcast %25 : vector<1x128xf32> to vector<16x128xf32>
    %251 = arith.mulf %245, %250 : vector<16x128xf32>
    %252 = tpu.transpose %246, [1, 0] : vector<16x128xf32> -> vector<128x16xf32>
    %cst_138 = arith.constant dense<0.000000e+00> : vector<16x16xf32>
    %253 = tpu.matmul %251, %252, %cst_138 {dimension_numbers = #tpu.dot_dimension_numbers<[1], [0], [0], [1], [0, 0, 1, 1], [], []>} : vector<16x128xf32>, vector<128x16xf32>, vector<16x16xf32> -> vector<16x16xf32>
    %cst_139 = arith.constant 0.176776692 : f32
    %254 = vector.broadcast %cst_139 : f32 to vector<16x16xf32>
    %255 = arith.mulf %253, %254 : vector<16x16xf32>
    %cst_140 = arith.constant 0.000000e+00 : f32
    %256 = vector.broadcast %cst_140 : f32 to vector<16x16xf32>
    %257 = arith.cmpf ogt, %248, %256 : vector<16x16xf32>
    %cst_141 = arith.constant -1.000000e+30 : f32
    %258 = vector.broadcast %cst_141 : f32 to vector<16x16xf32>
    %259 = arith.select %257, %255, %258 : vector<16x16xi1>, vector<16x16xf32>
    %cst_142 = arith.constant dense<0xFF800000> : vector<16xf32>
    %260 = vector.multi_reduction <maximumf>, %259, %cst_142 [1] : vector<16x16xf32> to vector<16xf32>
    %261 = vector.shape_cast %260 : vector<16xf32> to vector<16x1xf32>
    %262 = vector.broadcast %261 : vector<16x1xf32> to vector<16x16xf32>
    %263 = arith.subf %259, %262 : vector<16x16xf32>
    %264 = math.exp %263 : vector<16x16xf32>
    %cst_143 = arith.constant dense<0.000000e+00> : vector<16xf32>
    %265 = vector.multi_reduction <add>, %264, %cst_143 [1] : vector<16x16xf32> to vector<16xf32>
    %266 = vector.shape_cast %265 : vector<16xf32> to vector<16x1xf32>
    %267 = tpu.reciprocal %266 {approx = true} : vector<16x1xf32> -> vector<16x1xf32>
    %268 = vector.broadcast %267 : vector<16x1xf32> to vector<16x16xf32>
    %269 = arith.mulf %264, %268 : vector<16x16xf32>
    %270 = vector.broadcast %25 : vector<1x128xf32> to vector<16x128xf32>
    %271 = arith.mulf %247, %270 : vector<16x128xf32>
    %cst_144 = arith.constant dense<0.000000e+00> : vector<16x128xf32>
    %272 = tpu.matmul %269, %271, %cst_144 {dimension_numbers = #tpu.dot_dimension_numbers<[1], [0], [0], [1], [0, 0, 1, 1], [], []>} : vector<16x16xf32>, vector<16x128xf32>, vector<16x128xf32> -> vector<16x128xf32>
    %273 = arith.addf %249, %272 : vector<16x128xf32>
    %274 = vector.broadcast %32 : vector<1x128xf32> to vector<16x128xf32>
    %275 = arith.mulf %245, %274 : vector<16x128xf32>
    %276 = tpu.transpose %246, [1, 0] : vector<16x128xf32> -> vector<128x16xf32>
    %cst_145 = arith.constant dense<0.000000e+00> : vector<16x16xf32>
    %277 = tpu.matmul %275, %276, %cst_145 {dimension_numbers = #tpu.dot_dimension_numbers<[1], [0], [0], [1], [0, 0, 1, 1], [], []>} : vector<16x128xf32>, vector<128x16xf32>, vector<16x16xf32> -> vector<16x16xf32>
    %cst_146 = arith.constant 0.176776692 : f32
    %278 = vector.broadcast %cst_146 : f32 to vector<16x16xf32>
    %279 = arith.mulf %277, %278 : vector<16x16xf32>
    %cst_147 = arith.constant 0.000000e+00 : f32
    %280 = vector.broadcast %cst_147 : f32 to vector<16x16xf32>
    %281 = arith.cmpf ogt, %248, %280 : vector<16x16xf32>
    %cst_148 = arith.constant -1.000000e+30 : f32
    %282 = vector.broadcast %cst_148 : f32 to vector<16x16xf32>
    %283 = arith.select %281, %279, %282 : vector<16x16xi1>, vector<16x16xf32>
    %cst_149 = arith.constant dense<0xFF800000> : vector<16xf32>
    %284 = vector.multi_reduction <maximumf>, %283, %cst_149 [1] : vector<16x16xf32> to vector<16xf32>
    %285 = vector.shape_cast %284 : vector<16xf32> to vector<16x1xf32>
    %286 = vector.broadcast %285 : vector<16x1xf32> to vector<16x16xf32>
    %287 = arith.subf %283, %286 : vector<16x16xf32>
    %288 = math.exp %287 : vector<16x16xf32>
    %cst_150 = arith.constant dense<0.000000e+00> : vector<16xf32>
    %289 = vector.multi_reduction <add>, %288, %cst_150 [1] : vector<16x16xf32> to vector<16xf32>
    %290 = vector.shape_cast %289 : vector<16xf32> to vector<16x1xf32>
    %291 = tpu.reciprocal %290 {approx = true} : vector<16x1xf32> -> vector<16x1xf32>
    %292 = vector.broadcast %291 : vector<16x1xf32> to vector<16x16xf32>
    %293 = arith.mulf %288, %292 : vector<16x16xf32>
    %294 = vector.broadcast %32 : vector<1x128xf32> to vector<16x128xf32>
    %295 = arith.mulf %247, %294 : vector<16x128xf32>
    %cst_151 = arith.constant dense<0.000000e+00> : vector<16x128xf32>
    %296 = tpu.matmul %293, %295, %cst_151 {dimension_numbers = #tpu.dot_dimension_numbers<[1], [0], [0], [1], [0, 0, 1, 1], [], []>} : vector<16x16xf32>, vector<16x128xf32>, vector<16x128xf32> -> vector<16x128xf32>
    %297 = arith.addf %273, %296 : vector<16x128xf32>
    %c0_152 = arith.constant 0 : index
    %c0_153 = arith.constant 0 : index
    %298 = vector.load %arg25[%c0_152, %c0_153] : memref<32x128xf32, #tpu.memory_space<vmem>>, vector<32x128xf32>
    %cst_154 = arith.constant dense<0.000000e+00> : vector<16x128xf32>
    %299 = tpu.matmul %239, %298, %cst_154 {dimension_numbers = #tpu.dot_dimension_numbers<[1], [0], [0], [1], [0, 0, 1, 1], [], []>} : vector<16x32xf32>, vector<32x128xf32>, vector<16x128xf32> -> vector<16x128xf32>
    %300 = arith.addf %297, %299 : vector<16x128xf32>
    %c0_155 = arith.constant 0 : index
    %c0_156 = arith.constant 0 : index
    %301 = vector.load %arg26[%c0_155, %c0_156] : memref<1x128xf32, #tpu.memory_space<vmem>>, vector<1x128xf32>
    %302 = vector.broadcast %301 : vector<1x128xf32> to vector<16x128xf32>
    %303 = arith.addf %300, %302 : vector<16x128xf32>
    %c0_157 = arith.constant 0 : index
    %c0_158 = arith.constant 0 : index
    %304 = vector.load %arg29[%c0_157, %c0_158] : memref<1x128xf32, #tpu.memory_space<vmem>>, vector<1x128xf32>
    %305 = vector.broadcast %304 : vector<1x128xf32> to vector<16x128xf32>
    %306 = arith.subf %303, %305 : vector<16x128xf32>
    %c0_159 = arith.constant 0 : index
    %c0_160 = arith.constant 0 : index
    %307 = vector.load %arg30[%c0_159, %c0_160] : memref<1x128xf32, #tpu.memory_space<vmem>>, vector<1x128xf32>
    %cst_161 = arith.constant 9.99999974E-6 : f32
    %308 = vector.broadcast %cst_161 : f32 to vector<1x128xf32>
    %309 = arith.addf %307, %308 : vector<1x128xf32>
    %310 = math.rsqrt %309 : vector<1x128xf32>
    %311 = vector.broadcast %310 : vector<1x128xf32> to vector<16x128xf32>
    %312 = arith.mulf %306, %311 : vector<16x128xf32>
    %c0_162 = arith.constant 0 : index
    %c0_163 = arith.constant 0 : index
    %313 = vector.load %arg27[%c0_162, %c0_163] : memref<1x128xf32, #tpu.memory_space<vmem>>, vector<1x128xf32>
    %314 = vector.broadcast %313 : vector<1x128xf32> to vector<16x128xf32>
    %315 = arith.mulf %312, %314 : vector<16x128xf32>
    %c0_164 = arith.constant 0 : index
    %c0_165 = arith.constant 0 : index
    %316 = vector.load %arg28[%c0_164, %c0_165] : memref<1x128xf32, #tpu.memory_space<vmem>>, vector<1x128xf32>
    %317 = vector.broadcast %316 : vector<1x128xf32> to vector<16x128xf32>
    %318 = arith.addf %315, %317 : vector<16x128xf32>
    %cst_166 = arith.constant 0.000000e+00 : f32
    %319 = vector.broadcast %cst_166 : f32 to vector<16x128xf32>
    %320 = arith.cmpf oge, %318, %319 : vector<16x128xf32>
    %cst_167 = arith.constant 0.00999999977 : f32
    %321 = vector.broadcast %cst_167 : f32 to vector<16x128xf32>
    %322 = arith.mulf %321, %318 : vector<16x128xf32>
    %323 = arith.select %320, %318, %322 : vector<16x128xi1>, vector<16x128xf32>
    %c0_168 = arith.constant 0 : index
    %c0_169 = arith.constant 0 : index
    %324 = vector.load %arg31[%c0_168, %c0_169] : memref<128x32xf32, #tpu.memory_space<vmem>>, vector<128x32xf32>
    %cst_170 = arith.constant dense<0.000000e+00> : vector<16x32xf32>
    %325 = tpu.matmul %323, %324, %cst_170 {dimension_numbers = #tpu.dot_dimension_numbers<[1], [0], [0], [1], [0, 0, 1, 1], [], []>} : vector<16x128xf32>, vector<128x32xf32>, vector<16x32xf32> -> vector<16x32xf32>
    %c0_171 = arith.constant 0 : index
    %c0_172 = arith.constant 0 : index
    %326 = vector.load %arg32[%c0_171, %c0_172] : memref<1x32xf32, #tpu.memory_space<vmem>>, vector<1x32xf32>
    %327 = vector.broadcast %326 : vector<1x32xf32> to vector<16x32xf32>
    %328 = arith.addf %325, %327 : vector<16x32xf32>
    %cst_173 = arith.constant 0.000000e+00 : f32
    %329 = vector.broadcast %cst_173 : f32 to vector<16x32xf32>
    %330 = arith.maximumf %328, %329 : vector<16x32xf32>
    %c0_174 = arith.constant 0 : index
    %c0_175 = arith.constant 0 : index
    %331 = vector.load %arg33[%c0_174, %c0_175] : memref<32x128xf32, #tpu.memory_space<vmem>>, vector<32x128xf32>
    %cst_176 = arith.constant dense<0.000000e+00> : vector<16x128xf32>
    %332 = tpu.matmul %330, %331, %cst_176 {dimension_numbers = #tpu.dot_dimension_numbers<[1], [0], [0], [1], [0, 0, 1, 1], [], []>} : vector<16x32xf32>, vector<32x128xf32>, vector<16x128xf32> -> vector<16x128xf32>
    %c0_177 = arith.constant 0 : index
    %c0_178 = arith.constant 0 : index
    %333 = vector.load %arg34[%c0_177, %c0_178] : memref<1x128xf32, #tpu.memory_space<vmem>>, vector<1x128xf32>
    %334 = vector.broadcast %333 : vector<1x128xf32> to vector<16x128xf32>
    %335 = arith.addf %332, %334 : vector<16x128xf32>
    %cst_179 = arith.constant dense<0xFF800000> : vector<16xf32>
    %336 = vector.multi_reduction <maximumf>, %335, %cst_179 [1] : vector<16x128xf32> to vector<16xf32>
    %337 = vector.shape_cast %336 : vector<16xf32> to vector<16x1xf32>
    %338 = vector.broadcast %337 : vector<16x1xf32> to vector<16x128xf32>
    %339 = arith.subf %335, %338 : vector<16x128xf32>
    %340 = math.exp %339 : vector<16x128xf32>
    %cst_180 = arith.constant dense<0.000000e+00> : vector<16xf32>
    %341 = vector.multi_reduction <add>, %340, %cst_180 [1] : vector<16x128xf32> to vector<16xf32>
    %342 = vector.shape_cast %341 : vector<16xf32> to vector<16x1xf32>
    %343 = math.log %342 : vector<16x1xf32>
    %344 = arith.addf %343, %337 : vector<16x1xf32>
    %345 = vector.broadcast %344 : vector<16x1xf32> to vector<16x128xf32>
    %346 = arith.subf %335, %345 : vector<16x128xf32>
    %c0_181 = arith.constant 0 : index
    %c0_182 = arith.constant 0 : index
    %347 = vector.load %arg35[%c0_181, %c0_182] : memref<16x128xf32, #tpu.memory_space<vmem>>, vector<16x128xf32>
    tpu.vector_store %arg35[%c0_181, %c0_182], %346 {strides = array<i32>} : memref<16x128xf32, #tpu.memory_space<vmem>>, vector<16x128xf32>,
    return
  }
  func.func @transform_0(%arg0: i32) -> (i32, i32) {
    %c0_i32 = arith.constant 0 : i32
    %c0_i32_0 = arith.constant 0 : i32
    %c0_i32_1 = arith.constant 0 : i32
    return %c0_i32, %c0_i32_0 : i32, i32
  }
  func.func @transform_1(%arg0: i32) -> (i32, i32) {
    %c0_i32 = arith.constant 0 : i32
    %c0_i32_0 = arith.constant 0 : i32
    %c0_i32_1 = arith.constant 0 : i32
    return %c0_i32, %c0_i32_0 : i32, i32
  }
  func.func @transform_2(%arg0: i32) -> (i32, i32) {
    %c0_i32 = arith.constant 0 : i32
    %c0_i32_0 = arith.constant 0 : i32
    %c0_i32_1 = arith.constant 0 : i32
    return %c0_i32, %c0_i32_0 : i32, i32
  }
  func.func @transform_3(%arg0: i32) -> (i32, i32, i32) {
    %c0_i32 = arith.constant 0 : i32
    %c0_i32_0 = arith.constant 0 : i32
    %c0_i32_1 = arith.constant 0 : i32
    %c0_i32_2 = arith.constant 0 : i32
    return %c0_i32, %c0_i32_0, %c0_i32_1 : i32, i32, i32
  }
  func.func @transform_4(%arg0: i32) -> (i32, i32) {
    %c0_i32 = arith.constant 0 : i32
    %c0_i32_0 = arith.constant 0 : i32
    %c0_i32_1 = arith.constant 0 : i32
    return %c0_i32, %c0_i32_0 : i32, i32
  }
  func.func @transform_5(%arg0: i32) -> (i32, i32) {
    %c0_i32 = arith.constant 0 : i32
    %c0_i32_0 = arith.constant 0 : i32
    %c0_i32_1 = arith.constant 0 : i32
    return %c0_i32, %c0_i32_0 : i32, i32
  }
  func.func @transform_6(%arg0: i32) -> (i32, i32) {
    %c0_i32 = arith.constant 0 : i32
    %c0_i32_0 = arith.constant 0 : i32
    %c0_i32_1 = arith.constant 0 : i32
    return %c0_i32, %c0_i32_0 : i32, i32
  }
  func.func @transform_7(%arg0: i32) -> (i32, i32) {
    %c0_i32 = arith.constant 0 : i32
    %c0_i32_0 = arith.constant 0 : i32
    %c0_i32_1 = arith.constant 0 : i32
    return %c0_i32, %c0_i32_0 : i32, i32
  }
  func.func @transform_8(%arg0: i32) -> (i32, i32) {
    %c0_i32 = arith.constant 0 : i32
    %c0_i32_0 = arith.constant 0 : i32
    %c0_i32_1 = arith.constant 0 : i32
    return %c0_i32, %c0_i32_0 : i32, i32
  }
  func.func @transform_9(%arg0: i32) -> (i32, i32) {
    %c0_i32 = arith.constant 0 : i32
    %c0_i32_0 = arith.constant 0 : i32
    %c0_i32_1 = arith.constant 0 : i32
    return %c0_i32, %c0_i32_0 : i32, i32
  }
  func.func @transform_10(%arg0: i32) -> (i32, i32) {
    %c0_i32 = arith.constant 0 : i32
    %c0_i32_0 = arith.constant 0 : i32
    %c0_i32_1 = arith.constant 0 : i32
    return %c0_i32, %c0_i32_0 : i32, i32
  }
  func.func @transform_11(%arg0: i32) -> (i32, i32) {
    %c0_i32 = arith.constant 0 : i32
    %c0_i32_0 = arith.constant 0 : i32
    %c0_i32_1 = arith.constant 0 : i32
    return %c0_i32, %c0_i32_0 : i32, i32
  }
  func.func @transform_12(%arg0: i32) -> (i32, i32) {
    %c0_i32 = arith.constant 0 : i32
    %c0_i32_0 = arith.constant 0 : i32
    %c0_i32_1 = arith.constant 0 : i32
    return %c0_i32, %c0_i32_0 : i32, i32
  }
  func.func @transform_13(%arg0: i32) -> (i32, i32) {
    %c0_i32 = arith.constant 0 : i32
    %c0_i32_0 = arith.constant 0 : i32
    %c0_i32_1 = arith.constant 0 : i32
    return %c0_i32, %c0_i32_0 : i32, i32
  }
  func.func @transform_14(%arg0: i32) -> (i32, i32) {
    %c0_i32 = arith.constant 0 : i32
    %c0_i32_0 = arith.constant 0 : i32
    %c0_i32_1 = arith.constant 0 : i32
    return %c0_i32, %c0_i32_0 : i32, i32
  }
  func.func @transform_15(%arg0: i32) -> (i32, i32) {
    %c0_i32 = arith.constant 0 : i32
    %c0_i32_0 = arith.constant 0 : i32
    %c0_i32_1 = arith.constant 0 : i32
    return %c0_i32, %c0_i32_0 : i32, i32
  }
  func.func @transform_16(%arg0: i32) -> (i32, i32) {
    %c0_i32 = arith.constant 0 : i32
    %c0_i32_0 = arith.constant 0 : i32
    %c0_i32_1 = arith.constant 0 : i32
    return %c0_i32, %c0_i32_0 : i32, i32
  }
  func.func @transform_17(%arg0: i32) -> (i32, i32) {
    %c0_i32 = arith.constant 0 : i32
    %c0_i32_0 = arith.constant 0 : i32
    %c0_i32_1 = arith.constant 0 : i32
    return %c0_i32, %c0_i32_0 : i32, i32
  }
  func.func @transform_18(%arg0: i32) -> (i32, i32) {
    %c0_i32 = arith.constant 0 : i32
    %c0_i32_0 = arith.constant 0 : i32
    %c0_i32_1 = arith.constant 0 : i32
    return %c0_i32, %c0_i32_0 : i32, i32
  }
  func.func @transform_19(%arg0: i32) -> (i32, i32, i32) {
    %c0_i32 = arith.constant 0 : i32
    %c0_i32_0 = arith.constant 0 : i32
    %c0_i32_1 = arith.constant 0 : i32
    %c0_i32_2 = arith.constant 0 : i32
    return %c0_i32, %c0_i32_0, %c0_i32_1 : i32, i32, i32
  }
  func.func @transform_20(%arg0: i32) -> (i32, i32) {
    %c0_i32 = arith.constant 0 : i32
    %c0_i32_0 = arith.constant 0 : i32
    %c0_i32_1 = arith.constant 0 : i32
    return %c0_i32, %c0_i32_0 : i32, i32
  }
  func.func @transform_21(%arg0: i32) -> (i32, i32) {
    %c0_i32 = arith.constant 0 : i32
    %c0_i32_0 = arith.constant 0 : i32
    %c0_i32_1 = arith.constant 0 : i32
    return %c0_i32, %c0_i32_0 : i32, i32
  }
  func.func @transform_22(%arg0: i32) -> (i32, i32) {
    %c0_i32 = arith.constant 0 : i32
    %c0_i32_0 = arith.constant 0 : i32
    %c0_i32_1 = arith.constant 0 : i32
    return %c0_i32, %c0_i32_0 : i32, i32
  }
  func.func @transform_23(%arg0: i32) -> (i32, i32) {
    %c0_i32 = arith.constant 0 : i32
    %c0_i32_0 = arith.constant 0 : i32
    %c0_i32_1 = arith.constant 0 : i32
    return %c0_i32, %c0_i32_0 : i32, i32
  }
  func.func @transform_24(%arg0: i32) -> (i32, i32) {
    %c0_i32 = arith.constant 0 : i32
    %c0_i32_0 = arith.constant 0 : i32
    %c0_i32_1 = arith.constant 0 : i32
    return %c0_i32, %c0_i32_0 : i32, i32
  }
  func.func @transform_25(%arg0: i32) -> (i32, i32) {
    %c0_i32 = arith.constant 0 : i32
    %c0_i32_0 = arith.constant 0 : i32
    %c0_i32_1 = arith.constant 0 : i32
    return %c0_i32, %c0_i32_0 : i32, i32
  }
  func.func @transform_26(%arg0: i32) -> (i32, i32) {
    %c0_i32 = arith.constant 0 : i32
    %c0_i32_0 = arith.constant 0 : i32
    %c0_i32_1 = arith.constant 0 : i32
    return %c0_i32, %c0_i32_0 : i32, i32
  }
  func.func @transform_27(%arg0: i32) -> (i32, i32) {
    %c0_i32 = arith.constant 0 : i32
    %c0_i32_0 = arith.constant 0 : i32
    %c0_i32_1 = arith.constant 0 : i32
    return %c0_i32, %c0_i32_0 : i32, i32
  }
  func.func @transform_28(%arg0: i32) -> (i32, i32) {
    %c0_i32 = arith.constant 0 : i32
    %c0_i32_0 = arith.constant 0 : i32
    %c0_i32_1 = arith.constant 0 : i32
    return %c0_i32, %c0_i32_0 : i32, i32
  }
  func.func @transform_29(%arg0: i32) -> (i32, i32) {
    %c0_i32 = arith.constant 0 : i32
    %c0_i32_0 = arith.constant 0 : i32
    %c0_i32_1 = arith.constant 0 : i32
    return %c0_i32, %c0_i32_0 : i32, i32
  }
  func.func @transform_30(%arg0: i32) -> (i32, i32) {
    %c0_i32 = arith.constant 0 : i32
    %c0_i32_0 = arith.constant 0 : i32
    %c0_i32_1 = arith.constant 0 : i32
    return %c0_i32, %c0_i32_0 : i32, i32
  }
  func.func @transform_31(%arg0: i32) -> (i32, i32) {
    %c0_i32 = arith.constant 0 : i32
    %c0_i32_0 = arith.constant 0 : i32
    %c0_i32_1 = arith.constant 0 : i32
    return %c0_i32, %c0_i32_0 : i32, i32
  }
  func.func @transform_32(%arg0: i32) -> (i32, i32) {
    %c0_i32 = arith.constant 0 : i32
    %c0_i32_0 = arith.constant 0 : i32
    %c0_i32_1 = arith.constant 0 : i32
    return %c0_i32, %c0_i32_0 : i32, i32
  }
  func.func @transform_33(%arg0: i32) -> (i32, i32) {
    %c0_i32 = arith.constant 0 : i32
    %c0_i32_0 = arith.constant 0 : i32
    %c0_i32_1 = arith.constant 0 : i32
    return %c0_i32, %c0_i32_0 : i32, i32
  }
  func.func @transform_34(%arg0: i32) -> (i32, i32) {
    %c0_i32 = arith.constant 0 : i32
    %c0_i32_0 = arith.constant 0 : i32
    %c0_i32_1 = arith.constant 0 : i32
    return %c0_i32, %c0_i32_0 : i32, i32
  }
}

</mosaic_0001>

<llo_original>
// kernel: tpu_custom_call.1
$region0: #{tpu_custom_call.1}
  #allocation0 [shape = 'u32[]', space=smem, size = 0x4, offset = 0x4, fixed_abs, tag = 'smem constant byte address 0x4 - core index']
  #allocation1 [shape = 'u32[72,128]{1,0:T(1,128)}', space=vmem, size = 0x9000, scoped, tag = 'internal scratch']
  %s0 = inlined_call_operand.smem [shape: u32[35], index: -1, kind: input, shape index: {}]
  %s1 = sld [smem:[%s0]]
  %s2 = scalar_lea.smem %s0, 1
  %s3 = sld [smem:[%s2]]
  %s4 = scalar_lea.smem %s0, 2
  %s5 = sld [smem:[%s4]]
  %s6 = scalar_lea.smem %s0, 3
  %s7 = sld [smem:[%s6]]
  %s8 = scalar_lea.smem %s0, 4
  %s9 = sld [smem:[%s8]]
  %s10 = scalar_lea.smem %s0, 5
  %s11 = sld [smem:[%s10]]
  %s12 = scalar_lea.smem %s0, 6
  %s13 = sld [smem:[%s12]]
  %s14 = scalar_lea.smem %s0, 7
  %s15 = sld [smem:[%s14]]
  %s16 = scalar_lea.smem %s0, 8
  %s17 = sld [smem:[%s16]]
  %s18 = scalar_lea.smem %s0, 9
  %s19 = sld [smem:[%s18]]
  %s20 = scalar_lea.smem %s0, 10
  %s21 = sld [smem:[%s20]]
  %s22 = scalar_lea.smem %s0, 11
  %s23 = sld [smem:[%s22]]
  %s24 = scalar_lea.smem %s0, 12
  %s25 = sld [smem:[%s24]]
  %s26 = scalar_lea.smem %s0, 13
  %s27 = sld [smem:[%s26]]
  %s28 = scalar_lea.smem %s0, 14
  %s29 = sld [smem:[%s28]]
  %s30 = scalar_lea.smem %s0, 15
  %s31 = sld [smem:[%s30]]
  %s32 = scalar_lea.smem %s0, 16
  %s33 = sld [smem:[%s32]]
  %s34 = scalar_lea.smem %s0, 17
  %s35 = sld [smem:[%s34]]
  %s36 = scalar_lea.smem %s0, 18
  %s37 = sld [smem:[%s36]]
  %s38 = scalar_lea.smem %s0, 19
  %s39 = sld [smem:[%s38]]
  %s40 = scalar_lea.smem %s0, 20
  %s41 = sld [smem:[%s40]]
  %s42 = scalar_lea.smem %s0, 21
  %s43 = sld [smem:[%s42]]
  %s44 = scalar_lea.smem %s0, 22
  %s45 = sld [smem:[%s44]]
  %s46 = scalar_lea.smem %s0, 23
  %s47 = sld [smem:[%s46]]
  %s48 = scalar_lea.smem %s0, 24
  %s49 = sld [smem:[%s48]]
  %s50 = scalar_lea.smem %s0, 25
  %s51 = sld [smem:[%s50]]
  %s52 = scalar_lea.smem %s0, 26
  %s53 = sld [smem:[%s52]]
  %s54 = scalar_lea.smem %s0, 27
  %s55 = sld [smem:[%s54]]
  %s56 = scalar_lea.smem %s0, 28
  %s57 = sld [smem:[%s56]]
  %s58 = scalar_lea.smem %s0, 29
  %s59 = sld [smem:[%s58]]
  %s60 = scalar_lea.smem %s0, 30
  %s61 = sld [smem:[%s60]]
  %s62 = scalar_lea.smem %s0, 31
  %s63 = sld [smem:[%s62]]
  %s64 = scalar_lea.smem %s0, 32
  %s65 = sld [smem:[%s64]]
  %s66 = scalar_lea.smem %s0, 33
  %s67 = sld [smem:[%s66]]
  %s68 = scalar_lea.smem %s0, 34
  %s69 = sld [smem:[%s68]]
  %s70 = sld [smem:[#allocation0]]
  $region230: #{tpu_custom_call.1} parent=0
    _
  %s72 = ssub.s32 1, %s70
  %s73 = scalar_select 0, %s72, %s70
  $region1: #{tpu_custom_call.1} parent=0
    #allocation2 [shape = 'u8[8192]{0}', space=vmem, size = 0x2000, scoped, tag = 'input window, operand 1, single buffered']
    #allocation3 [shape = 's32[1]{0}', space=sflag, size = 0x4, scoped, tag = 'scoped memory for tpu_custom_call.1']
    #allocation4 [shape = 's32[1]{0}', space=sflag, size = 0x4, scoped, tag = 'scoped memory for tpu_custom_call.1']
    #allocation5 [shape = 'u8[8192]{0}', space=vmem, size = 0x2000, scoped, tag = 'input window, operand 2, single buffered']
    #allocation6 [shape = 's32[1]{0}', space=sflag, size = 0x4, scoped, tag = 'scoped memory for tpu_custom_call.1']
    #allocation7 [shape = 'u8[65536]{0}', space=vmem, size = 0x10000, scoped, tag = 'input window, operand 3, single buffered']
    #allocation8 [shape = 'u8[8192]{0}', space=vmem, size = 0x2000, scoped, tag = 'input window, operand 4, single buffered']
    #allocation9 [shape = 's32[1]{0}', space=sflag, size = 0x4, scoped, tag = 'scoped memory for tpu_custom_call.1']
    #allocation10 [shape = 'u8[1536]{0}', space=vmem, size = 0x800, scoped, tag = 'input window, operand 6, single buffered']
    #allocation11 [shape = 'u8[32768]{0}', space=vmem, size = 0x8000, scoped, tag = 'input window, operand 7, single buffered']
    #allocation12 [shape = 's32[1]{0}', space=sflag, size = 0x4, scoped, tag = 'scoped memory for tpu_custom_call.1']
    #allocation13 [shape = 'u8[512]{0}', space=vmem, size = 0x400, scoped, tag = 'input window, operand 8, single buffered']
    #allocation14 [shape = 'u8[512]{0}', space=vmem, size = 0x400, scoped, tag = 'input window, operand 9, single buffered']
    #allocation15 [shape = 's32[1]{0}', space=sflag, size = 0x4, scoped, tag = 'scoped memory for tpu_custom_call.1']
    #allocation16 [shape = 'u8[512]{0}', space=vmem, size = 0x400, scoped, tag = 'input window, operand 10, single buffered']
    #allocation17 [shape = 'u8[32768]{0}', space=vmem, size = 0x8000, scoped, tag = 'input window, operand 11, single buffered']
    #allocation18 [shape = 's32[1]{0}', space=sflag, size = 0x4, scoped, tag = 'scoped memory for tpu_custom_call.1']
    #allocation19 [shape = 'u8[512]{0}', space=vmem, size = 0x400, scoped, tag = 'input window, operand 12, single buffered']
    #allocation20 [shape = 'u8[32768]{0}', space=vmem, size = 0x8000, scoped, tag = 'input window, operand 13, single buffered']
    #allocation21 [shape = 's32[1]{0}', space=sflag, size = 0x4, scoped, tag = 'scoped memory for tpu_custom_call.1']
    #allocation22 [shape = 'u8[512]{0}', space=vmem, size = 0x400, scoped, tag = 'input window, operand 14, single buffered']
    #allocation23 [shape = 'u8[512]{0}', space=vmem, size = 0x400, scoped, tag = 'input window, operand 15, single buffered']
    #allocation24 [shape = 's32[1]{0}', space=sflag, size = 0x4, scoped, tag = 'scoped memory for tpu_custom_call.1']
    #allocation25 [shape = 'u8[512]{0}', space=vmem, size = 0x400, scoped, tag = 'input window, operand 16, single buffered']
    #allocation26 [shape = 'u8[131072]{0}', space=vmem, size = 0x20000, scoped, tag = 'input window, operand 19, single buffered']
    #allocation27 [shape = 's32[1]{0}', space=sflag, size = 0x4, scoped, tag = 'scoped memory for tpu_custom_call.1']
    #allocation28 [shape = 'u8[16384]{0}', space=vmem, size = 0x4000, scoped, tag = 'input window, operand 20, single buffered']
    #allocation29 [shape = 'u8[512]{0}', space=vmem, size = 0x400, scoped, tag = 'input window, operand 21, single buffered']
    #allocation30 [shape = 's32[1]{0}', space=sflag, size = 0x4, scoped, tag = 'scoped memory for tpu_custom_call.1']
    #allocation31 [shape = 'u8[49152]{0}', space=vmem, size = 0xc000, scoped, tag = 'input window, operand 22, single buffered']
    #allocation32 [shape = 'u8[16384]{0}', space=vmem, size = 0x4000, scoped, tag = 'input window, operand 24, single buffered']
    #allocation33 [shape = 's32[1]{0}', space=sflag, size = 0x4, scoped, tag = 'scoped memory for tpu_custom_call.1']
    #allocation34 [shape = 'u8[16384]{0}', space=vmem, size = 0x4000, scoped, tag = 'input window, operand 32, single buffered']
    #allocation35 [shape = 'u8[8192]{0}', space=vmem, size = 0x2000, scoped, tag = 'output window, operand 0, single buffered']
    %74 = vsyncpa [#allocation3], 0
    %75 = vsyncpa [#allocation6], 0
    %76 = vsyncpa [#allocation9], 0
    %77 = vsyncpa [#allocation12], 0
    %78 = vsyncpa [#allocation15], 0
    %79 = vsyncpa [#allocation18], 0
    %80 = vsyncpa [#allocation21], 0
    %81 = vsyncpa [#allocation24], 0
    %82 = vsyncpa [#allocation27], 0
    %83 = vsyncpa [#allocation30], 0
    %84 = vsyncpa [#allocation33], 0
    %85 = vsyncpa [#allocation4], 0
    // Predicated region
    $region2: #{tpu_custom_call.1} parent=1 // pred_check
      _
    $region3: #{tpu_custom_call.1} parent=1 // pred_check_branch
      %87 = sbr.rel (0) target = $region5
    $region4: #{tpu_custom_call.1} parent=1 // pred_region
      _
    $region5: #{tpu_custom_call.1} parent=1 // pred_fallthru
      _
    // Predicated region
    $region6: #{tpu_custom_call.1} parent=1 // pred_check
      _
    $region7: #{tpu_custom_call.1} parent=1 // pred_check_branch
      %89 = sbr.rel (0) target = $region9
    $region8: #{tpu_custom_call.1} parent=1 // pred_region
      %91 = vsyncadd [#allocation3], 0
      %s92 = sshll.u32 %s3, 4
      %s93 = int_to_ptr.hbm [resolvable:$true] %s92
      %s94 = sshll.u32 [#allocation2], 4
      %s95 = int_to_ptr.vmem [resolvable:$true] %s94
      %100 = dma.hbm_to_vmem [thread:$0]  %s93, 256, %s95, [#allocation3], 128, 128, 8
    $region9: #{tpu_custom_call.1} parent=1 // pred_fallthru
      _
    // Predicated region
    $region10: #{tpu_custom_call.1} parent=1 // pred_check
      _
    $region11: #{tpu_custom_call.1} parent=1 // pred_check_branch
      %102 = sbr.rel (0) target = $region13
    $region12: #{tpu_custom_call.1} parent=1 // pred_region
      %104 = vsyncadd [#allocation6], 0
      %s105 = sshll.u32 %s5, 4
      %s106 = int_to_ptr.hbm [resolvable:$true] %s105
      %s107 = sshll.u32 [#allocation5], 4
      %s108 = int_to_ptr.vmem [resolvable:$true] %s107
      %113 = dma.hbm_to_vmem [thread:$0]  %s106, 256, %s108, [#allocation6], 128, 128, 8
    $region13: #{tpu_custom_call.1} parent=1 // pred_fallthru
      _
    // Predicated region
    $region14: #{tpu_custom_call.1} parent=1 // pred_check
      _
    $region15: #{tpu_custom_call.1} parent=1 // pred_check_branch
      %115 = sbr.rel (0) target = $region17
    $region16: #{tpu_custom_call.1} parent=1 // pred_region
      %117 = vsyncadd [#allocation6], 0
      %s118 = sshll.u32 %s7, 4
      %s119 = int_to_ptr.hbm [resolvable:$true] %s118
      %s120 = sshll.u32 [#allocation7], 4
      %s121 = int_to_ptr.vmem [resolvable:$true] %s120
      %126 = dma.hbm_to_vmem [thread:$0]  %s119, 2048, %s121, [#allocation6], 128, 128, 8
    $region17: #{tpu_custom_call.1} parent=1 // pred_fallthru
      _
    // Predicated region
    $region18: #{tpu_custom_call.1} parent=1 // pred_check
      _
    $region19: #{tpu_custom_call.1} parent=1 // pred_check_branch
      %128 = sbr.rel (0) target = $region21
    $region20: #{tpu_custom_call.1} parent=1 // pred_region
      %130 = vsyncadd [#allocation9], 0
      %s131 = sshll.u32 %s9, 4
      %s132 = int_to_ptr.hbm [resolvable:$true] %s131
      %s133 = sshll.u32 [#allocation8], 4
      %s134 = int_to_ptr.vmem [resolvable:$true] %s133
      %139 = dma.hbm_to_vmem [thread:$0]  %s132, 256, %s134, [#allocation9], 128, 128, 8
    $region21: #{tpu_custom_call.1} parent=1 // pred_fallthru
      _
    // Predicated region
    $region22: #{tpu_custom_call.1} parent=1 // pred_check
      _
    $region23: #{tpu_custom_call.1} parent=1 // pred_check_branch
      %141 = sbr.rel (0) target = $region25
    $region24: #{tpu_custom_call.1} parent=1 // pred_region
      _
    $region25: #{tpu_custom_call.1} parent=1 // pred_fallthru
      _
    // Predicated region
    $region26: #{tpu_custom_call.1} parent=1 // pred_check
      _
    $region27: #{tpu_custom_call.1} parent=1 // pred_check_branch
      %143 = sbr.rel (0) target = $region29
    $region28: #{tpu_custom_call.1} parent=1 // pred_region
      %145 = vsyncadd [#allocation9], 0
      %s147 = sshll.u32 %s13, 4
      %s148 = int_to_ptr.hbm [resolvable:$true] %s147
      %s149 = sshll.u32 [#allocation10], 4
      %s150 = int_to_ptr.vmem [resolvable:$true] %s149
      %152 = dma.hbm_to_vmem [thread:$0]  %s148, 48, %s150, [#allocation9]
    $region29: #{tpu_custom_call.1} parent=1 // pred_fallthru
      _
    // Predicated region
    $region30: #{tpu_custom_call.1} parent=1 // pred_check
      _
    $region31: #{tpu_custom_call.1} parent=1 // pred_check_branch
      %154 = sbr.rel (0) target = $region33
    $region32: #{tpu_custom_call.1} parent=1 // pred_region
      %156 = vsyncadd [#allocation12], 0
      %s157 = sshll.u32 %s15, 4
      %s158 = int_to_ptr.hbm [resolvable:$true] %s157
      %s159 = sshll.u32 [#allocation11], 4
      %s160 = int_to_ptr.vmem [resolvable:$true] %s159
      %165 = dma.hbm_to_vmem [thread:$0]  %s158, 1024, %s160, [#allocation12], 64, 64, 4
    $region33: #{tpu_custom_call.1} parent=1 // pred_fallthru
      _
    // Predicated region
    $region34: #{tpu_custom_call.1} parent=1 // pred_check
      _
    $region35: #{tpu_custom_call.1} parent=1 // pred_check_branch
      %167 = sbr.rel (0) target = $region37
    $region36: #{tpu_custom_call.1} parent=1 // pred_region
      %169 = vsyncadd [#allocation12], 0
      %s171 = sshll.u32 %s17, 4
      %s172 = int_to_ptr.hbm [resolvable:$true] %s171
      %s173 = sshll.u32 [#allocation13], 4
      %s174 = int_to_ptr.vmem [resolvable:$true] %s173
      %176 = dma.hbm_to_vmem [thread:$0]  %s172, 16, %s174, [#allocation12]
    $region37: #{tpu_custom_call.1} parent=1 // pred_fallthru
      _
    // Predicated region
    $region38: #{tpu_custom_call.1} parent=1 // pred_check
      _
    $region39: #{tpu_custom_call.1} parent=1 // pred_check_branch
      %178 = sbr.rel (0) target = $region41
    $region40: #{tpu_custom_call.1} parent=1 // pred_region
      %180 = vsyncadd [#allocation15], 0
      %s182 = sshll.u32 %s19, 4
      %s183 = int_to_ptr.hbm [resolvable:$true] %s182
      %s184 = sshll.u32 [#allocation14], 4
      %s185 = int_to_ptr.vmem [resolvable:$true] %s184
      %187 = dma.hbm_to_vmem [thread:$0]  %s183, 16, %s185, [#allocation15]
    $region41: #{tpu_custom_call.1} parent=1 // pred_fallthru
      _
    // Predicated region
    $region42: #{tpu_custom_call.1} parent=1 // pred_check
      _
    $region43: #{tpu_custom_call.1} parent=1 // pred_check_branch
      %189 = sbr.rel (0) target = $region45
    $region44: #{tpu_custom_call.1} parent=1 // pred_region
      %191 = vsyncadd [#allocation15], 0
      %s193 = sshll.u32 %s21, 4
      %s194 = int_to_ptr.hbm [resolvable:$true] %s193
      %s195 = sshll.u32 [#allocation16], 4
      %s196 = int_to_ptr.vmem [resolvable:$true] %s195
      %198 = dma.hbm_to_vmem [thread:$0]  %s194, 16, %s196, [#allocation15]
    $region45: #{tpu_custom_call.1} parent=1 // pred_fallthru
      _
    // Predicated region
    $region46: #{tpu_custom_call.1} parent=1 // pred_check
      _
    $region47: #{tpu_custom_call.1} parent=1 // pred_check_branch
      %200 = sbr.rel (0) target = $region49
    $region48: #{tpu_custom_call.1} parent=1 // pred_region
      %202 = vsyncadd [#allocation18], 0
      %s203 = sshll.u32 %s23, 4
      %s204 = int_to_ptr.hbm [resolvable:$true] %s203
      %s205 = sshll.u32 [#allocation17], 4
      %s206 = int_to_ptr.vmem [resolvable:$true] %s205
      %211 = dma.hbm_to_vmem [thread:$0]  %s204, 1024, %s206, [#allocation18], 64, 64, 4
    $region49: #{tpu_custom_call.1} parent=1 // pred_fallthru
      _
    // Predicated region
    $region50: #{tpu_custom_call.1} parent=1 // pred_check
      _
    $region51: #{tpu_custom_call.1} parent=1 // pred_check_branch
      %213 = sbr.rel (0) target = $region53
    $region52: #{tpu_custom_call.1} parent=1 // pred_region
      %215 = vsyncadd [#allocation18], 0
      %s217 = sshll.u32 %s25, 4
      %s218 = int_to_ptr.hbm [resolvable:$true] %s217
      %s219 = sshll.u32 [#allocation19], 4
      %s220 = int_to_ptr.vmem [resolvable:$true] %s219
      %222 = dma.hbm_to_vmem [thread:$0]  %s218, 16, %s220, [#allocation18]
    $region53: #{tpu_custom_call.1} parent=1 // pred_fallthru
      _
    // Predicated region
    $region54: #{tpu_custom_call.1} parent=1 // pred_check
      _
    $region55: #{tpu_custom_call.1} parent=1 // pred_check_branch
      %224 = sbr.rel (0) target = $region57
    $region56: #{tpu_custom_call.1} parent=1 // pred_region
      %226 = vsyncadd [#allocation21], 0
      %s227 = sshll.u32 %s27, 4
      %s228 = int_to_ptr.hbm [resolvable:$true] %s227
      %s229 = sshll.u32 [#allocation20], 4
      %s230 = int_to_ptr.vmem [resolvable:$true] %s229
      %235 = dma.hbm_to_vmem [thread:$0]  %s228, 1024, %s230, [#allocation21], 64, 64, 4
    $region57: #{tpu_custom_call.1} parent=1 // pred_fallthru
      _
    // Predicated region
    $region58: #{tpu_custom_call.1} parent=1 // pred_check
      _
    $region59: #{tpu_custom_call.1} parent=1 // pred_check_branch
      %237 = sbr.rel (0) target = $region61
    $region60: #{tpu_custom_call.1} parent=1 // pred_region
      %239 = vsyncadd [#allocation21], 0
      %s241 = sshll.u32 %s29, 4
      %s242 = int_to_ptr.hbm [resolvable:$true] %s241
      %s243 = sshll.u32 [#allocation22], 4
      %s244 = int_to_ptr.vmem [resolvable:$true] %s243
      %246 = dma.hbm_to_vmem [thread:$0]  %s242, 16, %s244, [#allocation21]
    $region61: #{tpu_custom_call.1} parent=1 // pred_fallthru
      _
    // Predicated region
    $region62: #{tpu_custom_call.1} parent=1 // pred_check
      _
    $region63: #{tpu_custom_call.1} parent=1 // pred_check_branch
      %248 = sbr.rel (0) target = $region65
    $region64: #{tpu_custom_call.1} parent=1 // pred_region
      %250 = vsyncadd [#allocation24], 0
      %s252 = sshll.u32 %s31, 4
      %s253 = int_to_ptr.hbm [resolvable:$true] %s252
      %s254 = sshll.u32 [#allocation23], 4
      %s255 = int_to_ptr.vmem [resolvable:$true] %s254
      %257 = dma.hbm_to_vmem [thread:$0]  %s253, 16, %s255, [#allocation24]
    $region65: #{tpu_custom_call.1} parent=1 // pred_fallthru
      _
    // Predicated region
    $region66: #{tpu_custom_call.1} parent=1 // pred_check
      _
    $region67: #{tpu_custom_call.1} parent=1 // pred_check_branch
      %259 = sbr.rel (0) target = $region69
    $region68: #{tpu_custom_call.1} parent=1 // pred_region
      %261 = vsyncadd [#allocation24], 0
      %s263 = sshll.u32 %s33, 4
      %s264 = int_to_ptr.hbm [resolvable:$true] %s263
      %s265 = sshll.u32 [#allocation25], 4
      %s266 = int_to_ptr.vmem [resolvable:$true] %s265
      %268 = dma.hbm_to_vmem [thread:$0]  %s264, 16, %s266, [#allocation24]
    $region69: #{tpu_custom_call.1} parent=1 // pred_fallthru
      _
    // Predicated region
    $region70: #{tpu_custom_call.1} parent=1 // pred_check
      _
    $region71: #{tpu_custom_call.1} parent=1 // pred_check_branch
      %270 = sbr.rel (0) target = $region73
    $region72: #{tpu_custom_call.1} parent=1 // pred_region
      _
    $region73: #{tpu_custom_call.1} parent=1 // pred_fallthru
      _
    // Predicated region
    $region74: #{tpu_custom_call.1} parent=1 // pred_check
      _
    $region75: #{tpu_custom_call.1} parent=1 // pred_check_branch
      %272 = sbr.rel (0) target = $region77
    $region76: #{tpu_custom_call.1} parent=1 // pred_region
      _
    $region77: #{tpu_custom_call.1} parent=1 // pred_fallthru
      _
    // Predicated region
    $region78: #{tpu_custom_call.1} parent=1 // pred_check
      _
    $region79: #{tpu_custom_call.1} parent=1 // pred_check_branch
      %274 = sbr.rel (0) target = $region81
    $region80: #{tpu_custom_call.1} parent=1 // pred_region
      %276 = vsyncadd [#allocation27], 0
      %s277 = sshll.u32 %s39, 4
      %s278 = int_to_ptr.hbm [resolvable:$true] %s277
      %s279 = sshll.u32 [#allocation26], 4
      %s280 = int_to_ptr.vmem [resolvable:$true] %s279
      %285 = dma.hbm_to_vmem [thread:$0]  %s278, 4096, %s280, [#allocation27], 128, 128, 8
    $region81: #{tpu_custom_call.1} parent=1 // pred_fallthru
      _
    // Predicated region
    $region82: #{tpu_custom_call.1} parent=1 // pred_check
      _
    $region83: #{tpu_custom_call.1} parent=1 // pred_check_branch
      %287 = sbr.rel (0) target = $region85
    $region84: #{tpu_custom_call.1} parent=1 // pred_region
      %289 = vsyncadd [#allocation27], 0
      %s290 = sshll.u32 %s41, 4
      %s291 = int_to_ptr.hbm [resolvable:$true] %s290
      %s292 = sshll.u32 [#allocation28], 4
      %s293 = int_to_ptr.vmem [resolvable:$true] %s292
      %298 = dma.hbm_to_vmem [thread:$0]  %s291, 512, %s293, [#allocation27], 128, 128, 8
    $region85: #{tpu_custom_call.1} parent=1 // pred_fallthru
      _
    // Predicated region
    $region86: #{tpu_custom_call.1} parent=1 // pred_check
      _
    $region87: #{tpu_custom_call.1} parent=1 // pred_check_branch
      %300 = sbr.rel (0) target = $region89
    $region88: #{tpu_custom_call.1} parent=1 // pred_region
      %302 = vsyncadd [#allocation30], 0
      %s304 = sshll.u32 %s43, 4
      %s305 = int_to_ptr.hbm [resolvable:$true] %s304
      %s306 = sshll.u32 [#allocation29], 4
      %s307 = int_to_ptr.vmem [resolvable:$true] %s306
      %309 = dma.hbm_to_vmem [thread:$0]  %s305, 16, %s307, [#allocation30]
    $region89: #{tpu_custom_call.1} parent=1 // pred_fallthru
      _
    // Predicated region
    $region90: #{tpu_custom_call.1} parent=1 // pred_check
      _
    $region91: #{tpu_custom_call.1} parent=1 // pred_check_branch
      %311 = sbr.rel (0) target = $region93
    $region92: #{tpu_custom_call.1} parent=1 // pred_region
      %313 = vsyncadd [#allocation30], 0
      %s314 = sshll.u32 %s45, 4
      %s315 = int_to_ptr.hbm [resolvable:$true] %s314
      %s316 = sshll.u32 [#allocation31], 4
      %s317 = int_to_ptr.vmem [resolvable:$true] %s316
      %322 = dma.hbm_to_vmem [thread:$0]  %s315, 1536, %s317, [#allocation30], 384, 384, 24
    $region93: #{tpu_custom_call.1} parent=1 // pred_fallthru
      _
    // Predicated region
    $region94: #{tpu_custom_call.1} parent=1 // pred_check
      _
    $region95: #{tpu_custom_call.1} parent=1 // pred_check_branch
      %324 = sbr.rel (0) target = $region97
    $region96: #{tpu_custom_call.1} parent=1 // pred_region
      _
    $region97: #{tpu_custom_call.1} parent=1 // pred_fallthru
      _
    // Predicated region
    $region98: #{tpu_custom_call.1} parent=1 // pred_check
      _
    $region99: #{tpu_custom_call.1} parent=1 // pred_check_branch
      %326 = sbr.rel (0) target = $region101
    $region100: #{tpu_custom_call.1} parent=1 // pred_region
      %328 = vsyncadd [#allocation33], 0
      %s329 = sshll.u32 %s49, 4
      %s330 = int_to_ptr.hbm [resolvable:$true] %s329
      %s331 = sshll.u32 [#allocation32], 4
      %s332 = int_to_ptr.vmem [resolvable:$true] %s331
      %337 = dma.hbm_to_vmem [thread:$0]  %s330, 512, %s332, [#allocation33], 128, 128, 8
    $region101: #{tpu_custom_call.1} parent=1 // pred_fallthru
      _
    // Predicated region
    $region102: #{tpu_custom_call.1} parent=1 // pred_check
      _
    $region103: #{tpu_custom_call.1} parent=1 // pred_check_branch
      %339 = sbr.rel (0) target = $region105
    $region104: #{tpu_custom_call.1} parent=1 // pred_region
      _
    $region105: #{tpu_custom_call.1} parent=1 // pred_fallthru
      _
    // Predicated region
    $region106: #{tpu_custom_call.1} parent=1 // pred_check
      _
    $region107: #{tpu_custom_call.1} parent=1 // pred_check_branch
      %341 = sbr.rel (0) target = $region109
    $region108: #{tpu_custom_call.1} parent=1 // pred_region
      _
    $region109: #{tpu_custom_call.1} parent=1 // pred_fallthru
      _
    // Predicated region
    $region110: #{tpu_custom_call.1} parent=1 // pred_check
      _
    $region111: #{tpu_custom_call.1} parent=1 // pred_check_branch
      %343 = sbr.rel (0) target = $region113
    $region112: #{tpu_custom_call.1} parent=1 // pred_region
      _
    $region113: #{tpu_custom_call.1} parent=1 // pred_fallthru
      _
    // Predicated region
    $region114: #{tpu_custom_call.1} parent=1 // pred_check
      _
    $region115: #{tpu_custom_call.1} parent=1 // pred_check_branch
      %345 = sbr.rel (0) target = $region117
    $region116: #{tpu_custom_call.1} parent=1 // pred_region
      _
    $region117: #{tpu_custom_call.1} parent=1 // pred_fallthru
      _
    // Predicated region
    $region118: #{tpu_custom_call.1} parent=1 // pred_check
      _
    $region119: #{tpu_custom_call.1} parent=1 // pred_check_branch
      %347 = sbr.rel (0) target = $region121
    $region120: #{tpu_custom_call.1} parent=1 // pred_region
      _
    $region121: #{tpu_custom_call.1} parent=1 // pred_fallthru
      _
    // Predicated region
    $region122: #{tpu_custom_call.1} parent=1 // pred_check
      _
    $region123: #{tpu_custom_call.1} parent=1 // pred_check_branch
      %349 = sbr.rel (0) target = $region125
    $region124: #{tpu_custom_call.1} parent=1 // pred_region
      _
    $region125: #{tpu_custom_call.1} parent=1 // pred_fallthru
      _
    // Predicated region
    $region126: #{tpu_custom_call.1} parent=1 // pred_check
      _
    $region127: #{tpu_custom_call.1} parent=1 // pred_check_branch
      %351 = sbr.rel (0) target = $region129
    $region128: #{tpu_custom_call.1} parent=1 // pred_region
      _
    $region129: #{tpu_custom_call.1} parent=1 // pred_fallthru
      _
    // Predicated region
    $region130: #{tpu_custom_call.1} parent=1 // pred_check
      _
    $region131: #{tpu_custom_call.1} parent=1 // pred_check_branch
      %353 = sbr.rel (0) target = $region133
    $region132: #{tpu_custom_call.1} parent=1 // pred_region
      %355 = vsyncadd [#allocation33], 0
      %s356 = sshll.u32 %s65, 4
      %s357 = int_to_ptr.hbm [resolvable:$true] %s356
      %s358 = sshll.u32 [#allocation34], 4
      %s359 = int_to_ptr.vmem [resolvable:$true] %s358
      %364 = dma.hbm_to_vmem [thread:$0]  %s357, 512, %s359, [#allocation33], 128, 128, 8
    $region133: #{tpu_custom_call.1} parent=1 // pred_fallthru
      _
    // Predicated region
    $region134: #{tpu_custom_call.1} parent=1 // pred_check
      _
    $region135: #{tpu_custom_call.1} parent=1 // pred_check_branch
      %366 = sbr.rel (0) target = $region137
    $region136: #{tpu_custom_call.1} parent=1 // pred_region
      _
    $region137: #{tpu_custom_call.1} parent=1 // pred_fallthru
      _
    // Predicated region
    $region138: #{tpu_custom_call.1} parent=1 // pred_check
      _
    $region139: #{tpu_custom_call.1} parent=1 // pred_check_branch
      %368 = sbr.rel (0) target = $region141
    $region140: #{tpu_custom_call.1} parent=1 // pred_region
      %370 = dma.done [#allocation3], 256
    $region141: #{tpu_custom_call.1} parent=1 // pred_fallthru
      _
    // Predicated region
    $region142: #{tpu_custom_call.1} parent=1 // pred_check
      _
    $region143: #{tpu_custom_call.1} parent=1 // pred_check_branch
      %372 = sbr.rel (0) target = $region145
    $region144: #{tpu_custom_call.1} parent=1 // pred_region
      %374 = dma.done [#allocation6], 256
    $region145: #{tpu_custom_call.1} parent=1 // pred_fallthru
      _
    // Predicated region
    $region146: #{tpu_custom_call.1} parent=1 // pred_check
      _
    $region147: #{tpu_custom_call.1} parent=1 // pred_check_branch
      %376 = sbr.rel (0) target = $region149
    $region148: #{tpu_custom_call.1} parent=1 // pred_region
      %378 = dma.done [#allocation6], 2048
    $region149: #{tpu_custom_call.1} parent=1 // pred_fallthru
      _
    // Predicated region
    $region150: #{tpu_custom_call.1} parent=1 // pred_check
      _
    $region151: #{tpu_custom_call.1} parent=1 // pred_check_branch
      %380 = sbr.rel (0) target = $region153
    $region152: #{tpu_custom_call.1} parent=1 // pred_region
      %382 = dma.done [#allocation9], 256
    $region153: #{tpu_custom_call.1} parent=1 // pred_fallthru
      _
    // Predicated region
    $region154: #{tpu_custom_call.1} parent=1 // pred_check
      _
    $region155: #{tpu_custom_call.1} parent=1 // pred_check_branch
      %384 = sbr.rel (0) target = $region157
    $region156: #{tpu_custom_call.1} parent=1 // pred_region
      %386 = dma.done [#allocation9], 48
    $region157: #{tpu_custom_call.1} parent=1 // pred_fallthru
      _
    // Predicated region
    $region158: #{tpu_custom_call.1} parent=1 // pred_check
      _
    $region159: #{tpu_custom_call.1} parent=1 // pred_check_branch
      %388 = sbr.rel (0) target = $region161
    $region160: #{tpu_custom_call.1} parent=1 // pred_region
      %390 = dma.done [#allocation12], 1024
    $region161: #{tpu_custom_call.1} parent=1 // pred_fallthru
      _
    // Predicated region
    $region162: #{tpu_custom_call.1} parent=1 // pred_check
      _
    $region163: #{tpu_custom_call.1} parent=1 // pred_check_branch
      %392 = sbr.rel (0) target = $region165
    $region164: #{tpu_custom_call.1} parent=1 // pred_region
      %394 = dma.done [#allocation12], 16
    $region165: #{tpu_custom_call.1} parent=1 // pred_fallthru
      _
    // Predicated region
    $region166: #{tpu_custom_call.1} parent=1 // pred_check
      _
    $region167: #{tpu_custom_call.1} parent=1 // pred_check_branch
      %396 = sbr.rel (0) target = $region169
    $region168: #{tpu_custom_call.1} parent=1 // pred_region
      %398 = dma.done [#allocation15], 16
    $region169: #{tpu_custom_call.1} parent=1 // pred_fallthru
      _
    // Predicated region
    $region170: #{tpu_custom_call.1} parent=1 // pred_check
      _
    $region171: #{tpu_custom_call.1} parent=1 // pred_check_branch
      %400 = sbr.rel (0) target = $region173
    $region172: #{tpu_custom_call.1} parent=1 // pred_region
      %402 = dma.done [#allocation15], 16
    $region173: #{tpu_custom_call.1} parent=1 // pred_fallthru
      _
    // Predicated region
    $region174: #{tpu_custom_call.1} parent=1 // pred_check
      _
    $region175: #{tpu_custom_call.1} parent=1 // pred_check_branch
      %404 = sbr.rel (0) target = $region177
    $region176: #{tpu_custom_call.1} parent=1 // pred_region
      %406 = dma.done [#allocation18], 1024
    $region177: #{tpu_custom_call.1} parent=1 // pred_fallthru
      _
    // Predicated region
    $region178: #{tpu_custom_call.1} parent=1 // pred_check
      _
    $region179: #{tpu_custom_call.1} parent=1 // pred_check_branch
      %408 = sbr.rel (0) target = $region181
    $region180: #{tpu_custom_call.1} parent=1 // pred_region
      %410 = dma.done [#allocation18], 16
    $region181: #{tpu_custom_call.1} parent=1 // pred_fallthru
      _
    // Predicated region
    $region182: #{tpu_custom_call.1} parent=1 // pred_check
      _
    $region183: #{tpu_custom_call.1} parent=1 // pred_check_branch
      %412 = sbr.rel (0) target = $region185
    $region184: #{tpu_custom_call.1} parent=1 // pred_region
      %414 = dma.done [#allocation21], 1024
    $region185: #{tpu_custom_call.1} parent=1 // pred_fallthru
      _
    // Predicated region
    $region186: #{tpu_custom_call.1} parent=1 // pred_check
      _
    $region187: #{tpu_custom_call.1} parent=1 // pred_check_branch
      %416 = sbr.rel (0) target = $region189
    $region188: #{tpu_custom_call.1} parent=1 // pred_region
      %418 = dma.done [#allocation21], 16
    $region189: #{tpu_custom_call.1} parent=1 // pred_fallthru
      _
    // Predicated region
    $region190: #{tpu_custom_call.1} parent=1 // pred_check
      _
    $region191: #{tpu_custom_call.1} parent=1 // pred_check_branch
      %420 = sbr.rel (0) target = $region193
    $region192: #{tpu_custom_call.1} parent=1 // pred_region
      %422 = dma.done [#allocation24], 16
    $region193: #{tpu_custom_call.1} parent=1 // pred_fallthru
      _
    // Predicated region
    $region194: #{tpu_custom_call.1} parent=1 // pred_check
      _
    $region195: #{tpu_custom_call.1} parent=1 // pred_check_branch
      %424 = sbr.rel (0) target = $region197
    $region196: #{tpu_custom_call.1} parent=1 // pred_region
      %426 = dma.done [#allocation24], 16
    $region197: #{tpu_custom_call.1} parent=1 // pred_fallthru
      _
    // Predicated region
    $region198: #{tpu_custom_call.1} parent=1 // pred_check
      _
    $region199: #{tpu_custom_call.1} parent=1 // pred_check_branch
      %428 = sbr.rel (0) target = $region201
    $region200: #{tpu_custom_call.1} parent=1 // pred_region
      %430 = dma.done [#allocation27], 4096
    $region201: #{tpu_custom_call.1} parent=1 // pred_fallthru
      _
    // Predicated region
    $region202: #{tpu_custom_call.1} parent=1 // pred_check
      _
    $region203: #{tpu_custom_call.1} parent=1 // pred_check_branch
      %432 = sbr.rel (0) target = $region205
    $region204: #{tpu_custom_call.1} parent=1 // pred_region
      %434 = dma.done [#allocation27], 512
    $region205: #{tpu_custom_call.1} parent=1 // pred_fallthru
      _
    // Predicated region
    $region206: #{tpu_custom_call.1} parent=1 // pred_check
      _
    $region207: #{tpu_custom_call.1} parent=1 // pred_check_branch
      %436 = sbr.rel (0) target = $region209
    $region208: #{tpu_custom_call.1} parent=1 // pred_region
      %438 = dma.done [#allocation30], 16
    $region209: #{tpu_custom_call.1} parent=1 // pred_fallthru
      _
    // Predicated region
    $region210: #{tpu_custom_call.1} parent=1 // pred_check
      _
    $region211: #{tpu_custom_call.1} parent=1 // pred_check_branch
      %440 = sbr.rel (0) target = $region213
    $region212: #{tpu_custom_call.1} parent=1 // pred_region
      %442 = dma.done [#allocation30], 1536
    $region213: #{tpu_custom_call.1} parent=1 // pred_fallthru
      _
    // Predicated region
    $region214: #{tpu_custom_call.1} parent=1 // pred_check
      _
    $region215: #{tpu_custom_call.1} parent=1 // pred_check_branch
      %444 = sbr.rel (0) target = $region217
    $region216: #{tpu_custom_call.1} parent=1 // pred_region
      %446 = dma.done [#allocation33], 512
    $region217: #{tpu_custom_call.1} parent=1 // pred_fallthru
      _
    // Predicated region
    $region218: #{tpu_custom_call.1} parent=1 // pred_check
      _
    $region219: #{tpu_custom_call.1} parent=1 // pred_check_branch
      %448 = sbr.rel (0) target = $region221
    $region220: #{tpu_custom_call.1} parent=1 // pred_region
      %450 = dma.done [#allocation33], 512
    $region221: #{tpu_custom_call.1} parent=1 // pred_fallthru
      _
    %v451 = vlaneseq
    %v452 = vand.u32 %v451, 127
    %vm453 = vcmp.lt.s32.totalorder %v452, 100
    %v454 = vsel %vm453, 1, 0
    %v455 = vcvt.s32.f32 %v454
    %vm456 = vcmp.ge.s32.totalorder %v452, 0
    %vm457 = vcmp.lt.s32.totalorder %v452, 50
    %vm458 = vmand %vm456, %vm457
    %v459 = vsel %vm458, 1, 0
    %v460 = vcvt.s32.f32 %v459
    %vm461 = vcmp.ge.s32.totalorder %v452, 50
    %vm462 = vmand %vm461, %vm453
    %v463 = vsel %vm462, 1, 0
    %v464 = vcvt.s32.f32 %v463
    %vm465 = vcmp.lt.s32.totalorder %v452, 32
    %vm466 = vmand %vm456, %vm465
    %v467 = vsel %vm466, 1, 0
    %v468 = vcvt.s32.f32 %v467
    %vm469 = vcmp.ge.s32.totalorder %v452, 32
    %vm470 = vcmp.lt.s32.totalorder %v452, 64
    %vm471 = vmand %vm469, %vm470
    %v472 = vsel %vm471, 1, 0
    %v473 = vcvt.s32.f32 %v472
    %v474 = vld [vmem:[%s1] sm:$0xff]
    %v475 = vld [vmem:[%s1 + $0x8] sm:$0xff]
    %v476 = vpack.c.bf16 %v475, %v474
    %v477 = vld [vmem:[%s11] sm:$0xff]
    %v478 = vld [vmem:[%s11 + $0x8] sm:$0xf]
    %v479 = vld [vmem:[%s11 + $0xc] sm:$0xff]
    %v480 = vld [vmem:[%s11 + $0x14] sm:$0xf]
    %v481 = vld [vmem:[%s11 + $0x18] sm:$0xff]
    %v482 = vld [vmem:[%s11 + $0x20] sm:$0xf]
    %v483 = vld [vmem:[%s11 + $0x24] sm:$0xff]
    %v484 = vld [vmem:[%s11 + $0x2c] sm:$0xf]
    %v485 = vld [vmem:[%s11 + $0x30] sm:$0xff]
    %v486 = vld [vmem:[%s11 + $0x38] sm:$0xf]
    %v487 = vld [vmem:[%s11 + $0x3c] sm:$0xff]
    %v488 = vld [vmem:[%s11 + $0x44] sm:$0xf]
    %v489 = vld [vmem:[%s11 + $0x48] sm:$0xff]
    %v490 = vld [vmem:[%s11 + $0x50] sm:$0xf]
    %v491 = vld [vmem:[%s11 + $0x54] sm:$0xff]
    %v492 = vld [vmem:[%s11 + $0x5c] sm:$0xf]
    %v493 = vld [vmem:[%s11 + $0x60] sm:$0xff]
    %v494 = vld [vmem:[%s11 + $0x68] sm:$0xf]
    %v495 = vld [vmem:[%s11 + $0x6c] sm:$0xff]
    %v496 = vld [vmem:[%s11 + $0x74] sm:$0xf]
    %v497 = vld [vmem:[%s11 + $0x78] sm:$0xff]
    %v498 = vld [vmem:[%s11 + $0x80] sm:$0xf]
    %v499 = vld [vmem:[%s11 + $0x84] sm:$0xff]
    %v500 = vld [vmem:[%s11 + $0x8c] sm:$0xf]
    %v501 = vld [vmem:[%s11 + $0x90] sm:$0xff]
    %v502 = vld [vmem:[%s11 + $0x98] sm:$0xf]
    %v503 = vld [vmem:[%s11 + $0x9c] sm:$0xff]
    %v504 = vld [vmem:[%s11 + $0xa4] sm:$0xf]
    %v505 = vld [vmem:[%s11 + $0xa8] sm:$0xff]
    %v506 = vld [vmem:[%s11 + $0xb0] sm:$0xf]
    %v507 = vld [vmem:[%s11 + $0xb4] sm:$0xff]
    %v508 = vld [vmem:[%s11 + $0xbc] sm:$0xf]
    %v509 = vld [vmem:[#allocation10] sm:$0x7]
    %v511 = vperm.slane %v509, 0
    %v512 = vperm.slane %v509, 1
    %v513 = vperm.slane %v509, 2
    %v549 = vunpack.c.l.b16 %v477
    %v550 = vunpack.c.h.b16 %v477
    %v551 = vunpack.c.l.b16 %v478
    %v552 = vunpack.c.l.b16 %v479
    %v553 = vunpack.c.h.b16 %v479
    %v554 = vunpack.c.l.b16 %v480
    %v555 = vunpack.c.l.b16 %v481
    %v556 = vunpack.c.h.b16 %v481
    %v557 = vunpack.c.l.b16 %v482
    %v558 = vunpack.c.l.b16 %v483
    %v559 = vunpack.c.h.b16 %v483
    %v560 = vunpack.c.l.b16 %v484
    %v561 = vunpack.c.l.b16 %v485
    %v562 = vunpack.c.h.b16 %v485
    %v563 = vunpack.c.l.b16 %v486
    %v564 = vunpack.c.l.b16 %v487
    %v565 = vunpack.c.h.b16 %v487
    %v566 = vunpack.c.l.b16 %v488
    %v567 = vunpack.c.l.b16 %v489
    %v568 = vunpack.c.h.b16 %v489
    %v569 = vunpack.c.l.b16 %v490
    %v570 = vunpack.c.l.b16 %v491
    %v571 = vunpack.c.h.b16 %v491
    %v572 = vunpack.c.l.b16 %v492
    %v573 = vunpack.c.l.b16 %v493
    %v574 = vunpack.c.h.b16 %v493
    %v575 = vunpack.c.l.b16 %v494
    %v576 = vunpack.c.l.b16 %v495
    %v577 = vunpack.c.h.b16 %v495
    %v578 = vunpack.c.l.b16 %v496
    %v579 = vunpack.c.l.b16 %v497
    %v580 = vunpack.c.h.b16 %v497
    %v581 = vunpack.c.l.b16 %v498
    %v582 = vunpack.c.l.b16 %v499
    %v583 = vunpack.c.h.b16 %v499
    %v584 = vunpack.c.l.b16 %v500
    %v585 = vunpack.c.l.b16 %v501
    %v586 = vunpack.c.h.b16 %v501
    %v587 = vunpack.c.l.b16 %v502
    %v588 = vunpack.c.l.b16 %v503
    %v589 = vunpack.c.h.b16 %v503
    %v590 = vunpack.c.l.b16 %v504
    %v591 = vunpack.c.l.b16 %v505
    %v592 = vunpack.c.h.b16 %v505
    %v593 = vunpack.c.l.b16 %v506
    %v594 = vunpack.c.l.b16 %v507
    %v595 = vunpack.c.h.b16 %v507
    %v596 = vunpack.c.l.b16 %v508
    %v597 = vpack.c.b16 %v552, %v549
    %v598 = vpack.c.b16 %v553, %v550
    %v599 = vpack.c.b16 %v554, %v551
    %v600 = vpack.c.b16 %v558, %v555
    %v601 = vpack.c.b16 %v559, %v556
    %v602 = vpack.c.b16 %v560, %v557
    %v603 = vpack.c.b16 %v564, %v561
    %v604 = vpack.c.b16 %v565, %v562
    %v605 = vpack.c.b16 %v566, %v563
    %v606 = vpack.c.b16 %v570, %v567
    %v607 = vpack.c.b16 %v571, %v568
    %v608 = vpack.c.b16 %v572, %v569
    %v609 = vpack.c.b16 %v576, %v573
    %v610 = vpack.c.b16 %v577, %v574
    %v611 = vpack.c.b16 %v578, %v575
    %v612 = vpack.c.b16 %v582, %v579
    %v613 = vpack.c.b16 %v583, %v580
    %v614 = vpack.c.b16 %v584, %v581
    %v615 = vpack.c.b16 %v588, %v585
    %v616 = vpack.c.b16 %v589, %v586
    %v617 = vpack.c.b16 %v590, %v587
    %v618 = vpack.c.b16 %v594, %v591
    %v619 = vpack.c.b16 %v595, %v592
    %v620 = vpack.c.b16 %v596, %v593
    %645 = vmatpush.bf16.msra.mxu0 %v618
    %646 = vmatpush.bf16.msra.mxu0 %v615
    %647 = vmatpush.bf16.msra.mxu0 %v612
    %648 = vmatpush.bf16.msra.mxu0 %v609
    %649 = vmatpush.bf16.msra.mxu0 %v606
    %650 = vmatpush.bf16.msra.mxu0 %v603
    %651 = vmatpush.bf16.msra.mxu0 %v600
    %652 = vmatpush.bf16.msra.mxu0 %v597
    %653 = vmatmul.bf16.gmra.mxu0 %v476
    %v654 = vpop.f32.mrf.mxu0
    %v655 = vadd.f32 %v511, %v654
    %v656 = vpop.f32.mrf.mxu0
    %v657 = vadd.f32 %v511, %v656
    %658 = vdwg.mxu0
    %659 = vmatpush.bf16.msra.mxu0 %v619
    %660 = vmatpush.bf16.msra.mxu0 %v616
    %661 = vmatpush.bf16.msra.mxu0 %v613
    %662 = vmatpush.bf16.msra.mxu0 %v610
    %663 = vmatpush.bf16.msra.mxu0 %v607
    %664 = vmatpush.bf16.msra.mxu0 %v604
    %665 = vmatpush.bf16.msra.mxu0 %v601
    %666 = vmatpush.bf16.msra.mxu0 %v598
    %667 = vmatmul.bf16.gmra.mxu0 %v476
    %v668 = vpop.f32.mrf.mxu0
    %v669 = vadd.f32 %v512, %v668
    %v670 = vpop.f32.mrf.mxu0
    %v671 = vadd.f32 %v512, %v670
    %672 = vdwg.mxu0
    %673 = vmatpush.bf16.msra.mxu0 %v620
    %674 = vmatpush.bf16.msra.mxu0 %v617
    %675 = vmatpush.bf16.msra.mxu0 %v614
    %676 = vmatpush.bf16.msra.mxu0 %v611
    %677 = vmatpush.bf16.msra.mxu0 %v608
    %678 = vmatpush.bf16.msra.mxu0 %v605
    %679 = vmatpush.bf16.msra.mxu0 %v602
    %680 = vmatpush.bf16.msra.mxu0 %v599
    %681 = vmatmul.bf16.gmra.mxu0 %v476
    %v682 = vpop.f32.mrf.mxu0
    %v683 = vadd.f32 %v513, %v682
    %v684 = vpop.f32.mrf.mxu0
    %v685 = vadd.f32 %v513, %v684
    %686 = vdwg.mxu0
    %v687 = vld [vmem:[#allocation5] sm:$0xff]
    %v688 = vld [vmem:[#allocation5 + $0x8] sm:$0xff]
    %v689 = vmul.f32 %v655, %v460
    %v690 = vmul.f32 %v657, %v460
    %691 = vmatpush.xpose.msra.mxu0 0.0
    %692 = vmatpush.xpose.msra.mxu0 0.0
    %693 = vmatpush.xpose.msra.mxu0 0.0
    %694 = vmatpush.xpose.msra.mxu0 0.0
    %695 = vmatpush.xpose.msra.mxu0 0.0
    %696 = vmatpush.xpose.msra.mxu0 0.0
    %697 = vmatpush.xpose.msra.mxu0 0.0
    %698 = vmatpush.xpose.msra.mxu0 0.0
    %699 = vmatpush.xpose.msra.mxu0 0.0
    %700 = vmatpush.xpose.msra.mxu0 0.0
    %701 = vmatpush.xpose.msra.mxu0 0.0
    %702 = vmatpush.xpose.msra.mxu0 0.0
    %703 = vmatpush.xpose.msra.mxu0 0.0
    %704 = vmatpush.xpose.msra.mxu0 0.0
    %705 = vmatpush.xpose.msra.mxu0 %v671
    %706 = vmatpush.xpose.msra.mxu0 %v669
    %707 = vmatmul.f32.gmra.mxu0 %v689
    %v708 = vpop.f32.mrf.mxu0
    %v709 = vadd.f32 0.0, %v708
    %710 = vmatmul.f32.gmra.mxu0 %v690
    %v711 = vpop.f32.mrf.mxu0
    %v712 = vadd.f32 0.0, %v711
    %713 = vdwg.mxu0
    %v714 = vmul.f32 %v709, 0.14142136
    %v715 = vmul.f32 %v712, 0.14142136
    %vm716 = vcmp.gt.f32.partialorder %v687, 0.0
    %vm717 = vcmp.gt.f32.partialorder %v688, 0.0
    %v718 = vsel %vm716, %v714, -1e+30
    %v719 = vsel %vm717, %v715, -1e+30
    %vm720 = vcmask 130048
    %v721 = vsel %vm720, %v718, -inf
    %722 = vmax.xlane.f32.xlu0 %v721
    %v723 = vpop.xlane.xlu0 %722
    %v724 = vsel %vm720, %v719, -inf
    %725 = vmax.xlane.f32.xlu0 %v724
    %v726 = vpop.xlane.xlu0 %725
    %v727 = vsub.f32 %v718, %v723
    %v728 = vsub.f32 %v719, %v726
    %v729 = vmul.f32 %v727, 1.442695
    %v730 = vpow.pop %v729
    %v731 = vmul.f32 %v728, 1.442695
    %v732 = vpow.pop %v731
    %v733 = vsel %vm720, %v730, 0.0
    %734 = vadd.xlane.f32.xlu0 %v733
    %v735 = vpop.xlane.xlu0 %734
    %v736 = vsel %vm720, %v732, 0.0
    %737 = vadd.xlane.f32.xlu0 %v736
    %v738 = vpop.xlane.xlu0 %737
    %v739 = vrcp.pop %v735
    %v740 = vrcp.pop %v738
    %v741 = vmul.f32 %v730, %v739
    %v742 = vmul.f32 %v732, %v740
    %v743 = vmul.f32 %v683, %v460
    %v744 = vmul.f32 %v685, %v460
    %v745 = vmul.f32 %v655, %v464
    %v746 = vmul.f32 %v657, %v464
    %747 = vmatpush.xpose.msra.mxu0 0.0
    %748 = vmatpush.xpose.msra.mxu0 0.0
    %749 = vmatpush.xpose.msra.mxu0 0.0
    %750 = vmatpush.xpose.msra.mxu0 0.0
    %751 = vmatpush.xpose.msra.mxu0 0.0
    %752 = vmatpush.xpose.msra.mxu0 0.0
    %753 = vmatpush.xpose.msra.mxu0 0.0
    %754 = vmatpush.xpose.msra.mxu0 0.0
    %755 = vmatpush.xpose.msra.mxu0 0.0
    %756 = vmatpush.xpose.msra.mxu0 0.0
    %757 = vmatpush.xpose.msra.mxu0 0.0
    %758 = vmatpush.xpose.msra.mxu0 0.0
    %759 = vmatpush.xpose.msra.mxu0 0.0
    %760 = vmatpush.xpose.msra.mxu0 0.0
    %761 = vmatpush.xpose.msra.mxu0 %v671
    %762 = vmatpush.xpose.msra.mxu0 %v669
    %763 = vmatmul.f32.gmra.mxu0 %v745
    %v764 = vpop.f32.mrf.mxu0
    %v765 = vadd.f32 0.0, %v764
    %766 = vmatmul.f32.gmra.mxu0 %v746
    %v767 = vpop.f32.mrf.mxu0
    %v768 = vadd.f32 0.0, %v767
    %769 = vdwg.mxu0
    %v770 = vmul.f32 %v765, 0.14142136
    %v771 = vmul.f32 %v768, 0.14142136
    %v772 = vsel %vm716, %v770, -1e+30
    %v773 = vsel %vm717, %v771, -1e+30
    %v774 = vsel %vm720, %v772, -inf
    %775 = vmax.xlane.f32.xlu0 %v774
    %v776 = vpop.xlane.xlu0 %775
    %v777 = vsel %vm720, %v773, -inf
    %778 = vmax.xlane.f32.xlu0 %v777
    %v779 = vpop.xlane.xlu0 %778
    %v780 = vsub.f32 %v772, %v776
    %v781 = vsub.f32 %v773, %v779
    %v782 = vmul.f32 %v780, 1.442695
    %v783 = vpow.pop %v782
    %v784 = vmul.f32 %v781, 1.442695
    %v785 = vpow.pop %v784
    %v786 = vsel %vm720, %v783, 0.0
    %787 = vadd.xlane.f32.xlu0 %v786
    %v788 = vpop.xlane.xlu0 %787
    %v789 = vsel %vm720, %v785, 0.0
    %790 = vadd.xlane.f32.xlu0 %v789
    %v791 = vpop.xlane.xlu0 %790
    %v792 = vrcp.pop %v788
    %v793 = vrcp.pop %v791
    %v794 = vmul.f32 %v783, %v792
    %v795 = vmul.f32 %v785, %v793
    %v796 = vmul.f32 %v683, %v464
    %v797 = vmul.f32 %v685, %v464
    %v799 = vsel %vm720, %v794, 0
    %v802 = vsel %vm720, %v795, 0
    %804 = vmatpush.msra.mxu0 0.0
    %805 = vmatpush.msra.mxu0 0.0
    %806 = vmatpush.msra.mxu0 0.0
    %807 = vmatpush.msra.mxu0 0.0
    %808 = vmatpush.msra.mxu0 0.0
    %809 = vmatpush.msra.mxu0 0.0
    %810 = vmatpush.msra.mxu0 0.0
    %811 = vmatpush.msra.mxu0 0.0
    %812 = vmatpush.msra.mxu0 0.0
    %813 = vmatpush.msra.mxu0 0.0
    %814 = vmatpush.msra.mxu0 0.0
    %815 = vmatpush.msra.mxu0 0.0
    %816 = vmatpush.msra.mxu0 0.0
    %817 = vmatpush.msra.mxu0 0.0
    %818 = vmatpush.msra.mxu0 %v797
    %819 = vmatpush.msra.mxu0 %v796
    %820 = vmatmul.f32.gmra.mxu0 %v799
    %v821 = vpop.f32.mrf.mxu0
    %v822 = vadd.f32 0.0, %v821
    %823 = vmatmul.f32.gmra.mxu0 %v802
    %v824 = vpop.f32.mrf.mxu0
    %v825 = vadd.f32 0.0, %v824
    %826 = vdwg.mxu0
    %v828 = vsel %vm720, %v741, 0
    %v831 = vsel %vm720, %v742, 0
    %833 = vmatpush.msra.mxu0 0.0
    %834 = vmatpush.msra.mxu0 0.0
    %835 = vmatpush.msra.mxu0 0.0
    %836 = vmatpush.msra.mxu0 0.0
    %837 = vmatpush.msra.mxu0 0.0
    %838 = vmatpush.msra.mxu0 0.0
    %839 = vmatpush.msra.mxu0 0.0
    %840 = vmatpush.msra.mxu0 0.0
    %841 = vmatpush.msra.mxu0 0.0
    %842 = vmatpush.msra.mxu0 0.0
    %843 = vmatpush.msra.mxu0 0.0
    %844 = vmatpush.msra.mxu0 0.0
    %845 = vmatpush.msra.mxu0 0.0
    %846 = vmatpush.msra.mxu0 0.0
    %847 = vmatpush.msra.mxu0 %v744
    %848 = vmatpush.msra.mxu0 %v743
    %849 = vmatmul.f32.gmra.mxu0 %v828
    %v850 = vpop.f32.mrf.mxu0
    %v851 = vadd.f32 %v822, %v850
    %852 = vmatmul.f32.gmra.mxu0 %v831
    %v853 = vpop.f32.mrf.mxu0
    %v854 = vadd.f32 %v825, %v853
    %855 = vdwg.mxu0
    %v856 = vpack.c.bf16 %v854, %v851
    %v857 = vld [vmem:[#allocation11] sm:$0xf]
    %v858 = vld [vmem:[#allocation11 + $0x4] sm:$0xf]
    %v859 = vld [vmem:[#allocation11 + $0x8] sm:$0xf]
    %v860 = vld [vmem:[#allocation11 + $0xc] sm:$0xf]
    %v861 = vld [vmem:[#allocation11 + $0x10] sm:$0xf]
    %v862 = vld [vmem:[#allocation11 + $0x14] sm:$0xf]
    %v863 = vld [vmem:[#allocation11 + $0x18] sm:$0xf]
    %v864 = vld [vmem:[#allocation11 + $0x1c] sm:$0xf]
    %v865 = vld [vmem:[#allocation11 + $0x20] sm:$0xf]
    %v866 = vld [vmem:[#allocation11 + $0x24] sm:$0xf]
    %v867 = vld [vmem:[#allocation11 + $0x28] sm:$0xf]
    %v868 = vld [vmem:[#allocation11 + $0x2c] sm:$0xf]
    %v869 = vld [vmem:[#allocation11 + $0x30] sm:$0xf]
    %v870 = vld [vmem:[#allocation11 + $0x34] sm:$0xf]
    %v871 = vld [vmem:[#allocation11 + $0x38] sm:$0xf]
    %v872 = vld [vmem:[#allocation11 + $0x3c] sm:$0xf]
    %v873 = vld [vmem:[#allocation13] sm:$0x1]
    %v875 = vperm.slane %v873, 0
    %v893 = vunpack.c.l.b16 %v857
    %v894 = vunpack.c.l.b16 %v858
    %v895 = vunpack.c.l.b16 %v859
    %v896 = vunpack.c.l.b16 %v860
    %v897 = vunpack.c.l.b16 %v861
    %v898 = vunpack.c.l.b16 %v862
    %v899 = vunpack.c.l.b16 %v863
    %v900 = vunpack.c.l.b16 %v864
    %v901 = vunpack.c.l.b16 %v865
    %v902 = vunpack.c.l.b16 %v866
    %v903 = vunpack.c.l.b16 %v867
    %v904 = vunpack.c.l.b16 %v868
    %v905 = vunpack.c.l.b16 %v869
    %v906 = vunpack.c.l.b16 %v870
    %v907 = vunpack.c.l.b16 %v871
    %v908 = vunpack.c.l.b16 %v872
    %v909 = vpack.c.b16 %v894, %v893
    %v910 = vpack.c.b16 %v896, %v895
    %v911 = vpack.c.b16 %v898, %v897
    %v912 = vpack.c.b16 %v900, %v899
    %v913 = vpack.c.b16 %v902, %v901
    %v914 = vpack.c.b16 %v904, %v903
    %v915 = vpack.c.b16 %v906, %v905
    %v916 = vpack.c.b16 %v908, %v907
    %925 = vmatpush.bf16.msra.mxu0 %v916
    %926 = vmatpush.bf16.msra.mxu0 %v915
    %927 = vmatpush.bf16.msra.mxu0 %v914
    %928 = vmatpush.bf16.msra.mxu0 %v913
    %929 = vmatpush.bf16.msra.mxu0 %v912
    %930 = vmatpush.bf16.msra.mxu0 %v911
    %931 = vmatpush.bf16.msra.mxu0 %v910
    %932 = vmatpush.bf16.msra.mxu0 %v909
    %933 = vmatmul.bf16.gmra.mxu0 %v856
    %v934 = vpop.f32.mrf.mxu0
    %v935 = vadd.f32 %v875, %v934
    %v936 = vpop.f32.mrf.mxu0
    %v937 = vadd.f32 %v875, %v936
    %938 = vdwg.mxu0
    %v939 = vadd.f32 %v474, %v935
    %v940 = vadd.f32 %v475, %v937
    %v941 = vld [vmem:[#allocation14] sm:$0x1]
    %v942 = vld [vmem:[#allocation16] sm:$0x1]
    %v943 = vmul.f32 %v939, %v455
    %v944 = vmul.f32 %v940, %v455
    %945 = vadd.xlane.f32.xlu0 %v943
    %v946 = vpop.xlane.xlu0 %945
    %947 = vadd.xlane.f32.xlu0 %v944
    %v948 = vpop.xlane.xlu0 %947
    %v949 = vrcp.pop 100.0
    %v950 = vmul.f32 100.0, %v949
    %v951 = vsub.f32 1.0, %v950
    %v952 = vmul.f32 %v949, %v951
    %v953 = vadd.f32 %v949, %v952
    %vm954 = vweird.f32 %v949
    %v955 = vsel %vm954, %v949, %v953
    %v956 = vmul.f32 %v946, %v955
    %v957 = vmul.f32 %v948, %v955
    %v958 = vsub.f32 %v939, %v956
    %v959 = vsub.f32 %v940, %v957
    %v960 = vmul.f32 %v958, %v455
    %v961 = vmul.f32 %v959, %v455
    %v962 = vmul.f32 %v960, %v960
    %v963 = vmul.f32 %v961, %v961
    %964 = vadd.xlane.f32.xlu0 %v962
    %v965 = vpop.xlane.xlu0 %964
    %966 = vadd.xlane.f32.xlu0 %v963
    %v967 = vpop.xlane.xlu0 %966
    %v968 = vmul.f32 %v965, %v955
    %v969 = vmul.f32 %v967, %v955
    %v970 = vadd.f32 %v968, 1e-05
    %v971 = vadd.f32 %v969, 1e-05
    %v972 = vrsqrt.pop %v970
    %v973 = vmul.f32 %v972, %v970
    %v974 = vmul.f32 %v973, %v972
    %v975 = vmul.f32 0.5, %v974
    %v976 = vsub.f32 1.5, %v975
    %v977 = vmul.f32 %v972, %v976
    %vm978 = vweird.f32 %v970
    %vm979 = vweird.f32 %v972
    %vm980 = vmor %vm978, %vm979
    %v981 = vsel %vm980, %v972, %v977
    %v982 = vrsqrt.pop %v971
    %v983 = vmul.f32 %v982, %v971
    %v984 = vmul.f32 %v983, %v982
    %v985 = vmul.f32 0.5, %v984
    %v986 = vsub.f32 1.5, %v985
    %v987 = vmul.f32 %v982, %v986
    %vm988 = vweird.f32 %v971
    %vm989 = vweird.f32 %v982
    %vm990 = vmor %vm988, %vm989
    %v991 = vsel %vm990, %v982, %v987
    %v992 = vmul.f32 %v958, %v981
    %v993 = vmul.f32 %v959, %v991
    %v995 = vperm.slane %v941, 0
    %v997 = vmul.f32 %v992, %v995
    %v998 = vmul.f32 %v993, %v995
    %v1000 = vperm.slane %v942, 0
    %v1002 = vadd.f32 %v997, %v1000
    %v1003 = vadd.f32 %v998, %v1000
    %v1004 = vpack.c.bf16 %v1003, %v1002
    %v1005 = vld [vmem:[#allocation17] sm:$0xf]
    %v1006 = vld [vmem:[#allocation17 + $0x4] sm:$0xf]
    %v1007 = vld [vmem:[#allocation17 + $0x8] sm:$0xf]
    %v1008 = vld [vmem:[#allocation17 + $0xc] sm:$0xf]
    %v1009 = vld [vmem:[#allocation17 + $0x10] sm:$0xf]
    %v1010 = vld [vmem:[#allocation17 + $0x14] sm:$0xf]
    %v1011 = vld [vmem:[#allocation17 + $0x18] sm:$0xf]
    %v1012 = vld [vmem:[#allocation17 + $0x1c] sm:$0xf]
    %v1013 = vld [vmem:[#allocation17 + $0x20] sm:$0xf]
    %v1014 = vld [vmem:[#allocation17 + $0x24] sm:$0xf]
    %v1015 = vld [vmem:[#allocation17 + $0x28] sm:$0xf]
    %v1016 = vld [vmem:[#allocation17 + $0x2c] sm:$0xf]
    %v1017 = vld [vmem:[#allocation17 + $0x30] sm:$0xf]
    %v1018 = vld [vmem:[#allocation17 + $0x34] sm:$0xf]
    %v1019 = vld [vmem:[#allocation17 + $0x38] sm:$0xf]
    %v1020 = vld [vmem:[#allocation17 + $0x3c] sm:$0xf]
    %v1021 = vld [vmem:[#allocation19] sm:$0x1]
    %v1023 = vperm.slane %v1021, 0
    %v1041 = vunpack.c.l.b16 %v1005
    %v1042 = vunpack.c.l.b16 %v1006
    %v1043 = vunpack.c.l.b16 %v1007
    %v1044 = vunpack.c.l.b16 %v1008
    %v1045 = vunpack.c.l.b16 %v1009
    %v1046 = vunpack.c.l.b16 %v1010
    %v1047 = vunpack.c.l.b16 %v1011
    %v1048 = vunpack.c.l.b16 %v1012
    %v1049 = vunpack.c.l.b16 %v1013
    %v1050 = vunpack.c.l.b16 %v1014
    %v1051 = vunpack.c.l.b16 %v1015
    %v1052 = vunpack.c.l.b16 %v1016
    %v1053 = vunpack.c.l.b16 %v1017
    %v1054 = vunpack.c.l.b16 %v1018
    %v1055 = vunpack.c.l.b16 %v1019
    %v1056 = vunpack.c.l.b16 %v1020
    %v1057 = vpack.c.b16 %v1042, %v1041
    %v1058 = vpack.c.b16 %v1044, %v1043
    %v1059 = vpack.c.b16 %v1046, %v1045
    %v1060 = vpack.c.b16 %v1048, %v1047
    %v1061 = vpack.c.b16 %v1050, %v1049
    %v1062 = vpack.c.b16 %v1052, %v1051
    %v1063 = vpack.c.b16 %v1054, %v1053
    %v1064 = vpack.c.b16 %v1056, %v1055
    %1073 = vmatpush.bf16.msra.mxu0 %v1064
    %1074 = vmatpush.bf16.msra.mxu0 %v1063
    %1075 = vmatpush.bf16.msra.mxu0 %v1062
    %1076 = vmatpush.bf16.msra.mxu0 %v1061
    %1077 = vmatpush.bf16.msra.mxu0 %v1060
    %1078 = vmatpush.bf16.msra.mxu0 %v1059
    %1079 = vmatpush.bf16.msra.mxu0 %v1058
    %1080 = vmatpush.bf16.msra.mxu0 %v1057
    %1081 = vmatmul.bf16.gmra.mxu0 %v1004
    %v1082 = vpop.f32.mrf.mxu0
    %v1083 = vadd.f32 %v1023, %v1082
    %v1084 = vpop.f32.mrf.mxu0
    %v1085 = vadd.f32 %v1023, %v1084
    %1086 = vdwg.mxu0
    %v1087 = vmax.f32 %v1083, 0.0
    %v1088 = vmax.f32 %v1085, 0.0
    %v1089 = vpack.c.bf16 %v1088, %v1087
    %v1090 = vld [vmem:[#allocation20] sm:$0xf]
    %v1091 = vld [vmem:[#allocation20 + $0x4] sm:$0xf]
    %v1092 = vld [vmem:[#allocation20 + $0x8] sm:$0xf]
    %v1093 = vld [vmem:[#allocation20 + $0xc] sm:$0xf]
    %v1094 = vld [vmem:[#allocation20 + $0x10] sm:$0xf]
    %v1095 = vld [vmem:[#allocation20 + $0x14] sm:$0xf]
    %v1096 = vld [vmem:[#allocation20 + $0x18] sm:$0xf]
    %v1097 = vld [vmem:[#allocation20 + $0x1c] sm:$0xf]
    %v1098 = vld [vmem:[#allocation20 + $0x20] sm:$0xf]
    %v1099 = vld [vmem:[#allocation20 + $0x24] sm:$0xf]
    %v1100 = vld [vmem:[#allocation20 + $0x28] sm:$0xf]
    %v1101 = vld [vmem:[#allocation20 + $0x2c] sm:$0xf]
    %v1102 = vld [vmem:[#allocation20 + $0x30] sm:$0xf]
    %v1103 = vld [vmem:[#allocation20 + $0x34] sm:$0xf]
    %v1104 = vld [vmem:[#allocation20 + $0x38] sm:$0xf]
    %v1105 = vld [vmem:[#allocation20 + $0x3c] sm:$0xf]
    %v1106 = vld [vmem:[#allocation22] sm:$0x1]
    %v1108 = vperm.slane %v1106, 0
    %v1126 = vunpack.c.l.b16 %v1090
    %v1127 = vunpack.c.l.b16 %v1091
    %v1128 = vunpack.c.l.b16 %v1092
    %v1129 = vunpack.c.l.b16 %v1093
    %v1130 = vunpack.c.l.b16 %v1094
    %v1131 = vunpack.c.l.b16 %v1095
    %v1132 = vunpack.c.l.b16 %v1096
    %v1133 = vunpack.c.l.b16 %v1097
    %v1134 = vunpack.c.l.b16 %v1098
    %v1135 = vunpack.c.l.b16 %v1099
    %v1136 = vunpack.c.l.b16 %v1100
    %v1137 = vunpack.c.l.b16 %v1101
    %v1138 = vunpack.c.l.b16 %v1102
    %v1139 = vunpack.c.l.b16 %v1103
    %v1140 = vunpack.c.l.b16 %v1104
    %v1141 = vunpack.c.l.b16 %v1105
    %v1142 = vpack.c.b16 %v1127, %v1126
    %v1143 = vpack.c.b16 %v1129, %v1128
    %v1144 = vpack.c.b16 %v1131, %v1130
    %v1145 = vpack.c.b16 %v1133, %v1132
    %v1146 = vpack.c.b16 %v1135, %v1134
    %v1147 = vpack.c.b16 %v1137, %v1136
    %v1148 = vpack.c.b16 %v1139, %v1138
    %v1149 = vpack.c.b16 %v1141, %v1140
    %1158 = vmatpush.bf16.msra.mxu0 %v1149
    %1159 = vmatpush.bf16.msra.mxu0 %v1148
    %1160 = vmatpush.bf16.msra.mxu0 %v1147
    %1161 = vmatpush.bf16.msra.mxu0 %v1146
    %1162 = vmatpush.bf16.msra.mxu0 %v1145
    %1163 = vmatpush.bf16.msra.mxu0 %v1144
    %1164 = vmatpush.bf16.msra.mxu0 %v1143
    %1165 = vmatpush.bf16.msra.mxu0 %v1142
    %1166 = vmatmul.bf16.gmra.mxu0 %v1089
    %v1167 = vpop.f32.mrf.mxu0
    %v1168 = vadd.f32 %v1108, %v1167
    %v1169 = vpop.f32.mrf.mxu0
    %v1170 = vadd.f32 %v1108, %v1169
    %1171 = vdwg.mxu0
    %v1172 = vadd.f32 %v1002, %v1168
    %v1173 = vadd.f32 %v1003, %v1170
    %v1174 = vld [vmem:[#allocation23] sm:$0x1]
    %v1175 = vld [vmem:[#allocation25] sm:$0x1]
    %v1176 = vmul.f32 %v1172, %v455
    %v1177 = vmul.f32 %v1173, %v455
    %1178 = vadd.xlane.f32.xlu0 %v1176
    %v1179 = vpop.xlane.xlu0 %1178
    %1180 = vadd.xlane.f32.xlu0 %v1177
    %v1181 = vpop.xlane.xlu0 %1180
    %v1182 = vmul.f32 %v1179, %v955
    %v1183 = vmul.f32 %v1181, %v955
    %v1184 = vsub.f32 %v1172, %v1182
    %v1185 = vsub.f32 %v1173, %v1183
    %v1186 = vmul.f32 %v1184, %v455
    %v1187 = vmul.f32 %v1185, %v455
    %v1188 = vmul.f32 %v1186, %v1186
    %v1189 = vmul.f32 %v1187, %v1187
    %1190 = vadd.xlane.f32.xlu0 %v1188
    %v1191 = vpop.xlane.xlu0 %1190
    %1192 = vadd.xlane.f32.xlu0 %v1189
    %v1193 = vpop.xlane.xlu0 %1192
    %v1194 = vmul.f32 %v1191, %v955
    %v1195 = vmul.f32 %v1193, %v955
    %v1196 = vadd.f32 %v1194, 1e-05
    %v1197 = vadd.f32 %v1195, 1e-05
    %v1198 = vrsqrt.pop %v1196
    %v1199 = vmul.f32 %v1198, %v1196
    %v1200 = vmul.f32 %v1199, %v1198
    %v1201 = vmul.f32 0.5, %v1200
    %v1202 = vsub.f32 1.5, %v1201
    %v1203 = vmul.f32 %v1198, %v1202
    %vm1204 = vweird.f32 %v1196
    %vm1205 = vweird.f32 %v1198
    %vm1206 = vmor %vm1204, %vm1205
    %v1207 = vsel %vm1206, %v1198, %v1203
    %v1208 = vrsqrt.pop %v1197
    %v1209 = vmul.f32 %v1208, %v1197
    %v1210 = vmul.f32 %v1209, %v1208
    %v1211 = vmul.f32 0.5, %v1210
    %v1212 = vsub.f32 1.5, %v1211
    %v1213 = vmul.f32 %v1208, %v1212
    %vm1214 = vweird.f32 %v1197
    %vm1215 = vweird.f32 %v1208
    %vm1216 = vmor %vm1214, %vm1215
    %v1217 = vsel %vm1216, %v1208, %v1213
    %v1218 = vmul.f32 %v1184, %v1207
    %v1219 = vmul.f32 %v1185, %v1217
    %v1221 = vperm.slane %v1174, 0
    %v1223 = vmul.f32 %v1218, %v1221
    %v1224 = vmul.f32 %v1219, %v1221
    %v1226 = vperm.slane %v1175, 0
    %v1228 = vadd.f32 %v1223, %v1226
    %v1229 = vadd.f32 %v1224, %v1226
    %v1230 = vpack.c.bf16 %v1229, %v1228
    %v1231 = vld [vmem:[%s35] sm:$0xf]
    %v1232 = vld [vmem:[%s35 + $0x4] sm:$0xf]
    %v1233 = vld [vmem:[%s35 + $0x8] sm:$0xf]
    %v1234 = vld [vmem:[%s35 + $0xc] sm:$0xf]
    %v1235 = vld [vmem:[%s35 + $0x10] sm:$0xf]
    %v1236 = vld [vmem:[%s35 + $0x14] sm:$0xf]
    %v1237 = vld [vmem:[%s35 + $0x18] sm:$0xf]
    %v1238 = vld [vmem:[%s35 + $0x1c] sm:$0xf]
    %v1239 = vld [vmem:[%s35 + $0x20] sm:$0xf]
    %v1240 = vld [vmem:[%s35 + $0x24] sm:$0xf]
    %v1241 = vld [vmem:[%s35 + $0x28] sm:$0xf]
    %v1242 = vld [vmem:[%s35 + $0x2c] sm:$0xf]
    %v1243 = vld [vmem:[%s35 + $0x30] sm:$0xf]
    %v1244 = vld [vmem:[%s35 + $0x34] sm:$0xf]
    %v1245 = vld [vmem:[%s35 + $0x38] sm:$0xf]
    %v1246 = vld [vmem:[%s35 + $0x3c] sm:$0xf]
    %v1247 = vld [vmem:[%s37] sm:$0x1]
    %v1249 = vperm.slane %v1247, 0
    %v1267 = vunpack.c.l.b16 %v1231
    %v1268 = vunpack.c.l.b16 %v1232
    %v1269 = vunpack.c.l.b16 %v1233
    %v1270 = vunpack.c.l.b16 %v1234
    %v1271 = vunpack.c.l.b16 %v1235
    %v1272 = vunpack.c.l.b16 %v1236
    %v1273 = vunpack.c.l.b16 %v1237
    %v1274 = vunpack.c.l.b16 %v1238
    %v1275 = vunpack.c.l.b16 %v1239
    %v1276 = vunpack.c.l.b16 %v1240
    %v1277 = vunpack.c.l.b16 %v1241
    %v1278 = vunpack.c.l.b16 %v1242
    %v1279 = vunpack.c.l.b16 %v1243
    %v1280 = vunpack.c.l.b16 %v1244
    %v1281 = vunpack.c.l.b16 %v1245
    %v1282 = vunpack.c.l.b16 %v1246
    %v1283 = vpack.c.b16 %v1268, %v1267
    %v1284 = vpack.c.b16 %v1270, %v1269
    %v1285 = vpack.c.b16 %v1272, %v1271
    %v1286 = vpack.c.b16 %v1274, %v1273
    %v1287 = vpack.c.b16 %v1276, %v1275
    %v1288 = vpack.c.b16 %v1278, %v1277
    %v1289 = vpack.c.b16 %v1280, %v1279
    %v1290 = vpack.c.b16 %v1282, %v1281
    %1299 = vmatpush.bf16.msra.mxu0 %v1290
    %1300 = vmatpush.bf16.msra.mxu0 %v1289
    %1301 = vmatpush.bf16.msra.mxu0 %v1288
    %1302 = vmatpush.bf16.msra.mxu0 %v1287
    %1303 = vmatpush.bf16.msra.mxu0 %v1286
    %1304 = vmatpush.bf16.msra.mxu0 %v1285
    %1305 = vmatpush.bf16.msra.mxu0 %v1284
    %1306 = vmatpush.bf16.msra.mxu0 %v1283
    %1307 = vmatmul.bf16.gmra.mxu0 %v1230
    %v1308 = vpop.f32.mrf.mxu0
    %v1309 = vadd.f32 %v1249, %v1308
    %v1310 = vpop.f32.mrf.mxu0
    %v1311 = vadd.f32 %v1249, %v1310
    %1312 = vdwg.mxu0
    %v1313 = vld [vmem:[#allocation2] sm:$0xff]
    %v1314 = vld [vmem:[#allocation2 + $0x8] sm:$0xff]
    %v1316 = vsel %vm720, %v1313, 0
    %v1319 = vsel %vm720, %v1314, 0
    %1321 = vmatpush.msra.mxu0 0.0
    %1322 = vmatpush.msra.mxu0 0.0
    %1323 = vmatpush.msra.mxu0 0.0
    %1324 = vmatpush.msra.mxu0 0.0
    %1325 = vmatpush.msra.mxu0 0.0
    %1326 = vmatpush.msra.mxu0 0.0
    %1327 = vmatpush.msra.mxu0 0.0
    %1328 = vmatpush.msra.mxu0 0.0
    %1329 = vmatpush.msra.mxu0 0.0
    %1330 = vmatpush.msra.mxu0 0.0
    %1331 = vmatpush.msra.mxu0 0.0
    %1332 = vmatpush.msra.mxu0 0.0
    %1333 = vmatpush.msra.mxu0 0.0
    %1334 = vmatpush.msra.mxu0 0.0
    %1335 = vmatpush.msra.mxu0 %v1311
    %1336 = vmatpush.msra.mxu0 %v1309
    %1337 = vmatmul.f32.gmra.mxu0 %v1316
    %v1338 = vpop.f32.mrf.mxu0
    %v1339 = vadd.f32 0.0, %v1338
    %1340 = vmatmul.f32.gmra.mxu0 %v1319
    %v1341 = vpop.f32.mrf.mxu0
    %v1342 = vadd.f32 0.0, %v1341
    %1343 = vdwg.mxu0
    %v1344 = vld [vmem:[#allocation28] sm:$0xff]
    %v1345 = vld [vmem:[#allocation28 + $0x8] sm:$0xff]
    %v1346 = vld [vmem:[#allocation28 + $0x10] sm:$0xff]
    %v1347 = vld [vmem:[#allocation28 + $0x18] sm:$0xff]
    %v1348 = vld [vmem:[#allocation29] sm:$0x1]
    %v1350 = vperm.slane %v1348, 0
    %vm1352 = vcmask 261120
    %v1354 = vsel %vm1352, %v1339, 0
    %v1357 = vsel %vm1352, %v1342, 0
    %1359 = vmatpush.msra.mxu0 0.0
    %1360 = vmatpush.msra.mxu0 0.0
    %1361 = vmatpush.msra.mxu0 0.0
    %1362 = vmatpush.msra.mxu0 0.0
    %1363 = vmatpush.msra.mxu0 0.0
    %1364 = vmatpush.msra.mxu0 0.0
    %1365 = vmatpush.msra.mxu0 0.0
    %1366 = vmatpush.msra.mxu0 0.0
    %1367 = vmatpush.msra.mxu0 0.0
    %1368 = vmatpush.msra.mxu0 0.0
    %1369 = vmatpush.msra.mxu0 0.0
    %1370 = vmatpush.msra.mxu0 0.0
    %1371 = vmatpush.msra.mxu0 %v1347
    %1372 = vmatpush.msra.mxu0 %v1346
    %1373 = vmatpush.msra.mxu0 %v1345
    %1374 = vmatpush.msra.mxu0 %v1344
    %1375 = vmatmul.f32.gmra.mxu0 %v1354
    %v1376 = vpop.f32.mrf.mxu0
    %v1377 = vadd.f32 %v1350, %v1376
    %1378 = vmatmul.f32.gmra.mxu0 %v1357
    %v1379 = vpop.f32.mrf.mxu0
    %v1380 = vadd.f32 %v1350, %v1379
    %1381 = vdwg.mxu0
    %v1382 = vld [vmem:[#allocation7] sm:$0xff]
    %v1383 = vld [vmem:[#allocation7 + $0x8] sm:$0xff]
    %v1385 = vsel %vm720, %v1382, 0
    %v1388 = vsel %vm720, %v1383, 0
    %1390 = vmatpush.msra.mxu0 0.0
    %1391 = vmatpush.msra.mxu0 0.0
    %1392 = vmatpush.msra.mxu0 0.0
    %1393 = vmatpush.msra.mxu0 0.0
    %1394 = vmatpush.msra.mxu0 0.0
    %1395 = vmatpush.msra.mxu0 0.0
    %1396 = vmatpush.msra.mxu0 0.0
    %1397 = vmatpush.msra.mxu0 0.0
    %1398 = vmatpush.msra.mxu0 0.0
    %1399 = vmatpush.msra.mxu0 0.0
    %1400 = vmatpush.msra.mxu0 0.0
    %1401 = vmatpush.msra.mxu0 0.0
    %1402 = vmatpush.msra.mxu0 0.0
    %1403 = vmatpush.msra.mxu0 0.0
    %1404 = vmatpush.msra.mxu0 %v1342
    %1405 = vmatpush.msra.mxu0 %v1339
    %1406 = vmatmul.f32.gmra.mxu0 %v1385
    %v1407 = vpop.f32.mrf.mxu0
    %v1408 = vadd.f32 0.0, %v1407
    %1409 = vmatmul.f32.gmra.mxu0 %v1388
    %v1410 = vpop.f32.mrf.mxu0
    %v1411 = vadd.f32 0.0, %v1410
    %1412 = vdwg.mxu0
    %v1413 = vld [vmem:[#allocation26] sm:$0xff]
    %v1414 = vld [vmem:[#allocation26 + $0x8] sm:$0xff]
    %v1415 = vld [vmem:[#allocation26 + $0x10] sm:$0xff]
    %v1416 = vld [vmem:[#allocation26 + $0x18] sm:$0xff]
    %v1418 = vsel %vm1352, %v1408, 0
    %v1421 = vsel %vm1352, %v1411, 0
    %1423 = vmatpush.msra.mxu0 0.0
    %1424 = vmatpush.msra.mxu0 0.0
    %1425 = vmatpush.msra.mxu0 0.0
    %1426 = vmatpush.msra.mxu0 0.0
    %1427 = vmatpush.msra.mxu0 0.0
    %1428 = vmatpush.msra.mxu0 0.0
    %1429 = vmatpush.msra.mxu0 0.0
    %1430 = vmatpush.msra.mxu0 0.0
    %1431 = vmatpush.msra.mxu0 0.0
    %1432 = vmatpush.msra.mxu0 0.0
    %1433 = vmatpush.msra.mxu0 0.0
    %1434 = vmatpush.msra.mxu0 0.0
    %1435 = vmatpush.msra.mxu0 %v1416
    %1436 = vmatpush.msra.mxu0 %v1415
    %1437 = vmatpush.msra.mxu0 %v1414
    %1438 = vmatpush.msra.mxu0 %v1413
    %1439 = vmatmul.f32.gmra.mxu0 %v1418
    %v1440 = vpop.f32.mrf.mxu0
    %v1441 = vadd.f32 0.0, %v1440
    %1442 = vmatmul.f32.gmra.mxu0 %v1421
    %v1443 = vpop.f32.mrf.mxu0
    %v1444 = vadd.f32 0.0, %v1443
    %1445 = vdwg.mxu0
    %v1446 = vadd.f32 %v1377, %v1441
    %v1447 = vadd.f32 %v1380, %v1444
    %s1448 = scalar_lea.vmem [#allocation7], 16
    %v1449 = vld [vmem:[%s1448] sm:$0xff]
    %v1450 = vld [vmem:[%s1448 + $0x8] sm:$0xff]
    %v1452 = vsel %vm720, %v1449, 0
    %v1455 = vsel %vm720, %v1450, 0
    %1457 = vmatpush.msra.mxu0 0.0
    %1458 = vmatpush.msra.mxu0 0.0
    %1459 = vmatpush.msra.mxu0 0.0
    %1460 = vmatpush.msra.mxu0 0.0
    %1461 = vmatpush.msra.mxu0 0.0
    %1462 = vmatpush.msra.mxu0 0.0
    %1463 = vmatpush.msra.mxu0 0.0
    %1464 = vmatpush.msra.mxu0 0.0
    %1465 = vmatpush.msra.mxu0 0.0
    %1466 = vmatpush.msra.mxu0 0.0
    %1467 = vmatpush.msra.mxu0 0.0
    %1468 = vmatpush.msra.mxu0 0.0
    %1469 = vmatpush.msra.mxu0 0.0
    %1470 = vmatpush.msra.mxu0 0.0
    %1471 = vmatpush.msra.mxu0 %v1342
    %1472 = vmatpush.msra.mxu0 %v1339
    %1473 = vmatmul.f32.gmra.mxu0 %v1452
    %v1474 = vpop.f32.mrf.mxu0
    %v1475 = vadd.f32 0.0, %v1474
    %1476 = vmatmul.f32.gmra.mxu0 %v1455
    %v1477 = vpop.f32.mrf.mxu0
    %v1478 = vadd.f32 0.0, %v1477
    %1479 = vdwg.mxu0
    %s1480 = scalar_lea.vmem [#allocation26], 32
    %v1481 = vld [vmem:[%s1480] sm:$0xff]
    %v1482 = vld [vmem:[%s1480 + $0x8] sm:$0xff]
    %v1483 = vld [vmem:[%s1480 + $0x10] sm:$0xff]
    %v1484 = vld [vmem:[%s1480 + $0x18] sm:$0xff]
    %v1486 = vsel %vm1352, %v1475, 0
    %v1489 = vsel %vm1352, %v1478, 0
    %1491 = vmatpush.msra.mxu0 0.0
    %1492 = vmatpush.msra.mxu0 0.0
    %1493 = vmatpush.msra.mxu0 0.0
    %1494 = vmatpush.msra.mxu0 0.0
    %1495 = vmatpush.msra.mxu0 0.0
    %1496 = vmatpush.msra.mxu0 0.0
    %1497 = vmatpush.msra.mxu0 0.0
    %1498 = vmatpush.msra.mxu0 0.0
    %1499 = vmatpush.msra.mxu0 0.0
    %1500 = vmatpush.msra.mxu0 0.0
    %1501 = vmatpush.msra.mxu0 0.0
    %1502 = vmatpush.msra.mxu0 0.0
    %1503 = vmatpush.msra.mxu0 %v1484
    %1504 = vmatpush.msra.mxu0 %v1483
    %1505 = vmatpush.msra.mxu0 %v1482
    %1506 = vmatpush.msra.mxu0 %v1481
    %1507 = vmatmul.f32.gmra.mxu0 %v1486
    %v1508 = vpop.f32.mrf.mxu0
    %v1509 = vadd.f32 0.0, %v1508
    %1510 = vmatmul.f32.gmra.mxu0 %v1489
    %v1511 = vpop.f32.mrf.mxu0
    %v1512 = vadd.f32 0.0, %v1511
    %1513 = vdwg.mxu0
    %v1514 = vadd.f32 %v1446, %v1509
    %v1515 = vadd.f32 %v1447, %v1512
    %s1516 = scalar_lea.vmem [#allocation7], 32
    %v1517 = vld [vmem:[%s1516] sm:$0xff]
    %v1518 = vld [vmem:[%s1516 + $0x8] sm:$0xff]
    %v1520 = vsel %vm720, %v1517, 0
    %v1523 = vsel %vm720, %v1518, 0
    %1525 = vmatpush.msra.mxu0 0.0
    %1526 = vmatpush.msra.mxu0 0.0
    %1527 = vmatpush.msra.mxu0 0.0
    %1528 = vmatpush.msra.mxu0 0.0
    %1529 = vmatpush.msra.mxu0 0.0
    %1530 = vmatpush.msra.mxu0 0.0
    %1531 = vmatpush.msra.mxu0 0.0
    %1532 = vmatpush.msra.mxu0 0.0
    %1533 = vmatpush.msra.mxu0 0.0
    %1534 = vmatpush.msra.mxu0 0.0
    %1535 = vmatpush.msra.mxu0 0.0
    %1536 = vmatpush.msra.mxu0 0.0
    %1537 = vmatpush.msra.mxu0 0.0
    %1538 = vmatpush.msra.mxu0 0.0
    %1539 = vmatpush.msra.mxu0 %v1342
    %1540 = vmatpush.msra.mxu0 %v1339
    %1541 = vmatmul.f32.gmra.mxu0 %v1520
    %v1542 = vpop.f32.mrf.mxu0
    %v1543 = vadd.f32 0.0, %v1542
    %1544 = vmatmul.f32.gmra.mxu0 %v1523
    %v1545 = vpop.f32.mrf.mxu0
    %v1546 = vadd.f32 0.0, %v1545
    %1547 = vdwg.mxu0
    %s1548 = scalar_lea.vmem [#allocation26], 64
    %v1549 = vld [vmem:[%s1548] sm:$0xff]
    %v1550 = vld [vmem:[%s1548 + $0x8] sm:$0xff]
    %v1551 = vld [vmem:[%s1548 + $0x10] sm:$0xff]
    %v1552 = vld [vmem:[%s1548 + $0x18] sm:$0xff]
    %v1554 = vsel %vm1352, %v1543, 0
    %v1557 = vsel %vm1352, %v1546, 0
    %1559 = vmatpush.msra.mxu0 0.0
    %1560 = vmatpush.msra.mxu0 0.0
    %1561 = vmatpush.msra.mxu0 0.0
    %1562 = vmatpush.msra.mxu0 0.0
    %1563 = vmatpush.msra.mxu0 0.0
    %1564 = vmatpush.msra.mxu0 0.0
    %1565 = vmatpush.msra.mxu0 0.0
    %1566 = vmatpush.msra.mxu0 0.0
    %1567 = vmatpush.msra.mxu0 0.0
    %1568 = vmatpush.msra.mxu0 0.0
    %1569 = vmatpush.msra.mxu0 0.0
    %1570 = vmatpush.msra.mxu0 0.0
    %1571 = vmatpush.msra.mxu0 %v1552
    %1572 = vmatpush.msra.mxu0 %v1551
    %1573 = vmatpush.msra.mxu0 %v1550
    %1574 = vmatpush.msra.mxu0 %v1549
    %1575 = vmatmul.f32.gmra.mxu0 %v1554
    %v1576 = vpop.f32.mrf.mxu0
    %v1577 = vadd.f32 0.0, %v1576
    %1578 = vmatmul.f32.gmra.mxu0 %v1557
    %v1579 = vpop.f32.mrf.mxu0
    %v1580 = vadd.f32 0.0, %v1579
    %1581 = vdwg.mxu0
    %v1582 = vadd.f32 %v1514, %v1577
    %v1583 = vadd.f32 %v1515, %v1580
    %s1584 = scalar_lea.vmem [#allocation7], 48
    %v1585 = vld [vmem:[%s1584] sm:$0xff]
    %v1586 = vld [vmem:[%s1584 + $0x8] sm:$0xff]
    %v1588 = vsel %vm720, %v1585, 0
    %v1591 = vsel %vm720, %v1586, 0
    %1593 = vmatpush.msra.mxu0 0.0
    %1594 = vmatpush.msra.mxu0 0.0
    %1595 = vmatpush.msra.mxu0 0.0
    %1596 = vmatpush.msra.mxu0 0.0
    %1597 = vmatpush.msra.mxu0 0.0
    %1598 = vmatpush.msra.mxu0 0.0
    %1599 = vmatpush.msra.mxu0 0.0
    %1600 = vmatpush.msra.mxu0 0.0
    %1601 = vmatpush.msra.mxu0 0.0
    %1602 = vmatpush.msra.mxu0 0.0
    %1603 = vmatpush.msra.mxu0 0.0
    %1604 = vmatpush.msra.mxu0 0.0
    %1605 = vmatpush.msra.mxu0 0.0
    %1606 = vmatpush.msra.mxu0 0.0
    %1607 = vmatpush.msra.mxu0 %v1342
    %1608 = vmatpush.msra.mxu0 %v1339
    %1609 = vmatmul.f32.gmra.mxu0 %v1588
    %v1610 = vpop.f32.mrf.mxu0
    %v1611 = vadd.f32 0.0, %v1610
    %1612 = vmatmul.f32.gmra.mxu0 %v1591
    %v1613 = vpop.f32.mrf.mxu0
    %v1614 = vadd.f32 0.0, %v1613
    %1615 = vdwg.mxu0
    %s1616 = scalar_lea.vmem [#allocation26], 96
    %v1617 = vld [vmem:[%s1616] sm:$0xff]
    %v1618 = vld [vmem:[%s1616 + $0x8] sm:$0xff]
    %v1619 = vld [vmem:[%s1616 + $0x10] sm:$0xff]
    %v1620 = vld [vmem:[%s1616 + $0x18] sm:$0xff]
    %v1622 = vsel %vm1352, %v1611, 0
    %v1625 = vsel %vm1352, %v1614, 0
    %1627 = vmatpush.msra.mxu0 0.0
    %1628 = vmatpush.msra.mxu0 0.0
    %1629 = vmatpush.msra.mxu0 0.0
    %1630 = vmatpush.msra.mxu0 0.0
    %1631 = vmatpush.msra.mxu0 0.0
    %1632 = vmatpush.msra.mxu0 0.0
    %1633 = vmatpush.msra.mxu0 0.0
    %1634 = vmatpush.msra.mxu0 0.0
    %1635 = vmatpush.msra.mxu0 0.0
    %1636 = vmatpush.msra.mxu0 0.0
    %1637 = vmatpush.msra.mxu0 0.0
    %1638 = vmatpush.msra.mxu0 0.0
    %1639 = vmatpush.msra.mxu0 %v1620
    %1640 = vmatpush.msra.mxu0 %v1619
    %1641 = vmatpush.msra.mxu0 %v1618
    %1642 = vmatpush.msra.mxu0 %v1617
    %1643 = vmatmul.f32.gmra.mxu0 %v1622
    %v1644 = vpop.f32.mrf.mxu0
    %v1645 = vadd.f32 0.0, %v1644
    %1646 = vmatmul.f32.gmra.mxu0 %v1625
    %v1647 = vpop.f32.mrf.mxu0
    %v1648 = vadd.f32 0.0, %v1647
    %1649 = vdwg.mxu0
    %v1650 = vadd.f32 %v1582, %v1645
    %v1651 = vadd.f32 %v1583, %v1648
    %s1652 = scalar_lea.vmem [#allocation7], 64
    %v1653 = vld [vmem:[%s1652] sm:$0xff]
    %v1654 = vld [vmem:[%s1652 + $0x8] sm:$0xff]
    %v1656 = vsel %vm720, %v1653, 0
    %v1659 = vsel %vm720, %v1654, 0
    %1661 = vmatpush.msra.mxu0 0.0
    %1662 = vmatpush.msra.mxu0 0.0
    %1663 = vmatpush.msra.mxu0 0.0
    %1664 = vmatpush.msra.mxu0 0.0
    %1665 = vmatpush.msra.mxu0 0.0
    %1666 = vmatpush.msra.mxu0 0.0
    %1667 = vmatpush.msra.mxu0 0.0
    %1668 = vmatpush.msra.mxu0 0.0
    %1669 = vmatpush.msra.mxu0 0.0
    %1670 = vmatpush.msra.mxu0 0.0
    %1671 = vmatpush.msra.mxu0 0.0
    %1672 = vmatpush.msra.mxu0 0.0
    %1673 = vmatpush.msra.mxu0 0.0
    %1674 = vmatpush.msra.mxu0 0.0
    %1675 = vmatpush.msra.mxu0 %v1342
    %1676 = vmatpush.msra.mxu0 %v1339
    %1677 = vmatmul.f32.gmra.mxu0 %v1656
    %v1678 = vpop.f32.mrf.mxu0
    %v1679 = vadd.f32 0.0, %v1678
    %1680 = vmatmul.f32.gmra.mxu0 %v1659
    %v1681 = vpop.f32.mrf.mxu0
    %v1682 = vadd.f32 0.0, %v1681
    %1683 = vdwg.mxu0
    %s1684 = scalar_lea.vmem [#allocation26], 128
    %v1685 = vld [vmem:[%s1684] sm:$0xff]
    %v1686 = vld [vmem:[%s1684 + $0x8] sm:$0xff]
    %v1687 = vld [vmem:[%s1684 + $0x10] sm:$0xff]
    %v1688 = vld [vmem:[%s1684 + $0x18] sm:$0xff]
    %v1690 = vsel %vm1352, %v1679, 0
    %v1693 = vsel %vm1352, %v1682, 0
    %1695 = vmatpush.msra.mxu0 0.0
    %1696 = vmatpush.msra.mxu0 0.0
    %1697 = vmatpush.msra.mxu0 0.0
    %1698 = vmatpush.msra.mxu0 0.0
    %1699 = vmatpush.msra.mxu0 0.0
    %1700 = vmatpush.msra.mxu0 0.0
    %1701 = vmatpush.msra.mxu0 0.0
    %1702 = vmatpush.msra.mxu0 0.0
    %1703 = vmatpush.msra.mxu0 0.0
    %1704 = vmatpush.msra.mxu0 0.0
    %1705 = vmatpush.msra.mxu0 0.0
    %1706 = vmatpush.msra.mxu0 0.0
    %1707 = vmatpush.msra.mxu0 %v1688
    %1708 = vmatpush.msra.mxu0 %v1687
    %1709 = vmatpush.msra.mxu0 %v1686
    %1710 = vmatpush.msra.mxu0 %v1685
    %1711 = vmatmul.f32.gmra.mxu0 %v1690
    %v1712 = vpop.f32.mrf.mxu0
    %v1713 = vadd.f32 0.0, %v1712
    %1714 = vmatmul.f32.gmra.mxu0 %v1693
    %v1715 = vpop.f32.mrf.mxu0
    %v1716 = vadd.f32 0.0, %v1715
    %1717 = vdwg.mxu0
    %v1718 = vadd.f32 %v1650, %v1713
    %v1719 = vadd.f32 %v1651, %v1716
    %s1720 = scalar_lea.vmem [#allocation7], 80
    %v1721 = vld [vmem:[%s1720] sm:$0xff]
    %v1722 = vld [vmem:[%s1720 + $0x8] sm:$0xff]
    %v1724 = vsel %vm720, %v1721, 0
    %v1727 = vsel %vm720, %v1722, 0
    %1729 = vmatpush.msra.mxu0 0.0
    %1730 = vmatpush.msra.mxu0 0.0
    %1731 = vmatpush.msra.mxu0 0.0
    %1732 = vmatpush.msra.mxu0 0.0
    %1733 = vmatpush.msra.mxu0 0.0
    %1734 = vmatpush.msra.mxu0 0.0
    %1735 = vmatpush.msra.mxu0 0.0
    %1736 = vmatpush.msra.mxu0 0.0
    %1737 = vmatpush.msra.mxu0 0.0
    %1738 = vmatpush.msra.mxu0 0.0
    %1739 = vmatpush.msra.mxu0 0.0
    %1740 = vmatpush.msra.mxu0 0.0
    %1741 = vmatpush.msra.mxu0 0.0
    %1742 = vmatpush.msra.mxu0 0.0
    %1743 = vmatpush.msra.mxu0 %v1342
    %1744 = vmatpush.msra.mxu0 %v1339
    %1745 = vmatmul.f32.gmra.mxu0 %v1724
    %v1746 = vpop.f32.mrf.mxu0
    %v1747 = vadd.f32 0.0, %v1746
    %1748 = vmatmul.f32.gmra.mxu0 %v1727
    %v1749 = vpop.f32.mrf.mxu0
    %v1750 = vadd.f32 0.0, %v1749
    %1751 = vdwg.mxu0
    %s1752 = scalar_lea.vmem [#allocation26], 160
    %v1753 = vld [vmem:[%s1752] sm:$0xff]
    %v1754 = vld [vmem:[%s1752 + $0x8] sm:$0xff]
    %v1755 = vld [vmem:[%s1752 + $0x10] sm:$0xff]
    %v1756 = vld [vmem:[%s1752 + $0x18] sm:$0xff]
    %v1758 = vsel %vm1352, %v1747, 0
    %v1761 = vsel %vm1352, %v1750, 0
    %1763 = vmatpush.msra.mxu0 0.0
    %1764 = vmatpush.msra.mxu0 0.0
    %1765 = vmatpush.msra.mxu0 0.0
    %1766 = vmatpush.msra.mxu0 0.0
    %1767 = vmatpush.msra.mxu0 0.0
    %1768 = vmatpush.msra.mxu0 0.0
    %1769 = vmatpush.msra.mxu0 0.0
    %1770 = vmatpush.msra.mxu0 0.0
    %1771 = vmatpush.msra.mxu0 0.0
    %1772 = vmatpush.msra.mxu0 0.0
    %1773 = vmatpush.msra.mxu0 0.0
    %1774 = vmatpush.msra.mxu0 0.0
    %1775 = vmatpush.msra.mxu0 %v1756
    %1776 = vmatpush.msra.mxu0 %v1755
    %1777 = vmatpush.msra.mxu0 %v1754
    %1778 = vmatpush.msra.mxu0 %v1753
    %1779 = vmatmul.f32.gmra.mxu0 %v1758
    %v1780 = vpop.f32.mrf.mxu0
    %v1781 = vadd.f32 0.0, %v1780
    %1782 = vmatmul.f32.gmra.mxu0 %v1761
    %v1783 = vpop.f32.mrf.mxu0
    %v1784 = vadd.f32 0.0, %v1783
    %1785 = vdwg.mxu0
    %v1786 = vadd.f32 %v1718, %v1781
    %v1787 = vadd.f32 %v1719, %v1784
    %s1788 = scalar_lea.vmem [#allocation7], 96
    %v1789 = vld [vmem:[%s1788] sm:$0xff]
    %v1790 = vld [vmem:[%s1788 + $0x8] sm:$0xff]
    %v1792 = vsel %vm720, %v1789, 0
    %v1795 = vsel %vm720, %v1790, 0
    %1797 = vmatpush.msra.mxu0 0.0
    %1798 = vmatpush.msra.mxu0 0.0
    %1799 = vmatpush.msra.mxu0 0.0
    %1800 = vmatpush.msra.mxu0 0.0
    %1801 = vmatpush.msra.mxu0 0.0
    %1802 = vmatpush.msra.mxu0 0.0
    %1803 = vmatpush.msra.mxu0 0.0
    %1804 = vmatpush.msra.mxu0 0.0
    %1805 = vmatpush.msra.mxu0 0.0
    %1806 = vmatpush.msra.mxu0 0.0
    %1807 = vmatpush.msra.mxu0 0.0
    %1808 = vmatpush.msra.mxu0 0.0
    %1809 = vmatpush.msra.mxu0 0.0
    %1810 = vmatpush.msra.mxu0 0.0
    %1811 = vmatpush.msra.mxu0 %v1342
    %1812 = vmatpush.msra.mxu0 %v1339
    %1813 = vmatmul.f32.gmra.mxu0 %v1792
    %v1814 = vpop.f32.mrf.mxu0
    %v1815 = vadd.f32 0.0, %v1814
    %1816 = vmatmul.f32.gmra.mxu0 %v1795
    %v1817 = vpop.f32.mrf.mxu0
    %v1818 = vadd.f32 0.0, %v1817
    %1819 = vdwg.mxu0
    %s1820 = scalar_lea.vmem [#allocation26], 192
    %v1821 = vld [vmem:[%s1820] sm:$0xff]
    %v1822 = vld [vmem:[%s1820 + $0x8] sm:$0xff]
    %v1823 = vld [vmem:[%s1820 + $0x10] sm:$0xff]
    %v1824 = vld [vmem:[%s1820 + $0x18] sm:$0xff]
    %v1826 = vsel %vm1352, %v1815, 0
    %v1829 = vsel %vm1352, %v1818, 0
    %1831 = vmatpush.msra.mxu0 0.0
    %1832 = vmatpush.msra.mxu0 0.0
    %1833 = vmatpush.msra.mxu0 0.0
    %1834 = vmatpush.msra.mxu0 0.0
    %1835 = vmatpush.msra.mxu0 0.0
    %1836 = vmatpush.msra.mxu0 0.0
    %1837 = vmatpush.msra.mxu0 0.0
    %1838 = vmatpush.msra.mxu0 0.0
    %1839 = vmatpush.msra.mxu0 0.0
    %1840 = vmatpush.msra.mxu0 0.0
    %1841 = vmatpush.msra.mxu0 0.0
    %1842 = vmatpush.msra.mxu0 0.0
    %1843 = vmatpush.msra.mxu0 %v1824
    %1844 = vmatpush.msra.mxu0 %v1823
    %1845 = vmatpush.msra.mxu0 %v1822
    %1846 = vmatpush.msra.mxu0 %v1821
    %1847 = vmatmul.f32.gmra.mxu0 %v1826
    %v1848 = vpop.f32.mrf.mxu0
    %v1849 = vadd.f32 0.0, %v1848
    %1850 = vmatmul.f32.gmra.mxu0 %v1829
    %v1851 = vpop.f32.mrf.mxu0
    %v1852 = vadd.f32 0.0, %v1851
    %1853 = vdwg.mxu0
    %v1854 = vadd.f32 %v1786, %v1849
    %v1855 = vadd.f32 %v1787, %v1852
    %s1856 = scalar_lea.vmem [#allocation7], 112
    %v1857 = vld [vmem:[%s1856] sm:$0xff]
    %v1858 = vld [vmem:[%s1856 + $0x8] sm:$0xff]
    %v1860 = vsel %vm720, %v1857, 0
    %v1863 = vsel %vm720, %v1858, 0
    %1865 = vmatpush.msra.mxu0 0.0
    %1866 = vmatpush.msra.mxu0 0.0
    %1867 = vmatpush.msra.mxu0 0.0
    %1868 = vmatpush.msra.mxu0 0.0
    %1869 = vmatpush.msra.mxu0 0.0
    %1870 = vmatpush.msra.mxu0 0.0
    %1871 = vmatpush.msra.mxu0 0.0
    %1872 = vmatpush.msra.mxu0 0.0
    %1873 = vmatpush.msra.mxu0 0.0
    %1874 = vmatpush.msra.mxu0 0.0
    %1875 = vmatpush.msra.mxu0 0.0
    %1876 = vmatpush.msra.mxu0 0.0
    %1877 = vmatpush.msra.mxu0 0.0
    %1878 = vmatpush.msra.mxu0 0.0
    %1879 = vmatpush.msra.mxu0 %v1342
    %1880 = vmatpush.msra.mxu0 %v1339
    %1881 = vmatmul.f32.gmra.mxu0 %v1860
    %v1882 = vpop.f32.mrf.mxu0
    %v1883 = vadd.f32 0.0, %v1882
    %1884 = vmatmul.f32.gmra.mxu0 %v1863
    %v1885 = vpop.f32.mrf.mxu0
    %v1886 = vadd.f32 0.0, %v1885
    %1887 = vdwg.mxu0
    %s1888 = scalar_lea.vmem [#allocation26], 224
    %v1889 = vld [vmem:[%s1888] sm:$0xff]
    %v1890 = vld [vmem:[%s1888 + $0x8] sm:$0xff]
    %v1891 = vld [vmem:[%s1888 + $0x10] sm:$0xff]
    %v1892 = vld [vmem:[%s1888 + $0x18] sm:$0xff]
    %v1894 = vsel %vm1352, %v1883, 0
    %v1897 = vsel %vm1352, %v1886, 0
    %1899 = vmatpush.msra.mxu0 0.0
    %1900 = vmatpush.msra.mxu0 0.0
    %1901 = vmatpush.msra.mxu0 0.0
    %1902 = vmatpush.msra.mxu0 0.0
    %1903 = vmatpush.msra.mxu0 0.0
    %1904 = vmatpush.msra.mxu0 0.0
    %1905 = vmatpush.msra.mxu0 0.0
    %1906 = vmatpush.msra.mxu0 0.0
    %1907 = vmatpush.msra.mxu0 0.0
    %1908 = vmatpush.msra.mxu0 0.0
    %1909 = vmatpush.msra.mxu0 0.0
    %1910 = vmatpush.msra.mxu0 0.0
    %1911 = vmatpush.msra.mxu0 %v1892
    %1912 = vmatpush.msra.mxu0 %v1891
    %1913 = vmatpush.msra.mxu0 %v1890
    %1914 = vmatpush.msra.mxu0 %v1889
    %1915 = vmatmul.f32.gmra.mxu0 %v1894
    %v1916 = vpop.f32.mrf.mxu0
    %v1917 = vadd.f32 0.0, %v1916
    %1918 = vmatmul.f32.gmra.mxu0 %v1897
    %v1919 = vpop.f32.mrf.mxu0
    %v1920 = vadd.f32 0.0, %v1919
    %1921 = vdwg.mxu0
    %v1922 = vadd.f32 %v1854, %v1917
    %v1923 = vadd.f32 %v1855, %v1920
    %v1924 = vld [vmem:[#allocation31] sm:$0xff]
    %v1925 = vld [vmem:[#allocation31 + $0x8] sm:$0xff]
    %v1926 = vld [vmem:[#allocation31 + $0x10] sm:$0xff]
    %v1927 = vld [vmem:[#allocation31 + $0x18] sm:$0xff]
    %v1928 = vld [vmem:[#allocation31 + $0x20] sm:$0xff]
    %v1929 = vld [vmem:[#allocation31 + $0x28] sm:$0xff]
    %v1930 = vld [vmem:[#allocation31 + $0x30] sm:$0xff]
    %v1931 = vld [vmem:[#allocation31 + $0x38] sm:$0xff]
    %v1932 = vld [vmem:[#allocation31 + $0x40] sm:$0xff]
    %v1933 = vld [vmem:[#allocation31 + $0x48] sm:$0xff]
    %v1934 = vld [vmem:[#allocation31 + $0x50] sm:$0xff]
    %v1935 = vld [vmem:[#allocation31 + $0x58] sm:$0xff]
    %v1936 = vld [vmem:[%s47] sm:$0x7]
    %v1938 = vperm.slane %v1936, 0
    %v1939 = vperm.slane %v1936, 1
    %v1940 = vperm.slane %v1936, 2
    %v1945 = vsel %vm1352, %v1922, 0
    %v1948 = vsel %vm1352, %v1923, 0
    %1950 = vmatpush.msra.mxu0 0.0
    %1951 = vmatpush.msra.mxu0 0.0
    %1952 = vmatpush.msra.mxu0 0.0
    %1953 = vmatpush.msra.mxu0 0.0
    %1954 = vmatpush.msra.mxu0 0.0
    %1955 = vmatpush.msra.mxu0 0.0
    %1956 = vmatpush.msra.mxu0 0.0
    %1957 = vmatpush.msra.mxu0 0.0
    %1958 = vmatpush.msra.mxu0 0.0
    %1959 = vmatpush.msra.mxu0 0.0
    %1960 = vmatpush.msra.mxu0 0.0
    %1961 = vmatpush.msra.mxu0 0.0
    %1962 = vmatpush.msra.mxu0 %v1933
    %1963 = vmatpush.msra.mxu0 %v1930
    %1964 = vmatpush.msra.mxu0 %v1927
    %1965 = vmatpush.msra.mxu0 %v1924
    %1966 = vmatmul.f32.gmra.mxu0 %v1945
    %v1967 = vpop.f32.mrf.mxu0
    %v1968 = vadd.f32 %v1938, %v1967
    %1969 = vmatmul.f32.gmra.mxu0 %v1948
    %v1970 = vpop.f32.mrf.mxu0
    %v1971 = vadd.f32 %v1938, %v1970
    %1972 = vdwg.mxu0
    %1973 = vmatpush.msra.mxu0 0.0
    %1974 = vmatpush.msra.mxu0 0.0
    %1975 = vmatpush.msra.mxu0 0.0
    %1976 = vmatpush.msra.mxu0 0.0
    %1977 = vmatpush.msra.mxu0 0.0
    %1978 = vmatpush.msra.mxu0 0.0
    %1979 = vmatpush.msra.mxu0 0.0
    %1980 = vmatpush.msra.mxu0 0.0
    %1981 = vmatpush.msra.mxu0 0.0
    %1982 = vmatpush.msra.mxu0 0.0
    %1983 = vmatpush.msra.mxu0 0.0
    %1984 = vmatpush.msra.mxu0 0.0
    %1985 = vmatpush.msra.mxu0 %v1934
    %1986 = vmatpush.msra.mxu0 %v1931
    %1987 = vmatpush.msra.mxu0 %v1928
    %1988 = vmatpush.msra.mxu0 %v1925
    %1989 = vmatmul.f32.gmra.mxu0 %v1945
    %v1990 = vpop.f32.mrf.mxu0
    %v1991 = vadd.f32 %v1939, %v1990
    %1992 = vmatmul.f32.gmra.mxu0 %v1948
    %v1993 = vpop.f32.mrf.mxu0
    %v1994 = vadd.f32 %v1939, %v1993
    %1995 = vdwg.mxu0
    %1996 = vmatpush.msra.mxu0 0.0
    %1997 = vmatpush.msra.mxu0 0.0
    %1998 = vmatpush.msra.mxu0 0.0
    %1999 = vmatpush.msra.mxu0 0.0
    %2000 = vmatpush.msra.mxu0 0.0
    %2001 = vmatpush.msra.mxu0 0.0
    %2002 = vmatpush.msra.mxu0 0.0
    %2003 = vmatpush.msra.mxu0 0.0
    %2004 = vmatpush.msra.mxu0 0.0
    %2005 = vmatpush.msra.mxu0 0.0
    %2006 = vmatpush.msra.mxu0 0.0
    %2007 = vmatpush.msra.mxu0 0.0
    %2008 = vmatpush.msra.mxu0 %v1935
    %2009 = vmatpush.msra.mxu0 %v1932
    %2010 = vmatpush.msra.mxu0 %v1929
    %2011 = vmatpush.msra.mxu0 %v1926
    %2012 = vmatmul.f32.gmra.mxu0 %v1945
    %v2013 = vpop.f32.mrf.mxu0
    %v2014 = vadd.f32 %v1940, %v2013
    %2015 = vmatmul.f32.gmra.mxu0 %v1948
    %v2016 = vpop.f32.mrf.mxu0
    %v2017 = vadd.f32 %v1940, %v2016
    %2018 = vdwg.mxu0
    %v2019 = vld [vmem:[#allocation8] sm:$0xff]
    %v2020 = vld [vmem:[#allocation8 + $0x8] sm:$0xff]
    %v2021 = vmul.f32 %v1968, %v468
    %v2022 = vmul.f32 %v1971, %v468
    %2023 = vmatpush.xpose.msra.mxu0 0.0
    %2024 = vmatpush.xpose.msra.mxu0 0.0
    %2025 = vmatpush.xpose.msra.mxu0 0.0
    %2026 = vmatpush.xpose.msra.mxu0 0.0
    %2027 = vmatpush.xpose.msra.mxu0 0.0
    %2028 = vmatpush.xpose.msra.mxu0 0.0
    %2029 = vmatpush.xpose.msra.mxu0 0.0
    %2030 = vmatpush.xpose.msra.mxu0 0.0
    %2031 = vmatpush.xpose.msra.mxu0 0.0
    %2032 = vmatpush.xpose.msra.mxu0 0.0
    %2033 = vmatpush.xpose.msra.mxu0 0.0
    %2034 = vmatpush.xpose.msra.mxu0 0.0
    %2035 = vmatpush.xpose.msra.mxu0 0.0
    %2036 = vmatpush.xpose.msra.mxu0 0.0
    %2037 = vmatpush.xpose.msra.mxu0 %v1994
    %2038 = vmatpush.xpose.msra.mxu0 %v1991
    %2039 = vmatmul.f32.gmra.mxu0 %v2021
    %v2040 = vpop.f32.mrf.mxu0
    %v2041 = vadd.f32 0.0, %v2040
    %2042 = vmatmul.f32.gmra.mxu0 %v2022
    %v2043 = vpop.f32.mrf.mxu0
    %v2044 = vadd.f32 0.0, %v2043
    %2045 = vdwg.mxu0
    %v2046 = vmul.f32 %v2041, 0.17677669
    %v2047 = vmul.f32 %v2044, 0.17677669
    %vm2048 = vcmp.gt.f32.partialorder %v2019, 0.0
    %vm2049 = vcmp.gt.f32.partialorder %v2020, 0.0
    %v2050 = vsel %vm2048, %v2046, -1e+30
    %v2051 = vsel %vm2049, %v2047, -1e+30
    %v2052 = vsel %vm720, %v2050, -inf
    %2053 = vmax.xlane.f32.xlu0 %v2052
    %v2054 = vpop.xlane.xlu0 %2053
    %v2055 = vsel %vm720, %v2051, -inf
    %2056 = vmax.xlane.f32.xlu0 %v2055
    %v2057 = vpop.xlane.xlu0 %2056
    %v2058 = vsub.f32 %v2050, %v2054
    %v2059 = vsub.f32 %v2051, %v2057
    %v2060 = vmul.f32 %v2058, 1.442695
    %v2061 = vpow.pop %v2060
    %v2062 = vmul.f32 %v2059, 1.442695
    %v2063 = vpow.pop %v2062
    %v2064 = vsel %vm720, %v2061, 0.0
    %2065 = vadd.xlane.f32.xlu0 %v2064
    %v2066 = vpop.xlane.xlu0 %2065
    %v2067 = vsel %vm720, %v2063, 0.0
    %2068 = vadd.xlane.f32.xlu0 %v2067
    %v2069 = vpop.xlane.xlu0 %2068
    %v2070 = vrcp.pop %v2066
    %v2071 = vrcp.pop %v2069
    %v2072 = vmul.f32 %v2061, %v2070
    %v2073 = vmul.f32 %v2063, %v2071
    %v2074 = vmul.f32 %v2014, %v468
    %v2075 = vmul.f32 %v2017, %v468
    %v2076 = vmul.f32 %v1968, %v473
    %v2077 = vmul.f32 %v1971, %v473
    %2078 = vmatpush.xpose.msra.mxu0 0.0
    %2079 = vmatpush.xpose.msra.mxu0 0.0
    %2080 = vmatpush.xpose.msra.mxu0 0.0
    %2081 = vmatpush.xpose.msra.mxu0 0.0
    %2082 = vmatpush.xpose.msra.mxu0 0.0
    %2083 = vmatpush.xpose.msra.mxu0 0.0
    %2084 = vmatpush.xpose.msra.mxu0 0.0
    %2085 = vmatpush.xpose.msra.mxu0 0.0
    %2086 = vmatpush.xpose.msra.mxu0 0.0
    %2087 = vmatpush.xpose.msra.mxu0 0.0
    %2088 = vmatpush.xpose.msra.mxu0 0.0
    %2089 = vmatpush.xpose.msra.mxu0 0.0
    %2090 = vmatpush.xpose.msra.mxu0 0.0
    %2091 = vmatpush.xpose.msra.mxu0 0.0
    %2092 = vmatpush.xpose.msra.mxu0 %v1994
    %2093 = vmatpush.xpose.msra.mxu0 %v1991
    %2094 = vmatmul.f32.gmra.mxu0 %v2076
    %v2095 = vpop.f32.mrf.mxu0
    %v2096 = vadd.f32 0.0, %v2095
    %2097 = vmatmul.f32.gmra.mxu0 %v2077
    %v2098 = vpop.f32.mrf.mxu0
    %v2099 = vadd.f32 0.0, %v2098
    %2100 = vdwg.mxu0
    %v2101 = vmul.f32 %v2096, 0.17677669
    %v2102 = vmul.f32 %v2099, 0.17677669
    %v2103 = vsel %vm2048, %v2101, -1e+30
    %v2104 = vsel %vm2049, %v2102, -1e+30
    %v2105 = vsel %vm720, %v2103, -inf
    %2106 = vmax.xlane.f32.xlu0 %v2105
    %v2107 = vpop.xlane.xlu0 %2106
    %v2108 = vsel %vm720, %v2104, -inf
    %2109 = vmax.xlane.f32.xlu0 %v2108
    %v2110 = vpop.xlane.xlu0 %2109
    %v2111 = vsub.f32 %v2103, %v2107
    %v2112 = vsub.f32 %v2104, %v2110
    %v2113 = vmul.f32 %v2111, 1.442695
    %v2114 = vpow.pop %v2113
    %v2115 = vmul.f32 %v2112, 1.442695
    %v2116 = vpow.pop %v2115
    %v2117 = vsel %vm720, %v2114, 0.0
    %2118 = vadd.xlane.f32.xlu0 %v2117
    %v2119 = vpop.xlane.xlu0 %2118
    %v2120 = vsel %vm720, %v2116, 0.0
    %2121 = vadd.xlane.f32.xlu0 %v2120
    %v2122 = vpop.xlane.xlu0 %2121
    %v2123 = vrcp.pop %v2119
    %v2124 = vrcp.pop %v2122
    %v2125 = vmul.f32 %v2114, %v2123
    %v2126 = vmul.f32 %v2116, %v2124
    %v2127 = vmul.f32 %v2014, %v473
    %v2128 = vmul.f32 %v2017, %v473
    %v2130 = vsel %vm720, %v2125, 0
    %v2133 = vsel %vm720, %v2126, 0
    %2135 = vmatpush.msra.mxu0 0.0
    %2136 = vmatpush.msra.mxu0 0.0
    %2137 = vmatpush.msra.mxu0 0.0
    %2138 = vmatpush.msra.mxu0 0.0
    %2139 = vmatpush.msra.mxu0 0.0
    %2140 = vmatpush.msra.mxu0 0.0
    %2141 = vmatpush.msra.mxu0 0.0
    %2142 = vmatpush.msra.mxu0 0.0
    %2143 = vmatpush.msra.mxu0 0.0
    %2144 = vmatpush.msra.mxu0 0.0
    %2145 = vmatpush.msra.mxu0 0.0
    %2146 = vmatpush.msra.mxu0 0.0
    %2147 = vmatpush.msra.mxu0 0.0
    %2148 = vmatpush.msra.mxu0 0.0
    %2149 = vmatpush.msra.mxu0 %v2128
    %2150 = vmatpush.msra.mxu0 %v2127
    %2151 = vmatmul.f32.gmra.mxu0 %v2130
    %v2152 = vpop.f32.mrf.mxu0
    %v2153 = vadd.f32 0.0, %v2152
    %2154 = vmatmul.f32.gmra.mxu0 %v2133
    %v2155 = vpop.f32.mrf.mxu0
    %v2156 = vadd.f32 0.0, %v2155
    %2157 = vdwg.mxu0
    %v2159 = vsel %vm720, %v2072, 0
    %v2162 = vsel %vm720, %v2073, 0
    %2164 = vmatpush.msra.mxu0 0.0
    %2165 = vmatpush.msra.mxu0 0.0
    %2166 = vmatpush.msra.mxu0 0.0
    %2167 = vmatpush.msra.mxu0 0.0
    %2168 = vmatpush.msra.mxu0 0.0
    %2169 = vmatpush.msra.mxu0 0.0
    %2170 = vmatpush.msra.mxu0 0.0
    %2171 = vmatpush.msra.mxu0 0.0
    %2172 = vmatpush.msra.mxu0 0.0
    %2173 = vmatpush.msra.mxu0 0.0
    %2174 = vmatpush.msra.mxu0 0.0
    %2175 = vmatpush.msra.mxu0 0.0
    %2176 = vmatpush.msra.mxu0 0.0
    %2177 = vmatpush.msra.mxu0 0.0
    %2178 = vmatpush.msra.mxu0 %v2075
    %2179 = vmatpush.msra.mxu0 %v2074
    %2180 = vmatmul.f32.gmra.mxu0 %v2159
    %v2181 = vpop.f32.mrf.mxu0
    %v2182 = vadd.f32 %v2153, %v2181
    %2183 = vmatmul.f32.gmra.mxu0 %v2162
    %v2184 = vpop.f32.mrf.mxu0
    %v2185 = vadd.f32 %v2156, %v2184
    %2186 = vdwg.mxu0
    %v2187 = vld [vmem:[#allocation32] sm:$0xff]
    %v2188 = vld [vmem:[#allocation32 + $0x8] sm:$0xff]
    %v2189 = vld [vmem:[#allocation32 + $0x10] sm:$0xff]
    %v2190 = vld [vmem:[#allocation32 + $0x18] sm:$0xff]
    %2191 = vmatpush.msra.mxu0 0.0
    %2192 = vmatpush.msra.mxu0 0.0
    %2193 = vmatpush.msra.mxu0 0.0
    %2194 = vmatpush.msra.mxu0 0.0
    %2195 = vmatpush.msra.mxu0 0.0
    %2196 = vmatpush.msra.mxu0 0.0
    %2197 = vmatpush.msra.mxu0 0.0
    %2198 = vmatpush.msra.mxu0 0.0
    %2199 = vmatpush.msra.mxu0 0.0
    %2200 = vmatpush.msra.mxu0 0.0
    %2201 = vmatpush.msra.mxu0 0.0
    %2202 = vmatpush.msra.mxu0 0.0
    %2203 = vmatpush.msra.mxu0 %v2190
    %2204 = vmatpush.msra.mxu0 %v2189
    %2205 = vmatpush.msra.mxu0 %v2188
    %2206 = vmatpush.msra.mxu0 %v2187
    %2207 = vmatmul.f32.gmra.mxu0 %v1945
    %v2208 = vpop.f32.mrf.mxu0
    %v2209 = vadd.f32 0.0, %v2208
    %2210 = vmatmul.f32.gmra.mxu0 %v1948
    %v2211 = vpop.f32.mrf.mxu0
    %v2212 = vadd.f32 0.0, %v2211
    %2213 = vdwg.mxu0
    %v2214 = vadd.f32 %v2182, %v2209
    %v2215 = vadd.f32 %v2185, %v2212
    %v2216 = vld [vmem:[%s51] sm:$0x1]
    %v2218 = vperm.slane %v2216, 0
    %v2220 = vadd.f32 %v2214, %v2218
    %v2221 = vadd.f32 %v2215, %v2218
    %v2222 = vld [vmem:[%s57] sm:$0x1]
    %v2224 = vperm.slane %v2222, 0
    %v2226 = vsub.f32 %v2220, %v2224
    %v2227 = vsub.f32 %v2221, %v2224
    %v2228 = vld [vmem:[%s59] sm:$0x1]
    %v2229 = vadd.f32 %v2228, 1e-05
    %v2230 = vrsqrt.pop %v2229
    %v2231 = vmul.f32 %v2230, %v2229
    %v2232 = vmul.f32 %v2231, %v2230
    %v2233 = vmul.f32 0.5, %v2232
    %v2234 = vsub.f32 1.5, %v2233
    %v2235 = vmul.f32 %v2230, %v2234
    %vm2236 = vweird.f32 %v2229
    %vm2237 = vweird.f32 %v2230
    %vm2238 = vmor %vm2236, %vm2237
    %v2239 = vsel %vm2238, %v2230, %v2235
    %v2241 = vperm.slane %v2239, 0
    %v2243 = vmul.f32 %v2226, %v2241
    %v2244 = vmul.f32 %v2227, %v2241
    %v2245 = vld [vmem:[%s53] sm:$0x1]
    %v2247 = vperm.slane %v2245, 0
    %v2249 = vmul.f32 %v2243, %v2247
    %v2250 = vmul.f32 %v2244, %v2247
    %v2251 = vld [vmem:[%s55] sm:$0x1]
    %v2253 = vperm.slane %v2251, 0
    %v2255 = vadd.f32 %v2249, %v2253
    %v2256 = vadd.f32 %v2250, %v2253
    %vm2257 = vcmp.ge.f32.partialorder %v2255, 0.0
    %vm2258 = vcmp.ge.f32.partialorder %v2256, 0.0
    %v2259 = vmul.f32 %v2255, 0.01
    %v2260 = vmul.f32 %v2256, 0.01
    %v2261 = vsel %vm2257, %v2255, %v2259
    %v2262 = vsel %vm2258, %v2256, %v2260
    %v2263 = vld [vmem:[%s61] sm:$0xff]
    %v2264 = vld [vmem:[%s61 + $0x8] sm:$0xff]
    %v2265 = vld [vmem:[%s61 + $0x10] sm:$0xff]
    %v2266 = vld [vmem:[%s61 + $0x18] sm:$0xff]
    %v2267 = vld [vmem:[%s61 + $0x20] sm:$0xff]
    %v2268 = vld [vmem:[%s61 + $0x28] sm:$0xff]
    %v2269 = vld [vmem:[%s61 + $0x30] sm:$0xff]
    %v2270 = vld [vmem:[%s61 + $0x38] sm:$0xff]
    %v2271 = vld [vmem:[%s61 + $0x40] sm:$0xff]
    %v2272 = vld [vmem:[%s61 + $0x48] sm:$0xff]
    %v2273 = vld [vmem:[%s61 + $0x50] sm:$0xff]
    %v2274 = vld [vmem:[%s61 + $0x58] sm:$0xff]
    %v2275 = vld [vmem:[%s61 + $0x60] sm:$0xff]
    %v2276 = vld [vmem:[%s61 + $0x68] sm:$0xff]
    %v2277 = vld [vmem:[%s61 + $0x70] sm:$0xff]
    %v2278 = vld [vmem:[%s61 + $0x78] sm:$0xff]
    %v2279 = vld [vmem:[%s63] sm:$0x1]
    %v2281 = vperm.slane %v2279, 0
    %2283 = vmatpush.msra.mxu0 %v2278
    %2284 = vmatpush.msra.mxu0 %v2277
    %2285 = vmatpush.msra.mxu0 %v2276
    %2286 = vmatpush.msra.mxu0 %v2275
    %2287 = vmatpush.msra.mxu0 %v2274
    %2288 = vmatpush.msra.mxu0 %v2273
    %2289 = vmatpush.msra.mxu0 %v2272
    %2290 = vmatpush.msra.mxu0 %v2271
    %2291 = vmatpush.msra.mxu0 %v2270
    %2292 = vmatpush.msra.mxu0 %v2269
    %2293 = vmatpush.msra.mxu0 %v2268
    %2294 = vmatpush.msra.mxu0 %v2267
    %2295 = vmatpush.msra.mxu0 %v2266
    %2296 = vmatpush.msra.mxu0 %v2265
    %2297 = vmatpush.msra.mxu0 %v2264
    %2298 = vmatpush.msra.mxu0 %v2263
    %2299 = vmatmul.f32.gmra.mxu0 %v2261
    %v2300 = vpop.f32.mrf.mxu0
    %v2301 = vadd.f32 %v2281, %v2300
    %2302 = vmatmul.f32.gmra.mxu0 %v2262
    %v2303 = vpop.f32.mrf.mxu0
    %v2304 = vadd.f32 %v2281, %v2303
    %2305 = vdwg.mxu0
    %v2306 = vmax.f32 %v2301, 0.0
    %v2307 = vmax.f32 %v2304, 0.0
    %v2308 = vld [vmem:[#allocation34] sm:$0xff]
    %v2309 = vld [vmem:[#allocation34 + $0x8] sm:$0xff]
    %v2310 = vld [vmem:[#allocation34 + $0x10] sm:$0xff]
    %v2311 = vld [vmem:[#allocation34 + $0x18] sm:$0xff]
    %v2312 = vld [vmem:[%s67] sm:$0x1]
    %v2314 = vperm.slane %v2312, 0
    %v2317 = vsel %vm1352, %v2306, 0
    %v2320 = vsel %vm1352, %v2307, 0
    %2322 = vmatpush.msra.mxu0 0.0
    %2323 = vmatpush.msra.mxu0 0.0
    %2324 = vmatpush.msra.mxu0 0.0
    %2325 = vmatpush.msra.mxu0 0.0
    %2326 = vmatpush.msra.mxu0 0.0
    %2327 = vmatpush.msra.mxu0 0.0
    %2328 = vmatpush.msra.mxu0 0.0
    %2329 = vmatpush.msra.mxu0 0.0
    %2330 = vmatpush.msra.mxu0 0.0
    %2331 = vmatpush.msra.mxu0 0.0
    %2332 = vmatpush.msra.mxu0 0.0
    %2333 = vmatpush.msra.mxu0 0.0
    %2334 = vmatpush.msra.mxu0 %v2311
    %2335 = vmatpush.msra.mxu0 %v2310
    %2336 = vmatpush.msra.mxu0 %v2309
    %2337 = vmatpush.msra.mxu0 %v2308
    %2338 = vmatmul.f32.gmra.mxu0 %v2317
    %v2339 = vpop.f32.mrf.mxu0
    %v2340 = vadd.f32 %v2314, %v2339
    %2341 = vmatmul.f32.gmra.mxu0 %v2320
    %v2342 = vpop.f32.mrf.mxu0
    %v2343 = vadd.f32 %v2314, %v2342
    %2344 = vdwg.mxu0
    %2345 = vmax.xlane.f32.xlu0 %v2340
    %v2346 = vpop.xlane.xlu0 %2345
    %2347 = vmax.xlane.f32.xlu0 %v2343
    %v2348 = vpop.xlane.xlu0 %2347
    %v2349 = vsub.f32 %v2340, %v2346
    %v2350 = vsub.f32 %v2343, %v2348
    %v2351 = vmul.f32 %v2349, 1.442695
    %v2352 = vpow.pop %v2351
    %v2353 = vmul.f32 %v2350, 1.442695
    %v2354 = vpow.pop %v2353
    %2355 = vadd.xlane.f32.xlu0 %v2352
    %v2356 = vpop.xlane.xlu0 %2355
    %2357 = vadd.xlane.f32.xlu0 %v2354
    %v2358 = vpop.xlane.xlu0 %2357
    %v2359 = vlog2.pop %v2356
    %v2360 = vmul.f32 %v2359, 0.6931472
    %v2361 = vlog2.pop %v2358
    %v2362 = vmul.f32 %v2361, 0.6931472
    %v2363 = vadd.f32 %v2360, %v2346
    %v2364 = vadd.f32 %v2362, %v2348
    %v2365 = vsub.f32 %v2340, %v2363
    %v2366 = vsub.f32 %v2343, %v2364
    %2367 = vst [vmem:[#allocation35] sm:$0xff] %v2365
    %2368 = vst [vmem:[#allocation35 + $0x8] sm:$0xff] %v2366
    // Predicated region
    $region222: #{tpu_custom_call.1} parent=1 // pred_check
      _
    $region223: #{tpu_custom_call.1} parent=1 // pred_check_branch
      %2370 = sbr.rel (0) target = $region225
    $region224: #{tpu_custom_call.1} parent=1 // pred_region
      %2372 = vsyncadd [#allocation4], 0
      %s2373 = sshll.u32 [#allocation35], 4
      %s2374 = int_to_ptr.vmem [resolvable:$true] %s2373
      %s2375 = sshll.u32 %s69, 4
      %s2376 = int_to_ptr.hbm [resolvable:$true] %s2375
      %2381 = dma.vmem_to_hbm [thread:$0]  %s2374, 256, %s2376, [#allocation4], 128, 128, 8
    $region225: #{tpu_custom_call.1} parent=1 // pred_fallthru
      _
    // Predicated region
    $region226: #{tpu_custom_call.1} parent=1 // pred_check
      _
    $region227: #{tpu_custom_call.1} parent=1 // pred_check_branch
      %2383 = sbr.rel (0) target = $region229
    $region228: #{tpu_custom_call.1} parent=1 // pred_region
      %2385 = dma.done [#allocation4], 256
    $region229: #{tpu_custom_call.1} parent=1 // pred_fallthru
      _
    %2386 = vsyncpa [#allocation3], 1
    %2387 = vsyncpa [#allocation6], 1
    %2388 = vsyncpa [#allocation9], 1
    %2389 = vsyncpa [#allocation12], 1
    %2390 = vsyncpa [#allocation15], 1
    %2391 = vsyncpa [#allocation18], 1
    %2392 = vsyncpa [#allocation21], 1
    %2393 = vsyncpa [#allocation24], 1
    %2394 = vsyncpa [#allocation27], 1
    %2395 = vsyncpa [#allocation30], 1
    %2396 = vsyncpa [#allocation33], 1
    %2397 = vsyncpa [#allocation4], 1

</llo_original>
